<compile_context>
chip_gen: v5e
topology: v5e:2x2
jax: 0.10.0
libtpu: 0.0.40
codegen_flags: <defaults>
</compile_context>

<pallas_src>
import functools

import jax
import jax.numpy as jnp
from jax.experimental import pallas as pl
from jax.experimental.pallas import tpu as pltpu

_BN_EPS = 1e-5
_LANE = 128


def _cdiv(a, b):
    return -(-a // b)


def _round_up(a, b):
    return _cdiv(a, b) * b


# --------------------------------------------------------------------------
# In-kernel helpers
# --------------------------------------------------------------------------
def _bn_scale_shift(ssum_ref, ssq_ref, g_ref, b_ref, inv_m):
    """Fold training-mode BN (batch stats) into y = z * scale + shift."""
    mean = ssum_ref[...] * inv_m                      # (1, C)
    var = ssq_ref[...] * inv_m - mean * mean          # biased variance
    scale = g_ref[...] * jax.lax.rsqrt(var + _BN_EPS)
    shift = b_ref[...] - mean * scale
    return scale, shift


def _accum_conv3x3(acc_ref, w_ref, get_tap, ho, wo):
    """acc = sum over the 9 taps of tap2d @ W[tap]; all matmuls on the MXU."""
    acc_ref[...] = jnp.zeros_like(acc_ref)
    for kh in range(3):
        for kw in range(3):
            tap = get_tap(kh, kw)                                   # (ho, wo, K)
            lhs = tap.reshape(ho * wo, tap.shape[-1]).astype(w_ref.dtype)
            acc_ref[...] += jnp.dot(lhs, w_ref[kh * 3 + kw],
                                    preferred_element_type=jnp.float32)


# --------------------------------------------------------------------------
# Pallas kernels
# --------------------------------------------------------------------------
def _conv3x3_stats_kernel(xph_ref, w_ref, z_ref, ssum_ref, ssq_ref, acc_ref,
                          *, ho, wo, stride):
    """Pass 1: conv1 on one image + accumulate per-channel sum / sum-of-squares."""
    @pl.when(pl.program_id(0) == 0)
    def _init():
        ssum_ref[...] = jnp.zeros_like(ssum_ref)
        ssq_ref[...] = jnp.zeros_like(ssq_ref)

    s = stride

    def get_tap(kh, kw):
        # stride-phase decomposition: xp[s*i+kh, s*j+kw] lives in phase
        # (kh % s, kw % s) at offset (kh // s, kw // s) -> unit-stride slice.
        plane = (kh % s) * s + (kw % s)
        oh, ow = kh // s, kw // s
        return xph_ref[plane, oh:oh + ho, ow:ow + wo, :]

    _accum_conv3x3(acc_ref, w_ref, get_tap, ho, wo)
    z = acc_ref[...]                                  # (ho*wo, C) f32
    z_ref[0] = z
    ssum_ref[...] += jnp.sum(z, axis=0, keepdims=True)
    ssq_ref[...] += jnp.sum(z * z, axis=0, keepdims=True)


def _bn_relu_conv3x3_stats_kernel(z1_ref, s1sum_ref, s1sq_ref, g_ref, b_ref, w_ref,
                                  z2_ref, s2sum_ref, s2sq_ref,
                                  acc_ref, ypad_ref, *, ho, wo, inv_m):
    """Pass 2: bn1 + relu + conv2 (fused in VMEM) + accumulate bn2 stats."""
    @pl.when(pl.program_id(0) == 0)
    def _init():
        s2sum_ref[...] = jnp.zeros_like(s2sum_ref)
        s2sq_ref[...] = jnp.zeros_like(s2sq_ref)
        ypad_ref[...] = jnp.zeros_like(ypad_ref)      # zero halo, border stays 0

    c = z1_ref.shape[-1]
    scale, shift = _bn_scale_shift(s1sum_ref, s1sq_ref, g_ref, b_ref, inv_m)
    y1 = jnp.maximum(z1_ref[0] * scale + shift, 0.0)  # (ho*wo, C)
    ypad_ref[1:1 + ho, 1:1 + wo, :] = y1.reshape(ho, wo, c)

    def get_tap(kh, kw):
        return ypad_ref[kh:kh + ho, kw:kw + wo, :]

    _accum_conv3x3(acc_ref, w_ref, get_tap, ho, wo)
    z2 = acc_ref[...]
    z2_ref[0] = z2
    s2sum_ref[...] += jnp.sum(z2, axis=0, keepdims=True)
    s2sq_ref[...] += jnp.sum(z2 * z2, axis=0, keepdims=True)


def _bn_add_relu_proj_kernel(z2_ref, ssum_ref, ssq_ref, g_ref, b_ref,
                             xs_ref, w3_ref, b3_ref, o_ref, *, inv_m):
    """Pass 3 (projection shortcut): bn2 + conv1x1(X) + add + relu."""
    scale, shift = _bn_scale_shift(ssum_ref, ssq_ref, g_ref, b_ref, inv_m)
    y = z2_ref[0] * scale + shift
    sc = jnp.dot(xs_ref[0].astype(w3_ref.dtype), w3_ref[...],
                 preferred_element_type=jnp.float32) + b3_ref[...]
    o_ref[0] = jnp.maximum(y + sc, 0.0)


def _bn_add_relu_identity_kernel(z2_ref, ssum_ref, ssq_ref, g_ref, b_ref,
                                 xs_ref, o_ref, *, inv_m):
    """Pass 3 (identity shortcut): bn2 + direct add of X + relu (no matmul)."""
    scale, shift = _bn_scale_shift(ssum_ref, ssq_ref, g_ref, b_ref, inv_m)
    y = z2_ref[0] * scale + shift
    o_ref[0] = jnp.maximum(y + xs_ref[0], 0.0)


# --------------------------------------------------------------------------
# Plain-JAX layout plumbing (1x-sized, no 9x im2col expansion anywhere)
# --------------------------------------------------------------------------
def _phase_planes(x_nhwc, cin_p, stride, pad=1):
    """Zero-pad spatially + channels, then split into stride^2 unit-stride phases.

    Returns [N*stride^2, Hs, Ws, cin_p] with phase index a*stride + b holding
    xp[:, a::stride, b::stride, :].
    """
    n, h, w, c = x_nhwc.shape
    s = stride
    xp = jnp.pad(x_nhwc, ((0, 0), (pad, pad), (pad, pad), (0, cin_p - c)))
    hp, wp = h + 2 * pad, w + 2 * pad
    hs, ws = _cdiv(hp, s), _cdiv(wp, s)
    xp = jnp.pad(xp, ((0, 0), (0, hs * s - hp), (0, ws * s - wp), (0, 0)))
    xp = xp.reshape(n, hs, s, ws, s, cin_p)
    xp = jnp.transpose(xp, (0, 2, 4, 1, 3, 5))        # (n, a, b, hs, ws, c)
    return xp.reshape(n * s * s, hs, ws, cin_p)


def _conv3x3_weight(w_oihw, cin_p, cout_p):
    """[Cout, Cin, 3, 3] -> [9, cin_p, cout_p] per-tap matmul weights (zero-padded)."""
    cout, cin = w_oihw.shape[0], w_oihw.shape[1]
    wt = jnp.transpose(w_oihw, (2, 3, 1, 0)).reshape(9, cin, cout)
    return jnp.pad(wt, ((0, 0), (0, cin_p - cin), (0, cout_p - cout)))


def _row(v, c_pad):
    v = v.reshape(1, -1)
    return jnp.pad(v, ((0, 0), (0, c_pad - v.shape[1])))


# --------------------------------------------------------------------------
# Residual module forward (Pallas path)
# --------------------------------------------------------------------------
def init_residual_params(key, input_channels, num_channels, use_1x1conv):
    ks = jax.random.split(key, 6)
    params = {
        "w1": 0.1 * jax.random.normal(ks[0], (num_channels, input_channels, 3, 3), jnp.float32),
        "b1": 0.1 * jax.random.normal(ks[1], (num_channels,), jnp.float32),
        "w2": 0.1 * jax.random.normal(ks[2], (num_channels, num_channels, 3, 3), jnp.float32),
        "b2": 0.1 * jax.random.normal(ks[3], (num_channels,), jnp.float32),
        # BatchNorm defaults: gamma=1, beta=0
        "g1": jnp.ones((num_channels,), jnp.float32),
        "beta1": jnp.zeros((num_channels,), jnp.float32),
        "g2": jnp.ones((num_channels,), jnp.float32),
        "beta2": jnp.zeros((num_channels,), jnp.float32),
    }
    if use_1x1conv:
        params["w3"] = 0.1 * jax.random.normal(ks[4], (num_channels, input_channels, 1, 1), jnp.float32)
        params["b3"] = 0.1 * jax.random.normal(ks[5], (num_channels,), jnp.float32)
    return params


@functools.partial(jax.jit, static_argnames=("use_1x1conv", "strides", "matmul_dtype"))
def residual_forward(x_nchw, params, use_1x1conv=False, strides=1,
                     matmul_dtype=jnp.float32):
    n, cin, h, w = x_nchw.shape
    cout = params["w1"].shape[0]
    s = strides
    ho = (h - 1) // s + 1
    wo = (w - 1) // s + 1
    m_img = ho * wo
    m_total = n * m_img
    inv_m = 1.0 / float(m_total)
    cin_p = _round_up(cin, _LANE)
    cmid_p = _round_up(cout, _LANE)
    mmt = matmul_dtype

    x_nhwc = jnp.transpose(x_nchw, (0, 2, 3, 1)).astype(jnp.float32)

    # ---------------- pass 1: conv1 + bn1 statistics ----------------
    xph = _phase_planes(x_nhwc, cin_p, s).astype(mmt)      # (n*s*s, hs, ws, cin_p)
    hs, ws = xph.shape[1], xph.shape[2]
    w1t = _conv3x3_weight(params["w1"], cin_p, cmid_p).astype(mmt)
    # NOTE: conv1/conv2 biases are dropped on purpose (cancelled by BN mean).

    z1, s1sum, s1sq = pl.pallas_call(
        functools.partial(_conv3x3_stats_kernel, ho=ho, wo=wo, stride=s),
        grid=(n,),
        in_specs=[
            pl.BlockSpec((s * s, hs, ws, cin_p), lambda i: (i, 0, 0, 0)),
            pl.BlockSpec((9, cin_p, cmid_p), lambda i: (0, 0, 0)),
        ],
        out_specs=(
            pl.BlockSpec((1, m_img, cmid_p), lambda i: (i, 0, 0)),
            pl.BlockSpec((1, cmid_p), lambda i: (0, 0)),
            pl.BlockSpec((1, cmid_p), lambda i: (0, 0)),
        ),
        out_shape=(
            jax.ShapeDtypeStruct((n, m_img, cmid_p), jnp.float32),
            jax.ShapeDtypeStruct((1, cmid_p), jnp.float32),
            jax.ShapeDtypeStruct((1, cmid_p), jnp.float32),
        ),
        scratch_shapes=[pltpu.VMEM((m_img, cmid_p), jnp.float32)],
        compiler_params=pltpu.CompilerParams(dimension_semantics=("arbitrary",)),
    )(xph, w1t)

    # ---------------- pass 2: bn1 + relu + conv2 + bn2 statistics ----------------
    w2t = _conv3x3_weight(params["w2"], cmid_p, cmid_p).astype(mmt)
    g1r = _row(params["g1"], cmid_p)
    b1r = _row(params["beta1"], cmid_p)

    z2, s2sum, s2sq = pl.pallas_call(
        functools.partial(_bn_relu_conv3x3_stats_kernel, ho=ho, wo=wo, inv_m=inv_m),
        grid=(n,),
        in_specs=[
            pl.BlockSpec((1, m_img, cmid_p), lambda i: (i, 0, 0)),
            pl.BlockSpec((1, cmid_p), lambda i: (0, 0)),
            pl.BlockSpec((1, cmid_p), lambda i: (0, 0)),
            pl.BlockSpec((1, cmid_p), lambda i: (0, 0)),
            pl.BlockSpec((1, cmid_p), lambda i: (0, 0)),
            pl.BlockSpec((9, cmid_p, cmid_p), lambda i: (0, 0, 0)),
        ],
        out_specs=(
            pl.BlockSpec((1, m_img, cmid_p), lambda i: (i, 0, 0)),
            pl.BlockSpec((1, cmid_p), lambda i: (0, 0)),
            pl.BlockSpec((1, cmid_p), lambda i: (0, 0)),
        ),
        out_shape=(
            jax.ShapeDtypeStruct((n, m_img, cmid_p), jnp.float32),
            jax.ShapeDtypeStruct((1, cmid_p), jnp.float32),
            jax.ShapeDtypeStruct((1, cmid_p), jnp.float32),
        ),
        scratch_shapes=[
            pltpu.VMEM((m_img, cmid_p), jnp.float32),
            pltpu.VMEM((ho + 2, wo + 2, cmid_p), jnp.float32),
        ],
        compiler_params=pltpu.CompilerParams(dimension_semantics=("arbitrary",)),
    )(z1, s1sum, s1sq, g1r, b1r, w2t)

    # ---------------- pass 3: bn2 + shortcut + add + relu ----------------
    g2r = _row(params["g2"], cmid_p)
    b2r = _row(params["beta2"], cmid_p)
    common_in = [
        pl.BlockSpec((1, m_img, cmid_p), lambda i: (i, 0, 0)),
        pl.BlockSpec((1, cmid_p), lambda i: (0, 0)),
        pl.BlockSpec((1, cmid_p), lambda i: (0, 0)),
        pl.BlockSpec((1, cmid_p), lambda i: (0, 0)),
        pl.BlockSpec((1, cmid_p), lambda i: (0, 0)),
    ]
    out_spec = pl.BlockSpec((1, m_img, cmid_p), lambda i: (i, 0, 0))
    out_shape = jax.ShapeDtypeStruct((n, m_img, cmid_p), jnp.float32)

    if use_1x1conv:
        xs = x_nhwc[:, ::s, ::s, :]
        xs = jnp.pad(xs, ((0, 0), (0, 0), (0, 0), (0, cin_p - cin)))
        xs = xs.reshape(n, m_img, cin_p).astype(mmt)
        w3t = jnp.pad(params["w3"].reshape(cout, cin).T,
                      ((0, cin_p - cin), (0, cmid_p - cout))).astype(mmt)
        b3r = _row(params["b3"], cmid_p)
        out = pl.pallas_call(
            functools.partial(_bn_add_relu_proj_kernel, inv_m=inv_m),
            grid=(n,),
            in_specs=common_in + [
                pl.BlockSpec((1, m_img, cin_p), lambda i: (i, 0, 0)),
                pl.BlockSpec((cin_p, cmid_p), lambda i: (0, 0)),
                pl.BlockSpec((1, cmid_p), lambda i: (0, 0)),
            ],
            out_specs=out_spec,
            out_shape=out_shape,
            compiler_params=pltpu.CompilerParams(dimension_semantics=("parallel",)),
        )(z2, s2sum, s2sq, g2r, b2r, xs, w3t, b3r)
    else:
        assert s == 1 and cin == cout, "identity shortcut requires stride 1 and matching channels"
        xs = jnp.pad(x_nhwc, ((0, 0), (0, 0), (0, 0), (0, cmid_p - cin)))
        xs = xs.reshape(n, m_img, cmid_p)
        out = pl.pallas_call(
            functools.partial(_bn_add_relu_identity_kernel, inv_m=inv_m),
            grid=(n,),
            in_specs=common_in + [
                pl.BlockSpec((1, m_img, cmid_p), lambda i: (i, 0, 0)),
            ],
            out_specs=out_spec,
            out_shape=out_shape,
            compiler_params=pltpu.CompilerParams(dimension_semantics=("parallel",)),
        )(z2, s2sum, s2sq, g2r, b2r, xs)

    out_nhwc = out.reshape(n, ho, wo, cmid_p)[..., :cout]
    return jnp.transpose(out_nhwc, (0, 3, 1, 2))            # back to NCHW


# --------------------------------------------------------------------------
# Pure-JAX reference (exact PyTorch semantics, incl. the no-op conv biases)
# --------------------------------------------------------------------------
def _ref_residual(x, params, use_1x1conv, strides):
    def conv(x, w, b, s, pad):
        y = jax.lax.conv_general_dilated(
            x, w, (s, s), [(pad, pad), (pad, pad)],
            dimension_numbers=("NCHW", "OIHW", "NCHW"))
        return y + b[None, :, None, None]

    def bn(y, g, bt):
        mean = y.mean(axis=(0, 2, 3), keepdims=True)
        var = ((y - mean) ** 2).mean(axis=(0, 2, 3), keepdims=True)
        return (g[None, :, None, None] * (y - mean) / jnp.sqrt(var + _BN_EPS)
                + bt[None, :, None, None])

    y = jax.nn.relu(bn(conv(x, params["w1"], params["b1"], strides, 1),
                       params["g1"], params["beta1"]))
    y = bn(conv(y, params["w2"], params["b2"], 1, 1),
           params["g2"], params["beta2"])
    if use_1x1conv:
        x = conv(x, params["w3"], params["b3"], strides, 0)
    return jax.nn.relu(y + x)


if __name__ == "__main__":
    key = jax.random.PRNGKey(0)
    kx, kp1, kp2 = jax.random.split(key, 3)

    # Case 1: downsampling block with 1x1-conv projection shortcut (stride 2, 4 -> 8 ch)
    x = jax.random.normal(kx, (2, 4, 16, 16), jnp.float32)
    params1 = init_residual_params(kp1, 4, 8, use_1x1conv=True)
    out1 = residual_forward(x, params1, use_1x1conv=True, strides=2)
    jax.block_until_ready(out1)
    ref1 = _ref_residual(x, params1, True, 2)
    assert out1.shape == (2, 8, 8, 8)
    assert jnp.allclose(out1, ref1, atol=1e-4, rtol=1e-4), float(jnp.max(jnp.abs(out1 - ref1)))

    # Case 2: identity-shortcut block (stride 1, 8 -> 8 ch) -- shortcut is a plain add
    x2 = jax.random.normal(kx, (2, 8, 16, 16), jnp.float32)
    params2 = init_residual_params(kp2, 8, 8, use_1x1conv=False)
    out2 = residual_forward(x2, params2, use_1x1conv=False, strides=1)
    jax.block_until_ready(out2)
    ref2 = _ref_residual(x2, params2, False, 1)
    assert out2.shape == (2, 8, 16, 16)
    assert jnp.allclose(out2, ref2, atol=1e-4, rtol=1e-4), float(jnp.max(jnp.abs(out2 - ref2)))

    # Case 3: bf16 MXU inputs (v6e/v7x-friendly), f32 accumulation + f32 BN math.
    out3 = residual_forward(x, params1, use_1x1conv=True, strides=2,
                            matmul_dtype=jnp.bfloat16)
    jax.block_until_ready(out3)
    assert out3.shape == (2, 8, 8, 8)
    assert jnp.allclose(out3, ref1, atol=0.25, rtol=0.0), float(jnp.max(jnp.abs(out3 - ref1)))

    print("KERNEL_OK")
</pallas_src>

<mosaic_0001>
module attributes {stable_mosaic.version = 11 : i64} {
  func.func @_conv3x3_stats_kernel(%arg0: i32, %arg1: memref<4x9x9x128xf32, #tpu.memory_space<vmem>>, %arg2: memref<9x128x128xf32, #tpu.memory_space<vmem>>, %arg3: memref<1x64x128xf32, #tpu.memory_space<vmem>>, %arg4: memref<1x128xf32, #tpu.memory_space<vmem>>, %arg5: memref<1x128xf32, #tpu.memory_space<vmem>>, %arg6: memref<64x128xf32, #tpu.memory_space<vmem>>) attributes {dimension_semantics = [#tpu.dimension_semantics<arbitrary>], iteration_bounds = array<i64: 2>, scalar_prefetch = 0 : i64, scratch_operands = 1 : i64, tpu.core_type = #tpu.core_type<tc>, window_params = [{transform_indices = @transform_0, window_bounds = array<i64: 4, 9, 9, 128>}, {pipeline_mode = #tpu.pipeline_mode<synchronous>, transform_indices = @transform_1, window_bounds = array<i64: 9, 128, 128>}, {transform_indices = @transform_2, window_bounds = array<i64: 1, 64, 128>}, {pipeline_mode = #tpu.pipeline_mode<synchronous>, transform_indices = @transform_3, window_bounds = array<i64: 1, 128>}, {pipeline_mode = #tpu.pipeline_mode<synchronous>, transform_indices = @transform_4, window_bounds = array<i64: 1, 128>}]} {
    %c0_i32 = arith.constant 0 : i32
    %0 = arith.cmpi eq, %arg0, %c0_i32 : i32
    %1 = arith.extui %0 : i1 to i32
    %c0_i32_0 = arith.constant 0 : i32
    %2 = arith.cmpi ne, %1, %c0_i32_0 : i32
    scf.if %2 {
      %cst_117 = arith.constant 0.000000e+00 : f32
      %101 = vector.broadcast %cst_117 : f32 to vector<1x128xf32>
      %c0_118 = arith.constant 0 : index
      %c0_119 = arith.constant 0 : index
      %102 = vector.load %arg4[%c0_118, %c0_119] : memref<1x128xf32, #tpu.memory_space<vmem>>, vector<1x128xf32>
      tpu.vector_store %arg4[%c0_118, %c0_119], %101 {strides = array<i32>} : memref<1x128xf32, #tpu.memory_space<vmem>>, vector<1x128xf32>,
      %cst_120 = arith.constant 0.000000e+00 : f32
      %103 = vector.broadcast %cst_120 : f32 to vector<1x128xf32>
      %c0_121 = arith.constant 0 : index
      %c0_122 = arith.constant 0 : index
      %104 = vector.load %arg5[%c0_121, %c0_122] : memref<1x128xf32, #tpu.memory_space<vmem>>, vector<1x128xf32>
      tpu.vector_store %arg5[%c0_121, %c0_122], %103 {strides = array<i32>} : memref<1x128xf32, #tpu.memory_space<vmem>>, vector<1x128xf32>,
    } else {
    }
    %cst = arith.constant 0.000000e+00 : f32
    %3 = vector.broadcast %cst : f32 to vector<64x128xf32>
    %c0 = arith.constant 0 : index
    %c0_1 = arith.constant 0 : index
    %4 = vector.load %arg6[%c0, %c0_1] : memref<64x128xf32, #tpu.memory_space<vmem>>, vector<64x128xf32>
    tpu.vector_store %arg6[%c0, %c0_1], %3 {strides = array<i32>} : memref<64x128xf32, #tpu.memory_space<vmem>>, vector<64x128xf32>,
    %c0_2 = arith.constant 0 : index
    %c0_3 = arith.constant 0 : index
    %c0_4 = arith.constant 0 : index
    %c0_5 = arith.constant 0 : index
    %5 = vector.load %arg1[%c0_2, %c0_3, %c0_4, %c0_5] : memref<4x9x9x128xf32, #tpu.memory_space<vmem>>, vector<1x8x8x128xf32>
    %6 = vector.shape_cast %5 : vector<1x8x8x128xf32> to vector<8x8x128xf32>
    %7 = vector.shape_cast %6 : vector<8x8x128xf32> to vector<64x128xf32>
    %c0_6 = arith.constant 0 : index
    %c0_7 = arith.constant 0 : index
    %8 = vector.load %arg6[%c0_6, %c0_7] : memref<64x128xf32, #tpu.memory_space<vmem>>, vector<64x128xf32>
    %c0_8 = arith.constant 0 : index
    %c0_9 = arith.constant 0 : index
    %c0_10 = arith.constant 0 : index
    %9 = vector.load %arg2[%c0_8, %c0_9, %c0_10] : memref<9x128x128xf32, #tpu.memory_space<vmem>>, vector<1x128x128xf32>
    %10 = vector.shape_cast %9 : vector<1x128x128xf32> to vector<128x128xf32>
    %cst_11 = arith.constant dense<0.000000e+00> : vector<64x128xf32>
    %11 = tpu.matmul %7, %10, %cst_11 {dimension_numbers = #tpu.dot_dimension_numbers<[1], [0], [0], [1], [0, 0, 1, 1], [], []>} : vector<64x128xf32>, vector<128x128xf32>, vector<64x128xf32> -> vector<64x128xf32>
    %12 = arith.addf %8, %11 : vector<64x128xf32>
    %c0_12 = arith.constant 0 : index
    %c0_13 = arith.constant 0 : index
    %13 = vector.load %arg6[%c0_12, %c0_13] : memref<64x128xf32, #tpu.memory_space<vmem>>, vector<64x128xf32>
    tpu.vector_store %arg6[%c0_12, %c0_13], %12 {strides = array<i32>} : memref<64x128xf32, #tpu.memory_space<vmem>>, vector<64x128xf32>,
    %c1 = arith.constant 1 : index
    %c0_14 = arith.constant 0 : index
    %c0_15 = arith.constant 0 : index
    %c0_16 = arith.constant 0 : index
    %14 = vector.load %arg1[%c1, %c0_14, %c0_15, %c0_16] : memref<4x9x9x128xf32, #tpu.memory_space<vmem>>, vector<1x8x8x128xf32>
    %15 = vector.shape_cast %14 : vector<1x8x8x128xf32> to vector<8x8x128xf32>
    %16 = vector.shape_cast %15 : vector<8x8x128xf32> to vector<64x128xf32>
    %c0_17 = arith.constant 0 : index
    %c0_18 = arith.constant 0 : index
    %17 = vector.load %arg6[%c0_17, %c0_18] : memref<64x128xf32, #tpu.memory_space<vmem>>, vector<64x128xf32>
    %c1_19 = arith.constant 1 : index
    %c0_20 = arith.constant 0 : index
    %c0_21 = arith.constant 0 : index
    %18 = vector.load %arg2[%c1_19, %c0_20, %c0_21] : memref<9x128x128xf32, #tpu.memory_space<vmem>>, vector<1x128x128xf32>
    %19 = vector.shape_cast %18 : vector<1x128x128xf32> to vector<128x128xf32>
    %cst_22 = arith.constant dense<0.000000e+00> : vector<64x128xf32>
    %20 = tpu.matmul %16, %19, %cst_22 {dimension_numbers = #tpu.dot_dimension_numbers<[1], [0], [0], [1], [0, 0, 1, 1], [], []>} : vector<64x128xf32>, vector<128x128xf32>, vector<64x128xf32> -> vector<64x128xf32>
    %21 = arith.addf %17, %20 : vector<64x128xf32>
    %c0_23 = arith.constant 0 : index
    %c0_24 = arith.constant 0 : index
    %22 = vector.load %arg6[%c0_23, %c0_24] : memref<64x128xf32, #tpu.memory_space<vmem>>, vector<64x128xf32>
    tpu.vector_store %arg6[%c0_23, %c0_24], %21 {strides = array<i32>} : memref<64x128xf32, #tpu.memory_space<vmem>>, vector<64x128xf32>,
    %c0_25 = arith.constant 0 : index
    %c0_26 = arith.constant 0 : index
    %c1_27 = arith.constant 1 : index
    %c0_28 = arith.constant 0 : index
    %23 = vector.load %arg1[%c0_25, %c0_26, %c1_27, %c0_28] : memref<4x9x9x128xf32, #tpu.memory_space<vmem>>, vector<1x8x8x128xf32>
    %24 = vector.shape_cast %23 : vector<1x8x8x128xf32> to vector<8x8x128xf32>
    %25 = vector.shape_cast %24 : vector<8x8x128xf32> to vector<64x128xf32>
    %c0_29 = arith.constant 0 : index
    %c0_30 = arith.constant 0 : index
    %26 = vector.load %arg6[%c0_29, %c0_30] : memref<64x128xf32, #tpu.memory_space<vmem>>, vector<64x128xf32>
    %c2 = arith.constant 2 : index
    %c0_31 = arith.constant 0 : index
    %c0_32 = arith.constant 0 : index
    %27 = vector.load %arg2[%c2, %c0_31, %c0_32] : memref<9x128x128xf32, #tpu.memory_space<vmem>>, vector<1x128x128xf32>
    %28 = vector.shape_cast %27 : vector<1x128x128xf32> to vector<128x128xf32>
    %cst_33 = arith.constant dense<0.000000e+00> : vector<64x128xf32>
    %29 = tpu.matmul %25, %28, %cst_33 {dimension_numbers = #tpu.dot_dimension_numbers<[1], [0], [0], [1], [0, 0, 1, 1], [], []>} : vector<64x128xf32>, vector<128x128xf32>, vector<64x128xf32> -> vector<64x128xf32>
    %30 = arith.addf %26, %29 : vector<64x128xf32>
    %c0_34 = arith.constant 0 : index
    %c0_35 = arith.constant 0 : index
    %31 = vector.load %arg6[%c0_34, %c0_35] : memref<64x128xf32, #tpu.memory_space<vmem>>, vector<64x128xf32>
    tpu.vector_store %arg6[%c0_34, %c0_35], %30 {strides = array<i32>} : memref<64x128xf32, #tpu.memory_space<vmem>>, vector<64x128xf32>,
    %c2_36 = arith.constant 2 : index
    %c0_37 = arith.constant 0 : index
    %c0_38 = arith.constant 0 : index
    %c0_39 = arith.constant 0 : index
    %32 = vector.load %arg1[%c2_36, %c0_37, %c0_38, %c0_39] : memref<4x9x9x128xf32, #tpu.memory_space<vmem>>, vector<1x8x8x128xf32>
    %33 = vector.shape_cast %32 : vector<1x8x8x128xf32> to vector<8x8x128xf32>
    %34 = vector.shape_cast %33 : vector<8x8x128xf32> to vector<64x128xf32>
    %c0_40 = arith.constant 0 : index
    %c0_41 = arith.constant 0 : index
    %35 = vector.load %arg6[%c0_40, %c0_41] : memref<64x128xf32, #tpu.memory_space<vmem>>, vector<64x128xf32>
    %c3 = arith.constant 3 : index
    %c0_42 = arith.constant 0 : index
    %c0_43 = arith.constant 0 : index
    %36 = vector.load %arg2[%c3, %c0_42, %c0_43] : memref<9x128x128xf32, #tpu.memory_space<vmem>>, vector<1x128x128xf32>
    %37 = vector.shape_cast %36 : vector<1x128x128xf32> to vector<128x128xf32>
    %cst_44 = arith.constant dense<0.000000e+00> : vector<64x128xf32>
    %38 = tpu.matmul %34, %37, %cst_44 {dimension_numbers = #tpu.dot_dimension_numbers<[1], [0], [0], [1], [0, 0, 1, 1], [], []>} : vector<64x128xf32>, vector<128x128xf32>, vector<64x128xf32> -> vector<64x128xf32>
    %39 = arith.addf %35, %38 : vector<64x128xf32>
    %c0_45 = arith.constant 0 : index
    %c0_46 = arith.constant 0 : index
    %40 = vector.load %arg6[%c0_45, %c0_46] : memref<64x128xf32, #tpu.memory_space<vmem>>, vector<64x128xf32>
    tpu.vector_store %arg6[%c0_45, %c0_46], %39 {strides = array<i32>} : memref<64x128xf32, #tpu.memory_space<vmem>>, vector<64x128xf32>,
    %c3_47 = arith.constant 3 : index
    %c0_48 = arith.constant 0 : index
    %c0_49 = arith.constant 0 : index
    %c0_50 = arith.constant 0 : index
    %41 = vector.load %arg1[%c3_47, %c0_48, %c0_49, %c0_50] : memref<4x9x9x128xf32, #tpu.memory_space<vmem>>, vector<1x8x8x128xf32>
    %42 = vector.shape_cast %41 : vector<1x8x8x128xf32> to vector<8x8x128xf32>
    %43 = vector.shape_cast %42 : vector<8x8x128xf32> to vector<64x128xf32>
    %c0_51 = arith.constant 0 : index
    %c0_52 = arith.constant 0 : index
    %44 = vector.load %arg6[%c0_51, %c0_52] : memref<64x128xf32, #tpu.memory_space<vmem>>, vector<64x128xf32>
    %c4 = arith.constant 4 : index
    %c0_53 = arith.constant 0 : index
    %c0_54 = arith.constant 0 : index
    %45 = vector.load %arg2[%c4, %c0_53, %c0_54] : memref<9x128x128xf32, #tpu.memory_space<vmem>>, vector<1x128x128xf32>
    %46 = vector.shape_cast %45 : vector<1x128x128xf32> to vector<128x128xf32>
    %cst_55 = arith.constant dense<0.000000e+00> : vector<64x128xf32>
    %47 = tpu.matmul %43, %46, %cst_55 {dimension_numbers = #tpu.dot_dimension_numbers<[1], [0], [0], [1], [0, 0, 1, 1], [], []>} : vector<64x128xf32>, vector<128x128xf32>, vector<64x128xf32> -> vector<64x128xf32>
    %48 = arith.addf %44, %47 : vector<64x128xf32>
    %c0_56 = arith.constant 0 : index
    %c0_57 = arith.constant 0 : index
    %49 = vector.load %arg6[%c0_56, %c0_57] : memref<64x128xf32, #tpu.memory_space<vmem>>, vector<64x128xf32>
    tpu.vector_store %arg6[%c0_56, %c0_57], %48 {strides = array<i32>} : memref<64x128xf32, #tpu.memory_space<vmem>>, vector<64x128xf32>,
    %c2_58 = arith.constant 2 : index
    %c0_59 = arith.constant 0 : index
    %c1_60 = arith.constant 1 : index
    %c0_61 = arith.constant 0 : index
    %50 = vector.load %arg1[%c2_58, %c0_59, %c1_60, %c0_61] : memref<4x9x9x128xf32, #tpu.memory_space<vmem>>, vector<1x8x8x128xf32>
    %51 = vector.shape_cast %50 : vector<1x8x8x128xf32> to vector<8x8x128xf32>
    %52 = vector.shape_cast %51 : vector<8x8x128xf32> to vector<64x128xf32>
    %c0_62 = arith.constant 0 : index
    %c0_63 = arith.constant 0 : index
    %53 = vector.load %arg6[%c0_62, %c0_63] : memref<64x128xf32, #tpu.memory_space<vmem>>, vector<64x128xf32>
    %c5 = arith.constant 5 : index
    %c0_64 = arith.constant 0 : index
    %c0_65 = arith.constant 0 : index
    %54 = vector.load %arg2[%c5, %c0_64, %c0_65] : memref<9x128x128xf32, #tpu.memory_space<vmem>>, vector<1x128x128xf32>
    %55 = vector.shape_cast %54 : vector<1x128x128xf32> to vector<128x128xf32>
    %cst_66 = arith.constant dense<0.000000e+00> : vector<64x128xf32>
    %56 = tpu.matmul %52, %55, %cst_66 {dimension_numbers = #tpu.dot_dimension_numbers<[1], [0], [0], [1], [0, 0, 1, 1], [], []>} : vector<64x128xf32>, vector<128x128xf32>, vector<64x128xf32> -> vector<64x128xf32>
    %57 = arith.addf %53, %56 : vector<64x128xf32>
    %c0_67 = arith.constant 0 : index
    %c0_68 = arith.constant 0 : index
    %58 = vector.load %arg6[%c0_67, %c0_68] : memref<64x128xf32, #tpu.memory_space<vmem>>, vector<64x128xf32>
    tpu.vector_store %arg6[%c0_67, %c0_68], %57 {strides = array<i32>} : memref<64x128xf32, #tpu.memory_space<vmem>>, vector<64x128xf32>,
    %c0_69 = arith.constant 0 : index
    %c1_70 = arith.constant 1 : index
    %c0_71 = arith.constant 0 : index
    %c0_72 = arith.constant 0 : index
    %59 = vector.load %arg1[%c0_69, %c1_70, %c0_71, %c0_72] : memref<4x9x9x128xf32, #tpu.memory_space<vmem>>, vector<1x8x8x128xf32>
    %60 = vector.shape_cast %59 : vector<1x8x8x128xf32> to vector<8x8x128xf32>
    %61 = vector.shape_cast %60 : vector<8x8x128xf32> to vector<64x128xf32>
    %c0_73 = arith.constant 0 : index
    %c0_74 = arith.constant 0 : index
    %62 = vector.load %arg6[%c0_73, %c0_74] : memref<64x128xf32, #tpu.memory_space<vmem>>, vector<64x128xf32>
    %c6 = arith.constant 6 : index
    %c0_75 = arith.constant 0 : index
    %c0_76 = arith.constant 0 : index
    %63 = vector.load %arg2[%c6, %c0_75, %c0_76] : memref<9x128x128xf32, #tpu.memory_space<vmem>>, vector<1x128x128xf32>
    %64 = vector.shape_cast %63 : vector<1x128x128xf32> to vector<128x128xf32>
    %cst_77 = arith.constant dense<0.000000e+00> : vector<64x128xf32>
    %65 = tpu.matmul %61, %64, %cst_77 {dimension_numbers = #tpu.dot_dimension_numbers<[1], [0], [0], [1], [0, 0, 1, 1], [], []>} : vector<64x128xf32>, vector<128x128xf32>, vector<64x128xf32> -> vector<64x128xf32>
    %66 = arith.addf %62, %65 : vector<64x128xf32>
    %c0_78 = arith.constant 0 : index
    %c0_79 = arith.constant 0 : index
    %67 = vector.load %arg6[%c0_78, %c0_79] : memref<64x128xf32, #tpu.memory_space<vmem>>, vector<64x128xf32>
    tpu.vector_store %arg6[%c0_78, %c0_79], %66 {strides = array<i32>} : memref<64x128xf32, #tpu.memory_space<vmem>>, vector<64x128xf32>,
    %c1_80 = arith.constant 1 : index
    %c1_81 = arith.constant 1 : index
    %c0_82 = arith.constant 0 : index
    %c0_83 = arith.constant 0 : index
    %68 = vector.load %arg1[%c1_80, %c1_81, %c0_82, %c0_83] : memref<4x9x9x128xf32, #tpu.memory_space<vmem>>, vector<1x8x8x128xf32>
    %69 = vector.shape_cast %68 : vector<1x8x8x128xf32> to vector<8x8x128xf32>
    %70 = vector.shape_cast %69 : vector<8x8x128xf32> to vector<64x128xf32>
    %c0_84 = arith.constant 0 : index
    %c0_85 = arith.constant 0 : index
    %71 = vector.load %arg6[%c0_84, %c0_85] : memref<64x128xf32, #tpu.memory_space<vmem>>, vector<64x128xf32>
    %c7 = arith.constant 7 : index
    %c0_86 = arith.constant 0 : index
    %c0_87 = arith.constant 0 : index
    %72 = vector.load %arg2[%c7, %c0_86, %c0_87] : memref<9x128x128xf32, #tpu.memory_space<vmem>>, vector<1x128x128xf32>
    %73 = vector.shape_cast %72 : vector<1x128x128xf32> to vector<128x128xf32>
    %cst_88 = arith.constant dense<0.000000e+00> : vector<64x128xf32>
    %74 = tpu.matmul %70, %73, %cst_88 {dimension_numbers = #tpu.dot_dimension_numbers<[1], [0], [0], [1], [0, 0, 1, 1], [], []>} : vector<64x128xf32>, vector<128x128xf32>, vector<64x128xf32> -> vector<64x128xf32>
    %75 = arith.addf %71, %74 : vector<64x128xf32>
    %c0_89 = arith.constant 0 : index
    %c0_90 = arith.constant 0 : index
    %76 = vector.load %arg6[%c0_89, %c0_90] : memref<64x128xf32, #tpu.memory_space<vmem>>, vector<64x128xf32>
    tpu.vector_store %arg6[%c0_89, %c0_90], %75 {strides = array<i32>} : memref<64x128xf32, #tpu.memory_space<vmem>>, vector<64x128xf32>,
    %c0_91 = arith.constant 0 : index
    %c1_92 = arith.constant 1 : index
    %c1_93 = arith.constant 1 : index
    %c0_94 = arith.constant 0 : index
    %77 = vector.load %arg1[%c0_91, %c1_92, %c1_93, %c0_94] : memref<4x9x9x128xf32, #tpu.memory_space<vmem>>, vector<1x8x8x128xf32>
    %78 = vector.shape_cast %77 : vector<1x8x8x128xf32> to vector<8x8x128xf32>
    %79 = vector.shape_cast %78 : vector<8x8x128xf32> to vector<64x128xf32>
    %c0_95 = arith.constant 0 : index
    %c0_96 = arith.constant 0 : index
    %80 = vector.load %arg6[%c0_95, %c0_96] : memref<64x128xf32, #tpu.memory_space<vmem>>, vector<64x128xf32>
    %c8 = arith.constant 8 : index
    %c0_97 = arith.constant 0 : index
    %c0_98 = arith.constant 0 : index
    %81 = vector.load %arg2[%c8, %c0_97, %c0_98] : memref<9x128x128xf32, #tpu.memory_space<vmem>>, vector<1x128x128xf32>
    %82 = vector.shape_cast %81 : vector<1x128x128xf32> to vector<128x128xf32>
    %cst_99 = arith.constant dense<0.000000e+00> : vector<64x128xf32>
    %83 = tpu.matmul %79, %82, %cst_99 {dimension_numbers = #tpu.dot_dimension_numbers<[1], [0], [0], [1], [0, 0, 1, 1], [], []>} : vector<64x128xf32>, vector<128x128xf32>, vector<64x128xf32> -> vector<64x128xf32>
    %84 = arith.addf %80, %83 : vector<64x128xf32>
    %c0_100 = arith.constant 0 : index
    %c0_101 = arith.constant 0 : index
    %85 = vector.load %arg6[%c0_100, %c0_101] : memref<64x128xf32, #tpu.memory_space<vmem>>, vector<64x128xf32>
    tpu.vector_store %arg6[%c0_100, %c0_101], %84 {strides = array<i32>} : memref<64x128xf32, #tpu.memory_space<vmem>>, vector<64x128xf32>,
    %c0_102 = arith.constant 0 : index
    %c0_103 = arith.constant 0 : index
    %86 = vector.load %arg6[%c0_102, %c0_103] : memref<64x128xf32, #tpu.memory_space<vmem>>, vector<64x128xf32>
    %c0_104 = arith.constant 0 : index
    %c0_105 = arith.constant 0 : index
    %c0_106 = arith.constant 0 : index
    %87 = vector.load %arg3[%c0_104, %c0_105, %c0_106] : memref<1x64x128xf32, #tpu.memory_space<vmem>>, vector<1x64x128xf32>
    %88 = vector.shape_cast %87 : vector<1x64x128xf32> to vector<64x128xf32>
    %89 = vector.shape_cast %86 : vector<64x128xf32> to vector<1x64x128xf32>
    tpu.vector_store %arg3[%c0_104, %c0_105, %c0_106], %89 {strides = array<i32>} : memref<1x64x128xf32, #tpu.memory_space<vmem>>, vector<1x64x128xf32>,
    %c0_107 = arith.constant 0 : index
    %c0_108 = arith.constant 0 : index
    %90 = vector.load %arg4[%c0_107, %c0_108] : memref<1x128xf32, #tpu.memory_space<vmem>>, vector<1x128xf32>
    %cst_109 = arith.constant dense<0.000000e+00> : vector<128xf32>
    %91 = vector.multi_reduction <add>, %86, %cst_109 [0] : vector<64x128xf32> to vector<128xf32>
    %92 = vector.shape_cast %91 : vector<128xf32> to vector<1x128xf32>
    %93 = arith.addf %90, %92 : vector<1x128xf32>
    %c0_110 = arith.constant 0 : index
    %c0_111 = arith.constant 0 : index
    %94 = vector.load %arg4[%c0_110, %c0_111] : memref<1x128xf32, #tpu.memory_space<vmem>>, vector<1x128xf32>
    tpu.vector_store %arg4[%c0_110, %c0_111], %93 {strides = array<i32>} : memref<1x128xf32, #tpu.memory_space<vmem>>, vector<1x128xf32>,
    %c0_112 = arith.constant 0 : index
    %c0_113 = arith.constant 0 : index
    %95 = vector.load %arg5[%c0_112, %c0_113] : memref<1x128xf32, #tpu.memory_space<vmem>>, vector<1x128xf32>
    %96 = arith.mulf %86, %86 : vector<64x128xf32>
    %cst_114 = arith.constant dense<0.000000e+00> : vector<128xf32>
    %97 = vector.multi_reduction <add>, %96, %cst_114 [0] : vector<64x128xf32> to vector<128xf32>
    %98 = vector.shape_cast %97 : vector<128xf32> to vector<1x128xf32>
    %99 = arith.addf %95, %98 : vector<1x128xf32>
    %c0_115 = arith.constant 0 : index
    %c0_116 = arith.constant 0 : index
    %100 = vector.load %arg5[%c0_115, %c0_116] : memref<1x128xf32, #tpu.memory_space<vmem>>, vector<1x128xf32>
    tpu.vector_store %arg5[%c0_115, %c0_116], %99 {strides = array<i32>} : memref<1x128xf32, #tpu.memory_space<vmem>>, vector<1x128xf32>,
    return
  }
  func.func @transform_0(%arg0: i32) -> (i32, i32, i32, i32) {
    %c0_i32 = arith.constant 0 : i32
    %c0_i32_0 = arith.constant 0 : i32
    %c0_i32_1 = arith.constant 0 : i32
    %c0_i32_2 = arith.constant 0 : i32
    return %arg0, %c0_i32, %c0_i32_0, %c0_i32_1 : i32, i32, i32, i32
  }
  func.func @transform_1(%arg0: i32) -> (i32, i32, i32) {
    %c0_i32 = arith.constant 0 : i32
    %c0_i32_0 = arith.constant 0 : i32
    %c0_i32_1 = arith.constant 0 : i32
    %c0_i32_2 = arith.constant 0 : i32
    return %c0_i32, %c0_i32_0, %c0_i32_1 : i32, i32, i32
  }
  func.func @transform_2(%arg0: i32) -> (i32, i32, i32) {
    %c0_i32 = arith.constant 0 : i32
    %c0_i32_0 = arith.constant 0 : i32
    %c0_i32_1 = arith.constant 0 : i32
    return %arg0, %c0_i32, %c0_i32_0 : i32, i32, i32
  }
  func.func @transform_3(%arg0: i32) -> (i32, i32) {
    %c0_i32 = arith.constant 0 : i32
    %c0_i32_0 = arith.constant 0 : i32
    %c0_i32_1 = arith.constant 0 : i32
    return %c0_i32, %c0_i32_0 : i32, i32
  }
  func.func @transform_4(%arg0: i32) -> (i32, i32) {
    %c0_i32 = arith.constant 0 : i32
    %c0_i32_0 = arith.constant 0 : i32
    %c0_i32_1 = arith.constant 0 : i32
    return %c0_i32, %c0_i32_0 : i32, i32
  }
}

module attributes {stable_mosaic.version = 11 : i64} {
  func.func @_bn_relu_conv3x3_stats_kernel(%arg0: i32, %arg1: memref<1x64x128xf32, #tpu.memory_space<vmem>>, %arg2: memref<1x128xf32, #tpu.memory_space<vmem>>, %arg3: memref<1x128xf32, #tpu.memory_space<vmem>>, %arg4: memref<1x128xf32, #tpu.memory_space<vmem>>, %arg5: memref<1x128xf32, #tpu.memory_space<vmem>>, %arg6: memref<9x128x128xf32, #tpu.memory_space<vmem>>, %arg7: memref<1x64x128xf32, #tpu.memory_space<vmem>>, %arg8: memref<1x128xf32, #tpu.memory_space<vmem>>, %arg9: memref<1x128xf32, #tpu.memory_space<vmem>>, %arg10: memref<64x128xf32, #tpu.memory_space<vmem>>, %arg11: memref<10x10x128xf32, #tpu.memory_space<vmem>>) attributes {dimension_semantics = [#tpu.dimension_semantics<arbitrary>], iteration_bounds = array<i64: 2>, scalar_prefetch = 0 : i64, scratch_operands = 2 : i64, tpu.core_type = #tpu.core_type<tc>, window_params = [{transform_indices = @transform_0, window_bounds = array<i64: 1, 64, 128>}, {pipeline_mode = #tpu.pipeline_mode<synchronous>, transform_indices = @transform_1, window_bounds = array<i64: 1, 128>}, {pipeline_mode = #tpu.pipeline_mode<synchronous>, transform_indices = @transform_2, window_bounds = array<i64: 1, 128>}, {pipeline_mode = #tpu.pipeline_mode<synchronous>, transform_indices = @transform_3, window_bounds = array<i64: 1, 128>}, {pipeline_mode = #tpu.pipeline_mode<synchronous>, transform_indices = @transform_4, window_bounds = array<i64: 1, 128>}, {pipeline_mode = #tpu.pipeline_mode<synchronous>, transform_indices = @transform_5, window_bounds = array<i64: 9, 128, 128>}, {transform_indices = @transform_6, window_bounds = array<i64: 1, 64, 128>}, {pipeline_mode = #tpu.pipeline_mode<synchronous>, transform_indices = @transform_7, window_bounds = array<i64: 1, 128>}, {pipeline_mode = #tpu.pipeline_mode<synchronous>, transform_indices = @transform_8, window_bounds = array<i64: 1, 128>}]} {
    %c0_i32 = arith.constant 0 : i32
    %0 = arith.cmpi eq, %arg0, %c0_i32 : i32
    %1 = arith.extui %0 : i1 to i32
    %c0_i32_0 = arith.constant 0 : i32
    %2 = arith.cmpi ne, %1, %c0_i32_0 : i32
    scf.if %2 {
      %cst_126 = arith.constant 0.000000e+00 : f32
      %118 = vector.broadcast %cst_126 : f32 to vector<1x128xf32>
      %c0_127 = arith.constant 0 : index
      %c0_128 = arith.constant 0 : index
      %119 = vector.load %arg8[%c0_127, %c0_128] : memref<1x128xf32, #tpu.memory_space<vmem>>, vector<1x128xf32>
      tpu.vector_store %arg8[%c0_127, %c0_128], %118 {strides = array<i32>} : memref<1x128xf32, #tpu.memory_space<vmem>>, vector<1x128xf32>,
      %cst_129 = arith.constant 0.000000e+00 : f32
      %120 = vector.broadcast %cst_129 : f32 to vector<1x128xf32>
      %c0_130 = arith.constant 0 : index
      %c0_131 = arith.constant 0 : index
      %121 = vector.load %arg9[%c0_130, %c0_131] : memref<1x128xf32, #tpu.memory_space<vmem>>, vector<1x128xf32>
      tpu.vector_store %arg9[%c0_130, %c0_131], %120 {strides = array<i32>} : memref<1x128xf32, #tpu.memory_space<vmem>>, vector<1x128xf32>,
      %cst_132 = arith.constant 0.000000e+00 : f32
      %122 = vector.broadcast %cst_132 : f32 to vector<10x10x128xf32>
      %c0_133 = arith.constant 0 : index
      %c0_134 = arith.constant 0 : index
      %c0_135 = arith.constant 0 : index
      %123 = vector.load %arg11[%c0_133, %c0_134, %c0_135] : memref<10x10x128xf32, #tpu.memory_space<vmem>>, vector<10x10x128xf32>
      tpu.vector_store %arg11[%c0_133, %c0_134, %c0_135], %122 {strides = array<i32>} : memref<10x10x128xf32, #tpu.memory_space<vmem>>, vector<10x10x128xf32>,
    } else {
    }
    %c0 = arith.constant 0 : index
    %c0_1 = arith.constant 0 : index
    %3 = vector.load %arg2[%c0, %c0_1] : memref<1x128xf32, #tpu.memory_space<vmem>>, vector<1x128xf32>
    %cst = arith.constant 7.812500e-03 : f32
    %4 = vector.broadcast %cst : f32 to vector<1x128xf32>
    %5 = arith.mulf %3, %4 : vector<1x128xf32>
    %c0_2 = arith.constant 0 : index
    %c0_3 = arith.constant 0 : index
    %6 = vector.load %arg3[%c0_2, %c0_3] : memref<1x128xf32, #tpu.memory_space<vmem>>, vector<1x128xf32>
    %cst_4 = arith.constant 7.812500e-03 : f32
    %7 = vector.broadcast %cst_4 : f32 to vector<1x128xf32>
    %8 = arith.mulf %6, %7 : vector<1x128xf32>
    %9 = arith.mulf %5, %5 : vector<1x128xf32>
    %10 = arith.subf %8, %9 : vector<1x128xf32>
    %c0_5 = arith.constant 0 : index
    %c0_6 = arith.constant 0 : index
    %11 = vector.load %arg4[%c0_5, %c0_6] : memref<1x128xf32, #tpu.memory_space<vmem>>, vector<1x128xf32>
    %cst_7 = arith.constant 9.99999974E-6 : f32
    %12 = vector.broadcast %cst_7 : f32 to vector<1x128xf32>
    %13 = arith.addf %10, %12 : vector<1x128xf32>
    %14 = math.rsqrt %13 : vector<1x128xf32>
    %15 = arith.mulf %11, %14 : vector<1x128xf32>
    %c0_8 = arith.constant 0 : index
    %c0_9 = arith.constant 0 : index
    %16 = vector.load %arg5[%c0_8, %c0_9] : memref<1x128xf32, #tpu.memory_space<vmem>>, vector<1x128xf32>
    %17 = arith.mulf %5, %15 : vector<1x128xf32>
    %18 = arith.subf %16, %17 : vector<1x128xf32>
    %c0_10 = arith.constant 0 : index
    %c0_11 = arith.constant 0 : index
    %c0_12 = arith.constant 0 : index
    %19 = vector.load %arg1[%c0_10, %c0_11, %c0_12] : memref<1x64x128xf32, #tpu.memory_space<vmem>>, vector<1x64x128xf32>
    %20 = vector.shape_cast %19 : vector<1x64x128xf32> to vector<64x128xf32>
    %21 = vector.broadcast %15 : vector<1x128xf32> to vector<64x128xf32>
    %22 = arith.mulf %20, %21 : vector<64x128xf32>
    %23 = vector.broadcast %18 : vector<1x128xf32> to vector<64x128xf32>
    %24 = arith.addf %22, %23 : vector<64x128xf32>
    %cst_13 = arith.constant 0.000000e+00 : f32
    %25 = vector.broadcast %cst_13 : f32 to vector<64x128xf32>
    %26 = arith.maximumf %24, %25 : vector<64x128xf32>
    %27 = vector.shape_cast %26 : vector<64x128xf32> to vector<8x8x128xf32>
    %c1 = arith.constant 1 : index
    %c1_14 = arith.constant 1 : index
    %c0_15 = arith.constant 0 : index
    %28 = vector.load %arg11[%c1, %c1_14, %c0_15] : memref<10x10x128xf32, #tpu.memory_space<vmem>>, vector<8x8x128xf32>
    tpu.vector_store %arg11[%c1, %c1_14, %c0_15], %27 {strides = array<i32>} : memref<10x10x128xf32, #tpu.memory_space<vmem>>, vector<8x8x128xf32>,
    %cst_16 = arith.constant 0.000000e+00 : f32
    %29 = vector.broadcast %cst_16 : f32 to vector<64x128xf32>
    %c0_17 = arith.constant 0 : index
    %c0_18 = arith.constant 0 : index
    %30 = vector.load %arg10[%c0_17, %c0_18] : memref<64x128xf32, #tpu.memory_space<vmem>>, vector<64x128xf32>
    tpu.vector_store %arg10[%c0_17, %c0_18], %29 {strides = array<i32>} : memref<64x128xf32, #tpu.memory_space<vmem>>, vector<64x128xf32>,
    %c0_19 = arith.constant 0 : index
    %c0_20 = arith.constant 0 : index
    %c0_21 = arith.constant 0 : index
    %31 = vector.load %arg11[%c0_19, %c0_20, %c0_21] : memref<10x10x128xf32, #tpu.memory_space<vmem>>, vector<8x8x128xf32>
    %32 = vector.shape_cast %31 : vector<8x8x128xf32> to vector<64x128xf32>
    %c0_22 = arith.constant 0 : index
    %c0_23 = arith.constant 0 : index
    %33 = vector.load %arg10[%c0_22, %c0_23] : memref<64x128xf32, #tpu.memory_space<vmem>>, vector<64x128xf32>
    %c0_24 = arith.constant 0 : index
    %c0_25 = arith.constant 0 : index
    %c0_26 = arith.constant 0 : index
    %34 = vector.load %arg6[%c0_24, %c0_25, %c0_26] : memref<9x128x128xf32, #tpu.memory_space<vmem>>, vector<1x128x128xf32>
    %35 = vector.shape_cast %34 : vector<1x128x128xf32> to vector<128x128xf32>
    %cst_27 = arith.constant dense<0.000000e+00> : vector<64x128xf32>
    %36 = tpu.matmul %32, %35, %cst_27 {dimension_numbers = #tpu.dot_dimension_numbers<[1], [0], [0], [1], [0, 0, 1, 1], [], []>} : vector<64x128xf32>, vector<128x128xf32>, vector<64x128xf32> -> vector<64x128xf32>
    %37 = arith.addf %33, %36 : vector<64x128xf32>
    %c0_28 = arith.constant 0 : index
    %c0_29 = arith.constant 0 : index
    %38 = vector.load %arg10[%c0_28, %c0_29] : memref<64x128xf32, #tpu.memory_space<vmem>>, vector<64x128xf32>
    tpu.vector_store %arg10[%c0_28, %c0_29], %37 {strides = array<i32>} : memref<64x128xf32, #tpu.memory_space<vmem>>, vector<64x128xf32>,
    %c0_30 = arith.constant 0 : index
    %c1_31 = arith.constant 1 : index
    %c0_32 = arith.constant 0 : index
    %39 = vector.load %arg11[%c0_30, %c1_31, %c0_32] : memref<10x10x128xf32, #tpu.memory_space<vmem>>, vector<8x8x128xf32>
    %40 = vector.shape_cast %39 : vector<8x8x128xf32> to vector<64x128xf32>
    %c0_33 = arith.constant 0 : index
    %c0_34 = arith.constant 0 : index
    %41 = vector.load %arg10[%c0_33, %c0_34] : memref<64x128xf32, #tpu.memory_space<vmem>>, vector<64x128xf32>
    %c1_35 = arith.constant 1 : index
    %c0_36 = arith.constant 0 : index
    %c0_37 = arith.constant 0 : index
    %42 = vector.load %arg6[%c1_35, %c0_36, %c0_37] : memref<9x128x128xf32, #tpu.memory_space<vmem>>, vector<1x128x128xf32>
    %43 = vector.shape_cast %42 : vector<1x128x128xf32> to vector<128x128xf32>
    %cst_38 = arith.constant dense<0.000000e+00> : vector<64x128xf32>
    %44 = tpu.matmul %40, %43, %cst_38 {dimension_numbers = #tpu.dot_dimension_numbers<[1], [0], [0], [1], [0, 0, 1, 1], [], []>} : vector<64x128xf32>, vector<128x128xf32>, vector<64x128xf32> -> vector<64x128xf32>
    %45 = arith.addf %41, %44 : vector<64x128xf32>
    %c0_39 = arith.constant 0 : index
    %c0_40 = arith.constant 0 : index
    %46 = vector.load %arg10[%c0_39, %c0_40] : memref<64x128xf32, #tpu.memory_space<vmem>>, vector<64x128xf32>
    tpu.vector_store %arg10[%c0_39, %c0_40], %45 {strides = array<i32>} : memref<64x128xf32, #tpu.memory_space<vmem>>, vector<64x128xf32>,
    %c0_41 = arith.constant 0 : index
    %c2 = arith.constant 2 : index
    %c0_42 = arith.constant 0 : index
    %47 = vector.load %arg11[%c0_41, %c2, %c0_42] : memref<10x10x128xf32, #tpu.memory_space<vmem>>, vector<8x8x128xf32>
    %48 = vector.shape_cast %47 : vector<8x8x128xf32> to vector<64x128xf32>
    %c0_43 = arith.constant 0 : index
    %c0_44 = arith.constant 0 : index
    %49 = vector.load %arg10[%c0_43, %c0_44] : memref<64x128xf32, #tpu.memory_space<vmem>>, vector<64x128xf32>
    %c2_45 = arith.constant 2 : index
    %c0_46 = arith.constant 0 : index
    %c0_47 = arith.constant 0 : index
    %50 = vector.load %arg6[%c2_45, %c0_46, %c0_47] : memref<9x128x128xf32, #tpu.memory_space<vmem>>, vector<1x128x128xf32>
    %51 = vector.shape_cast %50 : vector<1x128x128xf32> to vector<128x128xf32>
    %cst_48 = arith.constant dense<0.000000e+00> : vector<64x128xf32>
    %52 = tpu.matmul %48, %51, %cst_48 {dimension_numbers = #tpu.dot_dimension_numbers<[1], [0], [0], [1], [0, 0, 1, 1], [], []>} : vector<64x128xf32>, vector<128x128xf32>, vector<64x128xf32> -> vector<64x128xf32>
    %53 = arith.addf %49, %52 : vector<64x128xf32>
    %c0_49 = arith.constant 0 : index
    %c0_50 = arith.constant 0 : index
    %54 = vector.load %arg10[%c0_49, %c0_50] : memref<64x128xf32, #tpu.memory_space<vmem>>, vector<64x128xf32>
    tpu.vector_store %arg10[%c0_49, %c0_50], %53 {strides = array<i32>} : memref<64x128xf32, #tpu.memory_space<vmem>>, vector<64x128xf32>,
    %c1_51 = arith.constant 1 : index
    %c0_52 = arith.constant 0 : index
    %c0_53 = arith.constant 0 : index
    %55 = vector.load %arg11[%c1_51, %c0_52, %c0_53] : memref<10x10x128xf32, #tpu.memory_space<vmem>>, vector<8x8x128xf32>
    %56 = vector.shape_cast %55 : vector<8x8x128xf32> to vector<64x128xf32>
    %c0_54 = arith.constant 0 : index
    %c0_55 = arith.constant 0 : index
    %57 = vector.load %arg10[%c0_54, %c0_55] : memref<64x128xf32, #tpu.memory_space<vmem>>, vector<64x128xf32>
    %c3 = arith.constant 3 : index
    %c0_56 = arith.constant 0 : index
    %c0_57 = arith.constant 0 : index
    %58 = vector.load %arg6[%c3, %c0_56, %c0_57] : memref<9x128x128xf32, #tpu.memory_space<vmem>>, vector<1x128x128xf32>
    %59 = vector.shape_cast %58 : vector<1x128x128xf32> to vector<128x128xf32>
    %cst_58 = arith.constant dense<0.000000e+00> : vector<64x128xf32>
    %60 = tpu.matmul %56, %59, %cst_58 {dimension_numbers = #tpu.dot_dimension_numbers<[1], [0], [0], [1], [0, 0, 1, 1], [], []>} : vector<64x128xf32>, vector<128x128xf32>, vector<64x128xf32> -> vector<64x128xf32>
    %61 = arith.addf %57, %60 : vector<64x128xf32>
    %c0_59 = arith.constant 0 : index
    %c0_60 = arith.constant 0 : index
    %62 = vector.load %arg10[%c0_59, %c0_60] : memref<64x128xf32, #tpu.memory_space<vmem>>, vector<64x128xf32>
    tpu.vector_store %arg10[%c0_59, %c0_60], %61 {strides = array<i32>} : memref<64x128xf32, #tpu.memory_space<vmem>>, vector<64x128xf32>,
    %c1_61 = arith.constant 1 : index
    %c1_62 = arith.constant 1 : index
    %c0_63 = arith.constant 0 : index
    %63 = vector.load %arg11[%c1_61, %c1_62, %c0_63] : memref<10x10x128xf32, #tpu.memory_space<vmem>>, vector<8x8x128xf32>
    %64 = vector.shape_cast %63 : vector<8x8x128xf32> to vector<64x128xf32>
    %c0_64 = arith.constant 0 : index
    %c0_65 = arith.constant 0 : index
    %65 = vector.load %arg10[%c0_64, %c0_65] : memref<64x128xf32, #tpu.memory_space<vmem>>, vector<64x128xf32>
    %c4 = arith.constant 4 : index
    %c0_66 = arith.constant 0 : index
    %c0_67 = arith.constant 0 : index
    %66 = vector.load %arg6[%c4, %c0_66, %c0_67] : memref<9x128x128xf32, #tpu.memory_space<vmem>>, vector<1x128x128xf32>
    %67 = vector.shape_cast %66 : vector<1x128x128xf32> to vector<128x128xf32>
    %cst_68 = arith.constant dense<0.000000e+00> : vector<64x128xf32>
    %68 = tpu.matmul %64, %67, %cst_68 {dimension_numbers = #tpu.dot_dimension_numbers<[1], [0], [0], [1], [0, 0, 1, 1], [], []>} : vector<64x128xf32>, vector<128x128xf32>, vector<64x128xf32> -> vector<64x128xf32>
    %69 = arith.addf %65, %68 : vector<64x128xf32>
    %c0_69 = arith.constant 0 : index
    %c0_70 = arith.constant 0 : index
    %70 = vector.load %arg10[%c0_69, %c0_70] : memref<64x128xf32, #tpu.memory_space<vmem>>, vector<64x128xf32>
    tpu.vector_store %arg10[%c0_69, %c0_70], %69 {strides = array<i32>} : memref<64x128xf32, #tpu.memory_space<vmem>>, vector<64x128xf32>,
    %c1_71 = arith.constant 1 : index
    %c2_72 = arith.constant 2 : index
    %c0_73 = arith.constant 0 : index
    %71 = vector.load %arg11[%c1_71, %c2_72, %c0_73] : memref<10x10x128xf32, #tpu.memory_space<vmem>>, vector<8x8x128xf32>
    %72 = vector.shape_cast %71 : vector<8x8x128xf32> to vector<64x128xf32>
    %c0_74 = arith.constant 0 : index
    %c0_75 = arith.constant 0 : index
    %73 = vector.load %arg10[%c0_74, %c0_75] : memref<64x128xf32, #tpu.memory_space<vmem>>, vector<64x128xf32>
    %c5 = arith.constant 5 : index
    %c0_76 = arith.constant 0 : index
    %c0_77 = arith.constant 0 : index
    %74 = vector.load %arg6[%c5, %c0_76, %c0_77] : memref<9x128x128xf32, #tpu.memory_space<vmem>>, vector<1x128x128xf32>
    %75 = vector.shape_cast %74 : vector<1x128x128xf32> to vector<128x128xf32>
    %cst_78 = arith.constant dense<0.000000e+00> : vector<64x128xf32>
    %76 = tpu.matmul %72, %75, %cst_78 {dimension_numbers = #tpu.dot_dimension_numbers<[1], [0], [0], [1], [0, 0, 1, 1], [], []>} : vector<64x128xf32>, vector<128x128xf32>, vector<64x128xf32> -> vector<64x128xf32>
    %77 = arith.addf %73, %76 : vector<64x128xf32>
    %c0_79 = arith.constant 0 : index
    %c0_80 = arith.constant 0 : index
    %78 = vector.load %arg10[%c0_79, %c0_80] : memref<64x128xf32, #tpu.memory_space<vmem>>, vector<64x128xf32>
    tpu.vector_store %arg10[%c0_79, %c0_80], %77 {strides = array<i32>} : memref<64x128xf32, #tpu.memory_space<vmem>>, vector<64x128xf32>,
    %c2_81 = arith.constant 2 : index
    %c0_82 = arith.constant 0 : index
    %c0_83 = arith.constant 0 : index
    %79 = vector.load %arg11[%c2_81, %c0_82, %c0_83] : memref<10x10x128xf32, #tpu.memory_space<vmem>>, vector<8x8x128xf32>
    %80 = vector.shape_cast %79 : vector<8x8x128xf32> to vector<64x128xf32>
    %c0_84 = arith.constant 0 : index
    %c0_85 = arith.constant 0 : index
    %81 = vector.load %arg10[%c0_84, %c0_85] : memref<64x128xf32, #tpu.memory_space<vmem>>, vector<64x128xf32>
    %c6 = arith.constant 6 : index
    %c0_86 = arith.constant 0 : index
    %c0_87 = arith.constant 0 : index
    %82 = vector.load %arg6[%c6, %c0_86, %c0_87] : memref<9x128x128xf32, #tpu.memory_space<vmem>>, vector<1x128x128xf32>
    %83 = vector.shape_cast %82 : vector<1x128x128xf32> to vector<128x128xf32>
    %cst_88 = arith.constant dense<0.000000e+00> : vector<64x128xf32>
    %84 = tpu.matmul %80, %83, %cst_88 {dimension_numbers = #tpu.dot_dimension_numbers<[1], [0], [0], [1], [0, 0, 1, 1], [], []>} : vector<64x128xf32>, vector<128x128xf32>, vector<64x128xf32> -> vector<64x128xf32>
    %85 = arith.addf %81, %84 : vector<64x128xf32>
    %c0_89 = arith.constant 0 : index
    %c0_90 = arith.constant 0 : index
    %86 = vector.load %arg10[%c0_89, %c0_90] : memref<64x128xf32, #tpu.memory_space<vmem>>, vector<64x128xf32>
    tpu.vector_store %arg10[%c0_89, %c0_90], %85 {strides = array<i32>} : memref<64x128xf32, #tpu.memory_space<vmem>>, vector<64x128xf32>,
    %c2_91 = arith.constant 2 : index
    %c1_92 = arith.constant 1 : index
    %c0_93 = arith.constant 0 : index
    %87 = vector.load %arg11[%c2_91, %c1_92, %c0_93] : memref<10x10x128xf32, #tpu.memory_space<vmem>>, vector<8x8x128xf32>
    %88 = vector.shape_cast %87 : vector<8x8x128xf32> to vector<64x128xf32>
    %c0_94 = arith.constant 0 : index
    %c0_95 = arith.constant 0 : index
    %89 = vector.load %arg10[%c0_94, %c0_95] : memref<64x128xf32, #tpu.memory_space<vmem>>, vector<64x128xf32>
    %c7 = arith.constant 7 : index
    %c0_96 = arith.constant 0 : index
    %c0_97 = arith.constant 0 : index
    %90 = vector.load %arg6[%c7, %c0_96, %c0_97] : memref<9x128x128xf32, #tpu.memory_space<vmem>>, vector<1x128x128xf32>
    %91 = vector.shape_cast %90 : vector<1x128x128xf32> to vector<128x128xf32>
    %cst_98 = arith.constant dense<0.000000e+00> : vector<64x128xf32>
    %92 = tpu.matmul %88, %91, %cst_98 {dimension_numbers = #tpu.dot_dimension_numbers<[1], [0], [0], [1], [0, 0, 1, 1], [], []>} : vector<64x128xf32>, vector<128x128xf32>, vector<64x128xf32> -> vector<64x128xf32>
    %93 = arith.addf %89, %92 : vector<64x128xf32>
    %c0_99 = arith.constant 0 : index
    %c0_100 = arith.constant 0 : index
    %94 = vector.load %arg10[%c0_99, %c0_100] : memref<64x128xf32, #tpu.memory_space<vmem>>, vector<64x128xf32>
    tpu.vector_store %arg10[%c0_99, %c0_100], %93 {strides = array<i32>} : memref<64x128xf32, #tpu.memory_space<vmem>>, vector<64x128xf32>,
    %c2_101 = arith.constant 2 : index
    %c2_102 = arith.constant 2 : index
    %c0_103 = arith.constant 0 : index
    %95 = vector.load %arg11[%c2_101, %c2_102, %c0_103] : memref<10x10x128xf32, #tpu.memory_space<vmem>>, vector<8x8x128xf32>
    %96 = vector.shape_cast %95 : vector<8x8x128xf32> to vector<64x128xf32>
    %c0_104 = arith.constant 0 : index
    %c0_105 = arith.constant 0 : index
    %97 = vector.load %arg10[%c0_104, %c0_105] : memref<64x128xf32, #tpu.memory_space<vmem>>, vector<64x128xf32>
    %c8 = arith.constant 8 : index
    %c0_106 = arith.constant 0 : index
    %c0_107 = arith.constant 0 : index
    %98 = vector.load %arg6[%c8, %c0_106, %c0_107] : memref<9x128x128xf32, #tpu.memory_space<vmem>>, vector<1x128x128xf32>
    %99 = vector.shape_cast %98 : vector<1x128x128xf32> to vector<128x128xf32>
    %cst_108 = arith.constant dense<0.000000e+00> : vector<64x128xf32>
    %100 = tpu.matmul %96, %99, %cst_108 {dimension_numbers = #tpu.dot_dimension_numbers<[1], [0], [0], [1], [0, 0, 1, 1], [], []>} : vector<64x128xf32>, vector<128x128xf32>, vector<64x128xf32> -> vector<64x128xf32>
    %101 = arith.addf %97, %100 : vector<64x128xf32>
    %c0_109 = arith.constant 0 : index
    %c0_110 = arith.constant 0 : index
    %102 = vector.load %arg10[%c0_109, %c0_110] : memref<64x128xf32, #tpu.memory_space<vmem>>, vector<64x128xf32>
    tpu.vector_store %arg10[%c0_109, %c0_110], %101 {strides = array<i32>} : memref<64x128xf32, #tpu.memory_space<vmem>>, vector<64x128xf32>,
    %c0_111 = arith.constant 0 : index
    %c0_112 = arith.constant 0 : index
    %103 = vector.load %arg10[%c0_111, %c0_112] : memref<64x128xf32, #tpu.memory_space<vmem>>, vector<64x128xf32>
    %c0_113 = arith.constant 0 : index
    %c0_114 = arith.constant 0 : index
    %c0_115 = arith.constant 0 : index
    %104 = vector.load %arg7[%c0_113, %c0_114, %c0_115] : memref<1x64x128xf32, #tpu.memory_space<vmem>>, vector<1x64x128xf32>
    %105 = vector.shape_cast %104 : vector<1x64x128xf32> to vector<64x128xf32>
    %106 = vector.shape_cast %103 : vector<64x128xf32> to vector<1x64x128xf32>
    tpu.vector_store %arg7[%c0_113, %c0_114, %c0_115], %106 {strides = array<i32>} : memref<1x64x128xf32, #tpu.memory_space<vmem>>, vector<1x64x128xf32>,
    %c0_116 = arith.constant 0 : index
    %c0_117 = arith.constant 0 : index
    %107 = vector.load %arg8[%c0_116, %c0_117] : memref<1x128xf32, #tpu.memory_space<vmem>>, vector<1x128xf32>
    %cst_118 = arith.constant dense<0.000000e+00> : vector<128xf32>
    %108 = vector.multi_reduction <add>, %103, %cst_118 [0] : vector<64x128xf32> to vector<128xf32>
    %109 = vector.shape_cast %108 : vector<128xf32> to vector<1x128xf32>
    %110 = arith.addf %107, %109 : vector<1x128xf32>
    %c0_119 = arith.constant 0 : index
    %c0_120 = arith.constant 0 : index
    %111 = vector.load %arg8[%c0_119, %c0_120] : memref<1x128xf32, #tpu.memory_space<vmem>>, vector<1x128xf32>
    tpu.vector_store %arg8[%c0_119, %c0_120], %110 {strides = array<i32>} : memref<1x128xf32, #tpu.memory_space<vmem>>, vector<1x128xf32>,
    %c0_121 = arith.constant 0 : index
    %c0_122 = arith.constant 0 : index
    %112 = vector.load %arg9[%c0_121, %c0_122] : memref<1x128xf32, #tpu.memory_space<vmem>>, vector<1x128xf32>
    %113 = arith.mulf %103, %103 : vector<64x128xf32>
    %cst_123 = arith.constant dense<0.000000e+00> : vector<128xf32>
    %114 = vector.multi_reduction <add>, %113, %cst_123 [0] : vector<64x128xf32> to vector<128xf32>
    %115 = vector.shape_cast %114 : vector<128xf32> to vector<1x128xf32>
    %116 = arith.addf %112, %115 : vector<1x128xf32>
    %c0_124 = arith.constant 0 : index
    %c0_125 = arith.constant 0 : index
    %117 = vector.load %arg9[%c0_124, %c0_125] : memref<1x128xf32, #tpu.memory_space<vmem>>, vector<1x128xf32>
    tpu.vector_store %arg9[%c0_124, %c0_125], %116 {strides = array<i32>} : memref<1x128xf32, #tpu.memory_space<vmem>>, vector<1x128xf32>,
    return
  }
  func.func @transform_0(%arg0: i32) -> (i32, i32, i32) {
    %c0_i32 = arith.constant 0 : i32
    %c0_i32_0 = arith.constant 0 : i32
    %c0_i32_1 = arith.constant 0 : i32
    return %arg0, %c0_i32, %c0_i32_0 : i32, i32, i32
  }
  func.func @transform_1(%arg0: i32) -> (i32, i32) {
    %c0_i32 = arith.constant 0 : i32
    %c0_i32_0 = arith.constant 0 : i32
    %c0_i32_1 = arith.constant 0 : i32
    return %c0_i32, %c0_i32_0 : i32, i32
  }
  func.func @transform_2(%arg0: i32) -> (i32, i32) {
    %c0_i32 = arith.constant 0 : i32
    %c0_i32_0 = arith.constant 0 : i32
    %c0_i32_1 = arith.constant 0 : i32
    return %c0_i32, %c0_i32_0 : i32, i32
  }
  func.func @transform_3(%arg0: i32) -> (i32, i32) {
    %c0_i32 = arith.constant 0 : i32
    %c0_i32_0 = arith.constant 0 : i32
    %c0_i32_1 = arith.constant 0 : i32
    return %c0_i32, %c0_i32_0 : i32, i32
  }
  func.func @transform_4(%arg0: i32) -> (i32, i32) {
    %c0_i32 = arith.constant 0 : i32
    %c0_i32_0 = arith.constant 0 : i32
    %c0_i32_1 = arith.constant 0 : i32
    return %c0_i32, %c0_i32_0 : i32, i32
  }
  func.func @transform_5(%arg0: i32) -> (i32, i32, i32) {
    %c0_i32 = arith.constant 0 : i32
    %c0_i32_0 = arith.constant 0 : i32
    %c0_i32_1 = arith.constant 0 : i32
    %c0_i32_2 = arith.constant 0 : i32
    return %c0_i32, %c0_i32_0, %c0_i32_1 : i32, i32, i32
  }
  func.func @transform_6(%arg0: i32) -> (i32, i32, i32) {
    %c0_i32 = arith.constant 0 : i32
    %c0_i32_0 = arith.constant 0 : i32
    %c0_i32_1 = arith.constant 0 : i32
    return %arg0, %c0_i32, %c0_i32_0 : i32, i32, i32
  }
  func.func @transform_7(%arg0: i32) -> (i32, i32) {
    %c0_i32 = arith.constant 0 : i32
    %c0_i32_0 = arith.constant 0 : i32
    %c0_i32_1 = arith.constant 0 : i32
    return %c0_i32, %c0_i32_0 : i32, i32
  }
  func.func @transform_8(%arg0: i32) -> (i32, i32) {
    %c0_i32 = arith.constant 0 : i32
    %c0_i32_0 = arith.constant 0 : i32
    %c0_i32_1 = arith.constant 0 : i32
    return %c0_i32, %c0_i32_0 : i32, i32
  }
}

module attributes {stable_mosaic.version = 11 : i64} {
  func.func @_bn_add_relu_proj_kernel(%arg0: i32, %arg1: memref<1x64x128xf32, #tpu.memory_space<vmem>>, %arg2: memref<1x128xf32, #tpu.memory_space<vmem>>, %arg3: memref<1x128xf32, #tpu.memory_space<vmem>>, %arg4: memref<1x128xf32, #tpu.memory_space<vmem>>, %arg5: memref<1x128xf32, #tpu.memory_space<vmem>>, %arg6: memref<1x64x128xf32, #tpu.memory_space<vmem>>, %arg7: memref<128x128xf32, #tpu.memory_space<vmem>>, %arg8: memref<1x128xf32, #tpu.memory_space<vmem>>, %arg9: memref<1x64x128xf32, #tpu.memory_space<vmem>>) attributes {dimension_semantics = [#tpu.dimension_semantics<parallel>], iteration_bounds = array<i64: 2>, scalar_prefetch = 0 : i64, scratch_operands = 0 : i64, tpu.core_type = #tpu.core_type<tc>, window_params = [{transform_indices = @transform_0, window_bounds = array<i64: 1, 64, 128>}, {pipeline_mode = #tpu.pipeline_mode<synchronous>, transform_indices = @transform_1, window_bounds = array<i64: 1, 128>}, {pipeline_mode = #tpu.pipeline_mode<synchronous>, transform_indices = @transform_2, window_bounds = array<i64: 1, 128>}, {pipeline_mode = #tpu.pipeline_mode<synchronous>, transform_indices = @transform_3, window_bounds = array<i64: 1, 128>}, {pipeline_mode = #tpu.pipeline_mode<synchronous>, transform_indices = @transform_4, window_bounds = array<i64: 1, 128>}, {transform_indices = @transform_5, window_bounds = array<i64: 1, 64, 128>}, {pipeline_mode = #tpu.pipeline_mode<synchronous>, transform_indices = @transform_6, window_bounds = array<i64: 128, 128>}, {pipeline_mode = #tpu.pipeline_mode<synchronous>, transform_indices = @transform_7, window_bounds = array<i64: 1, 128>}, {transform_indices = @transform_8, window_bounds = array<i64: 1, 64, 128>}]} {
    %c0 = arith.constant 0 : index
    %c0_0 = arith.constant 0 : index
    %0 = vector.load %arg2[%c0, %c0_0] : memref<1x128xf32, #tpu.memory_space<vmem>>, vector<1x128xf32>
    %cst = arith.constant 7.812500e-03 : f32
    %1 = vector.broadcast %cst : f32 to vector<1x128xf32>
    %2 = arith.mulf %0, %1 : vector<1x128xf32>
    %c0_1 = arith.constant 0 : index
    %c0_2 = arith.constant 0 : index
    %3 = vector.load %arg3[%c0_1, %c0_2] : memref<1x128xf32, #tpu.memory_space<vmem>>, vector<1x128xf32>
    %cst_3 = arith.constant 7.812500e-03 : f32
    %4 = vector.broadcast %cst_3 : f32 to vector<1x128xf32>
    %5 = arith.mulf %3, %4 : vector<1x128xf32>
    %6 = arith.mulf %2, %2 : vector<1x128xf32>
    %7 = arith.subf %5, %6 : vector<1x128xf32>
    %c0_4 = arith.constant 0 : index
    %c0_5 = arith.constant 0 : index
    %8 = vector.load %arg4[%c0_4, %c0_5] : memref<1x128xf32, #tpu.memory_space<vmem>>, vector<1x128xf32>
    %cst_6 = arith.constant 9.99999974E-6 : f32
    %9 = vector.broadcast %cst_6 : f32 to vector<1x128xf32>
    %10 = arith.addf %7, %9 : vector<1x128xf32>
    %11 = math.rsqrt %10 : vector<1x128xf32>
    %12 = arith.mulf %8, %11 : vector<1x128xf32>
    %c0_7 = arith.constant 0 : index
    %c0_8 = arith.constant 0 : index
    %13 = vector.load %arg5[%c0_7, %c0_8] : memref<1x128xf32, #tpu.memory_space<vmem>>, vector<1x128xf32>
    %14 = arith.mulf %2, %12 : vector<1x128xf32>
    %15 = arith.subf %13, %14 : vector<1x128xf32>
    %c0_9 = arith.constant 0 : index
    %c0_10 = arith.constant 0 : index
    %c0_11 = arith.constant 0 : index
    %16 = vector.load %arg1[%c0_9, %c0_10, %c0_11] : memref<1x64x128xf32, #tpu.memory_space<vmem>>, vector<1x64x128xf32>
    %17 = vector.shape_cast %16 : vector<1x64x128xf32> to vector<64x128xf32>
    %18 = vector.broadcast %12 : vector<1x128xf32> to vector<64x128xf32>
    %19 = arith.mulf %17, %18 : vector<64x128xf32>
    %20 = vector.broadcast %15 : vector<1x128xf32> to vector<64x128xf32>
    %21 = arith.addf %19, %20 : vector<64x128xf32>
    %c0_12 = arith.constant 0 : index
    %c0_13 = arith.constant 0 : index
    %c0_14 = arith.constant 0 : index
    %22 = vector.load %arg6[%c0_12, %c0_13, %c0_14] : memref<1x64x128xf32, #tpu.memory_space<vmem>>, vector<1x64x128xf32>
    %23 = vector.shape_cast %22 : vector<1x64x128xf32> to vector<64x128xf32>
    %c0_15 = arith.constant 0 : index
    %c0_16 = arith.constant 0 : index
    %24 = vector.load %arg7[%c0_15, %c0_16] : memref<128x128xf32, #tpu.memory_space<vmem>>, vector<128x128xf32>
    %cst_17 = arith.constant dense<0.000000e+00> : vector<64x128xf32>
    %25 = tpu.matmul %23, %24, %cst_17 {dimension_numbers = #tpu.dot_dimension_numbers<[1], [0], [0], [1], [0, 0, 1, 1], [], []>} : vector<64x128xf32>, vector<128x128xf32>, vector<64x128xf32> -> vector<64x128xf32>
    %c0_18 = arith.constant 0 : index
    %c0_19 = arith.constant 0 : index
    %26 = vector.load %arg8[%c0_18, %c0_19] : memref<1x128xf32, #tpu.memory_space<vmem>>, vector<1x128xf32>
    %27 = vector.broadcast %26 : vector<1x128xf32> to vector<64x128xf32>
    %28 = arith.addf %25, %27 : vector<64x128xf32>
    %29 = arith.addf %21, %28 : vector<64x128xf32>
    %cst_20 = arith.constant 0.000000e+00 : f32
    %30 = vector.broadcast %cst_20 : f32 to vector<64x128xf32>
    %31 = arith.maximumf %29, %30 : vector<64x128xf32>
    %c0_21 = arith.constant 0 : index
    %c0_22 = arith.constant 0 : index
    %c0_23 = arith.constant 0 : index
    %32 = vector.load %arg9[%c0_21, %c0_22, %c0_23] : memref<1x64x128xf32, #tpu.memory_space<vmem>>, vector<1x64x128xf32>
    %33 = vector.shape_cast %32 : vector<1x64x128xf32> to vector<64x128xf32>
    %34 = vector.shape_cast %31 : vector<64x128xf32> to vector<1x64x128xf32>
    tpu.vector_store %arg9[%c0_21, %c0_22, %c0_23], %34 {strides = array<i32>} : memref<1x64x128xf32, #tpu.memory_space<vmem>>, vector<1x64x128xf32>,
    return
  }
  func.func @transform_0(%arg0: i32) -> (i32, i32, i32) {
    %c0_i32 = arith.constant 0 : i32
    %c0_i32_0 = arith.constant 0 : i32
    %c0_i32_1 = arith.constant 0 : i32
    return %arg0, %c0_i32, %c0_i32_0 : i32, i32, i32
  }
  func.func @transform_1(%arg0: i32) -> (i32, i32) {
    %c0_i32 = arith.constant 0 : i32
    %c0_i32_0 = arith.constant 0 : i32
    %c0_i32_1 = arith.constant 0 : i32
    return %c0_i32, %c0_i32_0 : i32, i32
  }
  func.func @transform_2(%arg0: i32) -> (i32, i32) {
    %c0_i32 = arith.constant 0 : i32
    %c0_i32_0 = arith.constant 0 : i32
    %c0_i32_1 = arith.constant 0 : i32
    return %c0_i32, %c0_i32_0 : i32, i32
  }
  func.func @transform_3(%arg0: i32) -> (i32, i32) {
    %c0_i32 = arith.constant 0 : i32
    %c0_i32_0 = arith.constant 0 : i32
    %c0_i32_1 = arith.constant 0 : i32
    return %c0_i32, %c0_i32_0 : i32, i32
  }
  func.func @transform_4(%arg0: i32) -> (i32, i32) {
    %c0_i32 = arith.constant 0 : i32
    %c0_i32_0 = arith.constant 0 : i32
    %c0_i32_1 = arith.constant 0 : i32
    return %c0_i32, %c0_i32_0 : i32, i32
  }
  func.func @transform_5(%arg0: i32) -> (i32, i32, i32) {
    %c0_i32 = arith.constant 0 : i32
    %c0_i32_0 = arith.constant 0 : i32
    %c0_i32_1 = arith.constant 0 : i32
    return %arg0, %c0_i32, %c0_i32_0 : i32, i32, i32
  }
  func.func @transform_6(%arg0: i32) -> (i32, i32) {
    %c0_i32 = arith.constant 0 : i32
    %c0_i32_0 = arith.constant 0 : i32
    %c0_i32_1 = arith.constant 0 : i32
    return %c0_i32, %c0_i32_0 : i32, i32
  }
  func.func @transform_7(%arg0: i32) -> (i32, i32) {
    %c0_i32 = arith.constant 0 : i32
    %c0_i32_0 = arith.constant 0 : i32
    %c0_i32_1 = arith.constant 0 : i32
    return %c0_i32, %c0_i32_0 : i32, i32
  }
  func.func @transform_8(%arg0: i32) -> (i32, i32, i32) {
    %c0_i32 = arith.constant 0 : i32
    %c0_i32_0 = arith.constant 0 : i32
    %c0_i32_1 = arith.constant 0 : i32
    return %arg0, %c0_i32, %c0_i32_0 : i32, i32, i32
  }
}

</mosaic_0001>

<llo_original>
// kernel: residual_forward.5
$region0: #{residual_forward.5}
  #allocation0 [shape = 'u32[]', space=smem, size = 0x4, offset = 0x4, fixed_abs, tag = 'smem constant byte address 0x4 - core index']
  #allocation1 [shape = 'u32[72,128]{1,0:T(1,128)}', space=vmem, size = 0x9000, scoped, tag = 'internal scratch']
  %s0 = inlined_call_operand.vmem [shape: f32[2,64,128], index: 0, kind: input, shape index: {}]
  %s1 = inlined_call_operand.vmem [shape: f32[1,128], index: 1, kind: input, shape index: {}]
  %s2 = inlined_call_operand.vmem [shape: f32[1,128], index: 2, kind: input, shape index: {}]
  %s3 = inlined_call_operand.vmem [shape: f32[1,128], index: 3, kind: input, shape index: {}]
  %s4 = inlined_call_operand.vmem [shape: f32[1,128], index: 4, kind: input, shape index: {}]
  %s5 = inlined_call_operand.vmem [shape: f32[2,64,128], index: 5, kind: input, shape index: {}]
  %s6 = inlined_call_operand.vmem [shape: f32[128,128], index: 6, kind: input, shape index: {}]
  %s7 = inlined_call_operand.vmem [shape: f32[1,128], index: 7, kind: input, shape index: {}]
  %s8 = inlined_call_operand.vmem [shape: f32[2,64,128], index: 8, kind: output, shape index: {}]
  %s9 = sld [smem:[#allocation0]]
  $region65: #{residual_forward.5} parent=0
    _
  %s11 = ssub.s32 1, %s9
  %s12 = scalar_select 0, %s11, %s9
  loop: start=0, step=1, limit=4
  $region2: #{residual_forward.5} parent=0 // loop_pre_header
    _
  $region3: #{residual_forward.5} parent=0 // loop_header
    %s14 = sphi 0, %s18
    %p15 = scmp.ge.s32.totalorder %s14, 4
    %s24 = sphi 0, %s26
    %s27 = sphi 0, %s24
    %s28 = sphi 0, %s27
    %s44 = sphi 0, %s28
    %s48 = sphi 0, %s48
    %s50 = sphi 0, %s48
    %s51 = sphi 0, %s50
    %s65 = sphi 0, %s51
    %s69 = sphi 0, %s69
    %s71 = sphi 0, %s69
    %s72 = sphi 0, %s71
    %s86 = sphi 0, %s72
    %s90 = sphi 0, %s90
    %s92 = sphi 0, %s90
    %s93 = sphi 0, %s92
    %s107 = sphi 0, %s93
    %s111 = sphi 0, %s111
    %s113 = sphi 0, %s111
    %s114 = sphi 0, %s113
    %s128 = sphi 0, %s114
    %s134 = sphi 0, %s136
    %s137 = sphi 0, %s134
    %s138 = sphi 0, %s137
    %s154 = sphi 0, %s138
    %s158 = sphi 0, %s158
    %s160 = sphi 0, %s158
    %s161 = sphi 0, %s160
    %s175 = sphi 0, %s161
    %s179 = sphi 0, %s179
    %s181 = sphi 0, %s179
    %s182 = sphi 0, %s181
    %s196 = sphi 0, %s182
    %s202 = sphi 0, %s204
    %s205 = sphi 0, %s202
    %s206 = sphi 0, %s205
    %s222 = sphi 0, %s206
  $region4: #{residual_forward.5} parent=0 // loop_header_branch
    %17 = sbr.rel (%p15) target = $region8
  $region5: #{residual_forward.5} parent=0 // loop_body
    %s19 = ssub.s32 %s14, 1
    %s20 = ssub.s32 %s14, 2
    %s21 = sadd.s32 %s14, 1
    %s22 = ssub.s32 %s14, %s21
    %p23 = scmp.eq.s32.totalorder %s22, 0
    %s25 = sadd.s32 %s24, 1
    %s26 = scalar_select %p23, %s24, %s25
    %p29 = pneg %p23
    %p30 = scmp.eq.s32.totalorder %s14, 1
    %p31 = por %p29, %p30
    %p32 = scmp.ne.s32.totalorder %s24, %s27
    %p33 = scmp.eq.s32.totalorder %s14, 0
    %p34 = por %p32, %p33
    %p35 = scmp.ne.s32.totalorder %s24, %s27
    %p36 = scmp.eq.s32.totalorder %s19, 1
    %p37 = por %p35, %p36
    %p38 = scmp.ne.s32.totalorder %s27, %s28
    %p39 = scmp.eq.s32.totalorder %s19, 0
    %p40 = por %p38, %p39
    %p41 = scmp.ne.s32.totalorder %s27, %s28
    %p42 = scmp.eq.s32.totalorder %s20, 1
    %p43 = por %p41, %p42
    %p45 = scmp.ne.s32.totalorder %s28, %s44
    %p46 = scmp.eq.s32.totalorder %s20, 0
    %p47 = por %p45, %p46
    %s49 = sadd.s32 %s48, 1
    %p52 = scmp.eq.s32.totalorder %s14, 1
    %p53 = scmp.ne.s32.totalorder %s48, %s50
    %p54 = scmp.eq.s32.totalorder %s14, 0
    %p55 = por %p53, %p54
    %p56 = scmp.ne.s32.totalorder %s48, %s50
    %p57 = scmp.eq.s32.totalorder %s19, 1
    %p58 = por %p56, %p57
    %p59 = scmp.ne.s32.totalorder %s50, %s51
    %p60 = scmp.eq.s32.totalorder %s19, 0
    %p61 = por %p59, %p60
    %p62 = scmp.ne.s32.totalorder %s50, %s51
    %p63 = scmp.eq.s32.totalorder %s20, 1
    %p64 = por %p62, %p63
    %p66 = scmp.ne.s32.totalorder %s51, %s65
    %p67 = scmp.eq.s32.totalorder %s20, 0
    %p68 = por %p66, %p67
    %s70 = sadd.s32 %s69, 1
    %p73 = scmp.eq.s32.totalorder %s14, 1
    %p74 = scmp.ne.s32.totalorder %s69, %s71
    %p75 = scmp.eq.s32.totalorder %s14, 0
    %p76 = por %p74, %p75
    %p77 = scmp.ne.s32.totalorder %s69, %s71
    %p78 = scmp.eq.s32.totalorder %s19, 1
    %p79 = por %p77, %p78
    %p80 = scmp.ne.s32.totalorder %s71, %s72
    %p81 = scmp.eq.s32.totalorder %s19, 0
    %p82 = por %p80, %p81
    %p83 = scmp.ne.s32.totalorder %s71, %s72
    %p84 = scmp.eq.s32.totalorder %s20, 1
    %p85 = por %p83, %p84
    %p87 = scmp.ne.s32.totalorder %s72, %s86
    %p88 = scmp.eq.s32.totalorder %s20, 0
    %p89 = por %p87, %p88
    %s91 = sadd.s32 %s90, 1
    %p94 = scmp.eq.s32.totalorder %s14, 1
    %p95 = scmp.ne.s32.totalorder %s90, %s92
    %p96 = scmp.eq.s32.totalorder %s14, 0
    %p97 = por %p95, %p96
    %p98 = scmp.ne.s32.totalorder %s90, %s92
    %p99 = scmp.eq.s32.totalorder %s19, 1
    %p100 = por %p98, %p99
    %p101 = scmp.ne.s32.totalorder %s92, %s93
    %p102 = scmp.eq.s32.totalorder %s19, 0
    %p103 = por %p101, %p102
    %p104 = scmp.ne.s32.totalorder %s92, %s93
    %p105 = scmp.eq.s32.totalorder %s20, 1
    %p106 = por %p104, %p105
    %p108 = scmp.ne.s32.totalorder %s93, %s107
    %p109 = scmp.eq.s32.totalorder %s20, 0
    %p110 = por %p108, %p109
    %s112 = sadd.s32 %s111, 1
    %p115 = scmp.eq.s32.totalorder %s14, 1
    %p116 = scmp.ne.s32.totalorder %s111, %s113
    %p117 = scmp.eq.s32.totalorder %s14, 0
    %p118 = por %p116, %p117
    %p119 = scmp.ne.s32.totalorder %s111, %s113
    %p120 = scmp.eq.s32.totalorder %s19, 1
    %p121 = por %p119, %p120
    %p122 = scmp.ne.s32.totalorder %s113, %s114
    %p123 = scmp.eq.s32.totalorder %s19, 0
    %p124 = por %p122, %p123
    %p125 = scmp.ne.s32.totalorder %s113, %s114
    %p126 = scmp.eq.s32.totalorder %s20, 1
    %p127 = por %p125, %p126
    %p129 = scmp.ne.s32.totalorder %s114, %s128
    %p130 = scmp.eq.s32.totalorder %s20, 0
    %p131 = por %p129, %p130
    %s132 = ssub.s32 %s14, %s21
    %p133 = scmp.eq.s32.totalorder %s132, 0
    %s135 = sadd.s32 %s134, 1
    %s136 = scalar_select %p133, %s134, %s135
    %p139 = pneg %p133
    %p140 = scmp.eq.s32.totalorder %s14, 1
    %p141 = por %p139, %p140
    %p142 = scmp.ne.s32.totalorder %s134, %s137
    %p143 = scmp.eq.s32.totalorder %s14, 0
    %p144 = por %p142, %p143
    %p145 = scmp.ne.s32.totalorder %s134, %s137
    %p146 = scmp.eq.s32.totalorder %s19, 1
    %p147 = por %p145, %p146
    %p148 = scmp.ne.s32.totalorder %s137, %s138
    %p149 = scmp.eq.s32.totalorder %s19, 0
    %p150 = por %p148, %p149
    %p151 = scmp.ne.s32.totalorder %s137, %s138
    %p152 = scmp.eq.s32.totalorder %s20, 1
    %p153 = por %p151, %p152
    %p155 = scmp.ne.s32.totalorder %s138, %s154
    %p156 = scmp.eq.s32.totalorder %s20, 0
    %p157 = por %p155, %p156
    %s159 = sadd.s32 %s158, 1
    %p162 = scmp.eq.s32.totalorder %s14, 1
    %p163 = scmp.ne.s32.totalorder %s158, %s160
    %p164 = scmp.eq.s32.totalorder %s14, 0
    %p165 = por %p163, %p164
    %p166 = scmp.ne.s32.totalorder %s158, %s160
    %p167 = scmp.eq.s32.totalorder %s19, 1
    %p168 = por %p166, %p167
    %p169 = scmp.ne.s32.totalorder %s160, %s161
    %p170 = scmp.eq.s32.totalorder %s19, 0
    %p171 = por %p169, %p170
    %p172 = scmp.ne.s32.totalorder %s160, %s161
    %p173 = scmp.eq.s32.totalorder %s20, 1
    %p174 = por %p172, %p173
    %p176 = scmp.ne.s32.totalorder %s161, %s175
    %p177 = scmp.eq.s32.totalorder %s20, 0
    %p178 = por %p176, %p177
    %s180 = sadd.s32 %s179, 1
    %p183 = scmp.eq.s32.totalorder %s14, 1
    %p184 = scmp.ne.s32.totalorder %s179, %s181
    %p185 = scmp.eq.s32.totalorder %s14, 0
    %p186 = por %p184, %p185
    %p187 = scmp.ne.s32.totalorder %s179, %s181
    %p188 = scmp.eq.s32.totalorder %s19, 1
    %p189 = por %p187, %p188
    %p190 = scmp.ne.s32.totalorder %s181, %s182
    %p191 = scmp.eq.s32.totalorder %s19, 0
    %p192 = por %p190, %p191
    %p193 = scmp.ne.s32.totalorder %s181, %s182
    %p194 = scmp.eq.s32.totalorder %s20, 1
    %p195 = por %p193, %p194
    %p197 = scmp.ne.s32.totalorder %s182, %s196
    %p198 = scmp.eq.s32.totalorder %s20, 0
    %p199 = por %p197, %p198
    %s200 = ssub.s32 %s14, %s21
    %p201 = scmp.eq.s32.totalorder %s200, 0
    %s203 = sadd.s32 %s202, 1
    %s204 = scalar_select %p201, %s202, %s203
    %p207 = pneg %p201
    %p208 = scmp.eq.s32.totalorder %s14, 1
    %p209 = por %p207, %p208
    %p210 = scmp.ne.s32.totalorder %s202, %s205
    %p211 = scmp.eq.s32.totalorder %s14, 0
    %p212 = por %p210, %p211
    %p213 = scmp.ne.s32.totalorder %s202, %s205
    %p214 = scmp.eq.s32.totalorder %s19, 1
    %p215 = por %p213, %p214
    %p216 = scmp.ne.s32.totalorder %s205, %s206
    %p217 = scmp.eq.s32.totalorder %s19, 0
    %p218 = por %p216, %p217
    %p219 = scmp.ne.s32.totalorder %s205, %s206
    %p220 = scmp.eq.s32.totalorder %s20, 1
    %p221 = por %p219, %p220
    %p223 = scmp.ne.s32.totalorder %s206, %s222
    %p224 = scmp.eq.s32.totalorder %s20, 0
    %p225 = por %p223, %p224
    %p226 = scmp.le.s32.totalorder 1, %s14
    %p227 = scmp.lt.s32.totalorder %s14, 3
    %p228 = pnand %p226, %p227
    %p229 = pneg %p228
    // Predicated region
    $region9: #{residual_forward.5} parent=5 // pred_check
      _
    $region10: #{residual_forward.5} parent=5 // pred_check_branch
      %231 = sbr.rel (%p228) target = $region12
    $region11: #{residual_forward.5} parent=5 // pred_region
      %s232 = ssub.s32 %s14, 1
      // Predicated region
      $region13: #{residual_forward.5} parent=11 // pred_check
        %p233 = pneg %p61
      $region14: #{residual_forward.5} parent=11 // pred_check_branch
        %235 = sbr.rel (%p233) target = $region16
      $region15: #{residual_forward.5} parent=11 // pred_region
        _
      $region16: #{residual_forward.5} parent=11 // pred_fallthru
        _
      // Predicated region
      $region17: #{residual_forward.5} parent=11 // pred_check
        %p236 = pneg %p82
      $region18: #{residual_forward.5} parent=11 // pred_check_branch
        %238 = sbr.rel (%p236) target = $region20
      $region19: #{residual_forward.5} parent=11 // pred_region
        _
      $region20: #{residual_forward.5} parent=11 // pred_fallthru
        _
      // Predicated region
      $region21: #{residual_forward.5} parent=11 // pred_check
        %p239 = pneg %p103
      $region22: #{residual_forward.5} parent=11 // pred_check_branch
        %241 = sbr.rel (%p239) target = $region24
      $region23: #{residual_forward.5} parent=11 // pred_region
        _
      $region24: #{residual_forward.5} parent=11 // pred_fallthru
        _
      // Predicated region
      $region25: #{residual_forward.5} parent=11 // pred_check
        %p242 = pneg %p124
      $region26: #{residual_forward.5} parent=11 // pred_check_branch
        %244 = sbr.rel (%p242) target = $region28
      $region27: #{residual_forward.5} parent=11 // pred_region
        _
      $region28: #{residual_forward.5} parent=11 // pred_fallthru
        _
      // Predicated region
      $region29: #{residual_forward.5} parent=11 // pred_check
        %p245 = pneg %p171
      $region30: #{residual_forward.5} parent=11 // pred_check_branch
        %247 = sbr.rel (%p245) target = $region32
      $region31: #{residual_forward.5} parent=11 // pred_region
        _
      $region32: #{residual_forward.5} parent=11 // pred_fallthru
        _
      // Predicated region
      $region33: #{residual_forward.5} parent=11 // pred_check
        %p248 = pneg %p192
      $region34: #{residual_forward.5} parent=11 // pred_check_branch
        %250 = sbr.rel (%p248) target = $region36
      $region35: #{residual_forward.5} parent=11 // pred_region
        _
      $region36: #{residual_forward.5} parent=11 // pred_fallthru
        _
    $region12: #{residual_forward.5} parent=5 // pred_fallthru
      _
    %p251 = scmp.lt.s32.totalorder %s14, 2
    // Predicated region
    $region37: #{residual_forward.5} parent=5 // pred_check
      %p252 = pneg %p251
    $region38: #{residual_forward.5} parent=5 // pred_check_branch
      %254 = sbr.rel (%p252) target = $region40
    $region39: #{residual_forward.5} parent=5 // pred_region
      // Predicated region
      $region41: #{residual_forward.5} parent=39 // pred_check
        %p255 = pneg %p34
      $region42: #{residual_forward.5} parent=39 // pred_check_branch
        %257 = sbr.rel (%p255) target = $region44
      $region43: #{residual_forward.5} parent=39 // pred_region
        %p258 = scmp.lt.s32.totalorder %s14, 1
        %s259 = scalar_select %p258, %s14, 1
        %s260 = smul.addr %s259, 8
        %s261 = smul.addr %s260, 8
        %s262 = scalar_lea.vmem %s0, %s261
      $region44: #{residual_forward.5} parent=39 // pred_fallthru
        _
      // Predicated region
      $region45: #{residual_forward.5} parent=39 // pred_check
        %p263 = pneg %p144
      $region46: #{residual_forward.5} parent=39 // pred_check_branch
        %265 = sbr.rel (%p263) target = $region48
      $region47: #{residual_forward.5} parent=39 // pred_region
        %p266 = scmp.lt.s32.totalorder %s14, 1
        %s267 = scalar_select %p266, %s14, 1
        %s268 = smul.addr %s267, 8
        %s269 = smul.addr %s268, 8
        %s270 = scalar_lea.vmem %s5, %s269
      $region48: #{residual_forward.5} parent=39 // pred_fallthru
        _
    $region40: #{residual_forward.5} parent=5 // pred_fallthru
      _
    %p271 = scmp.le.s32.totalorder 1, %s14
    %p272 = scmp.lt.s32.totalorder %s14, 3
    %p273 = pnand %p271, %p272
    %p274 = pneg %p273
    // Predicated region
    $region49: #{residual_forward.5} parent=5 // pred_check
      _
    $region50: #{residual_forward.5} parent=5 // pred_check_branch
      %276 = sbr.rel (%p273) target = $region52
    $region51: #{residual_forward.5} parent=5 // pred_region
      %s277 = ssub.s32 %s14, 1
      %p278 = scmp.lt.s32.totalorder %s19, 1
      %s279 = scalar_select %p278, %s19, 1
      %s280 = smul.addr %s279, 8
      %s281 = smul.addr %s280, 8
      %s282 = scalar_lea.vmem %s0, %s281
      %p283 = pneg %p40
      %p284 = pneg %p37
      %p285 = pneg %p61
      %p286 = pneg %p58
      %p287 = pneg %p82
      %p288 = pneg %p79
      %p289 = pneg %p103
      %p290 = pneg %p100
      %p291 = pneg %p124
      %p292 = pneg %p121
      %p293 = scmp.lt.s32.totalorder %s19, 1
      %s294 = scalar_select %p293, %s19, 1
      %s295 = smul.addr %s294, 8
      %s296 = smul.addr %s295, 8
      %s297 = scalar_lea.vmem %s5, %s296
      %p298 = pneg %p150
      %p299 = pneg %p147
      %p300 = pneg %p171
      %p301 = pneg %p168
      %p302 = pneg %p192
      %p303 = pneg %p189
      %p304 = pneg %p218
      %p305 = pneg %p215
      %p306 = scmp.lt.s32.totalorder %s19, 1
      %s307 = scalar_select %p306, %s19, 1
      %s308 = smul.addr %s307, 8
      %s309 = smul.addr %s308, 8
      %s310 = scalar_lea.vmem %s8, %s309
      %p311 = scmp.lt.s32.totalorder %s19, 1
      %s312 = scalar_select %p311, %s19, 1
      %s313 = smul.addr %s312, 8
      %s314 = smul.addr %s313, 8
      %s315 = scalar_lea.vmem %s0, %s314
      %p316 = scmp.lt.s32.totalorder %s19, 1
      %s317 = scalar_select %p316, %s19, 1
      %s318 = smul.addr %s317, 8
      %s319 = smul.addr %s318, 8
      %s320 = scalar_lea.vmem %s5, %s319
      %p321 = scmp.lt.s32.totalorder %s19, 1
      %s322 = scalar_select %p321, %s19, 1
      %s323 = smul.addr %s322, 8
      %s324 = smul.addr %s323, 8
      %s325 = scalar_lea.vmem %s8, %s324
      %v326 = vld [vmem:[%s1] sm:$0x1]
      %v327 = vmul.f32 %v326, 0.0078125
      %v328 = vld [vmem:[%s2] sm:$0x1]
      %v329 = vmul.f32 %v328, 0.0078125
      %v330 = vmul.f32 %v327, %v327
      %v331 = vsub.f32 %v329, %v330
      %v332 = vld [vmem:[%s3] sm:$0x1]
      %v333 = vadd.f32 %v331, 1e-05
      %v334 = vrsqrt.pop %v333
      %v335 = vmul.f32 %v334, %v333
      %v336 = vmul.f32 %v335, %v334
      %v337 = vmul.f32 0.5, %v336
      %v338 = vsub.f32 1.5, %v337
      %v339 = vmul.f32 %v334, %v338
      %vm340 = vweird.f32 %v333
      %vm341 = vweird.f32 %v334
      %vm342 = vmor %vm340, %vm341
      %v343 = vsel %vm342, %v334, %v339
      %v344 = vmul.f32 %v332, %v343
      %v345 = vld [vmem:[%s4] sm:$0x1]
      %v346 = vmul.f32 %v327, %v344
      %v347 = vsub.f32 %v345, %v346
      %v348 = vld [vmem:[%s315] sm:$0xff]
      %v349 = vld [vmem:[%s315 + $0x8] sm:$0xff]
      %v350 = vld [vmem:[%s315 + $0x10] sm:$0xff]
      %v351 = vld [vmem:[%s315 + $0x18] sm:$0xff]
      %v352 = vld [vmem:[%s315 + $0x20] sm:$0xff]
      %v353 = vld [vmem:[%s315 + $0x28] sm:$0xff]
      %v354 = vld [vmem:[%s315 + $0x30] sm:$0xff]
      %v355 = vld [vmem:[%s315 + $0x38] sm:$0xff]
      %v357 = vperm.slane %v344, 0
      %v359 = vmul.f32 %v348, %v357
      %v360 = vmul.f32 %v349, %v357
      %v361 = vmul.f32 %v350, %v357
      %v362 = vmul.f32 %v351, %v357
      %v363 = vmul.f32 %v352, %v357
      %v364 = vmul.f32 %v353, %v357
      %v365 = vmul.f32 %v354, %v357
      %v366 = vmul.f32 %v355, %v357
      %v368 = vperm.slane %v347, 0
      %v370 = vadd.f32 %v359, %v368
      %v371 = vadd.f32 %v360, %v368
      %v372 = vadd.f32 %v361, %v368
      %v373 = vadd.f32 %v362, %v368
      %v374 = vadd.f32 %v363, %v368
      %v375 = vadd.f32 %v364, %v368
      %v376 = vadd.f32 %v365, %v368
      %v377 = vadd.f32 %v366, %v368
      %v378 = vld [vmem:[%s320] sm:$0xff]
      %v379 = vld [vmem:[%s320 + $0x8] sm:$0xff]
      %v380 = vld [vmem:[%s320 + $0x10] sm:$0xff]
      %v381 = vld [vmem:[%s320 + $0x18] sm:$0xff]
      %v382 = vld [vmem:[%s320 + $0x20] sm:$0xff]
      %v383 = vld [vmem:[%s320 + $0x28] sm:$0xff]
      %v384 = vld [vmem:[%s320 + $0x30] sm:$0xff]
      %v385 = vld [vmem:[%s320 + $0x38] sm:$0xff]
      %v386 = vld [vmem:[%s6] sm:$0xff]
      %v387 = vld [vmem:[%s6 + $0x8] sm:$0xff]
      %v388 = vld [vmem:[%s6 + $0x10] sm:$0xff]
      %v389 = vld [vmem:[%s6 + $0x18] sm:$0xff]
      %v390 = vld [vmem:[%s6 + $0x20] sm:$0xff]
      %v391 = vld [vmem:[%s6 + $0x28] sm:$0xff]
      %v392 = vld [vmem:[%s6 + $0x30] sm:$0xff]
      %v393 = vld [vmem:[%s6 + $0x38] sm:$0xff]
      %v394 = vld [vmem:[%s6 + $0x40] sm:$0xff]
      %v395 = vld [vmem:[%s6 + $0x48] sm:$0xff]
      %v396 = vld [vmem:[%s6 + $0x50] sm:$0xff]
      %v397 = vld [vmem:[%s6 + $0x58] sm:$0xff]
      %v398 = vld [vmem:[%s6 + $0x60] sm:$0xff]
      %v399 = vld [vmem:[%s6 + $0x68] sm:$0xff]
      %v400 = vld [vmem:[%s6 + $0x70] sm:$0xff]
      %v401 = vld [vmem:[%s6 + $0x78] sm:$0xff]
      %v402 = vld [vmem:[%s7] sm:$0x1]
      %v404 = vperm.slane %v402, 0
      %406 = vmatpush.msra.mxu0 %v401
      %407 = vmatpush.msra.mxu0 %v400
      %408 = vmatpush.msra.mxu0 %v399
      %409 = vmatpush.msra.mxu0 %v398
      %410 = vmatpush.msra.mxu0 %v397
      %411 = vmatpush.msra.mxu0 %v396
      %412 = vmatpush.msra.mxu0 %v395
      %413 = vmatpush.msra.mxu0 %v394
      %414 = vmatpush.msra.mxu0 %v393
      %415 = vmatpush.msra.mxu0 %v392
      %416 = vmatpush.msra.mxu0 %v391
      %417 = vmatpush.msra.mxu0 %v390
      %418 = vmatpush.msra.mxu0 %v389
      %419 = vmatpush.msra.mxu0 %v388
      %420 = vmatpush.msra.mxu0 %v387
      %421 = vmatpush.msra.mxu0 %v386
      %422 = vmatmul.f32.gmra.mxu0 %v378
      %v423 = vpop.f32.mrf.mxu0
      %v424 = vadd.f32 %v404, %v423
      %425 = vmatmul.f32.gmra.mxu0 %v379
      %v426 = vpop.f32.mrf.mxu0
      %v427 = vadd.f32 %v404, %v426
      %428 = vmatmul.f32.gmra.mxu0 %v380
      %v429 = vpop.f32.mrf.mxu0
      %v430 = vadd.f32 %v404, %v429
      %431 = vmatmul.f32.gmra.mxu0 %v381
      %v432 = vpop.f32.mrf.mxu0
      %v433 = vadd.f32 %v404, %v432
      %434 = vmatmul.f32.gmra.mxu0 %v382
      %v435 = vpop.f32.mrf.mxu0
      %v436 = vadd.f32 %v404, %v435
      %437 = vmatmul.f32.gmra.mxu0 %v383
      %v438 = vpop.f32.mrf.mxu0
      %v439 = vadd.f32 %v404, %v438
      %440 = vmatmul.f32.gmra.mxu0 %v384
      %v441 = vpop.f32.mrf.mxu0
      %v442 = vadd.f32 %v404, %v441
      %443 = vmatmul.f32.gmra.mxu0 %v385
      %v444 = vpop.f32.mrf.mxu0
      %v445 = vadd.f32 %v404, %v444
      %446 = vdwg.mxu0
      %v447 = vadd.f32 %v370, %v424
      %v448 = vadd.f32 %v371, %v427
      %v449 = vadd.f32 %v372, %v430
      %v450 = vadd.f32 %v373, %v433
      %v451 = vadd.f32 %v374, %v436
      %v452 = vadd.f32 %v375, %v439
      %v453 = vadd.f32 %v376, %v442
      %v454 = vadd.f32 %v377, %v445
      %v455 = vmax.f32 %v447, 0.0
      %v456 = vmax.f32 %v448, 0.0
      %v457 = vmax.f32 %v449, 0.0
      %v458 = vmax.f32 %v450, 0.0
      %v459 = vmax.f32 %v451, 0.0
      %v460 = vmax.f32 %v452, 0.0
      %v461 = vmax.f32 %v453, 0.0
      %v462 = vmax.f32 %v454, 0.0
      %463 = vst [vmem:[%s325] sm:$0xff] %v455
      %464 = vst [vmem:[%s325 + $0x8] sm:$0xff] %v456
      %465 = vst [vmem:[%s325 + $0x10] sm:$0xff] %v457
      %466 = vst [vmem:[%s325 + $0x18] sm:$0xff] %v458
      %467 = vst [vmem:[%s325 + $0x20] sm:$0xff] %v459
      %468 = vst [vmem:[%s325 + $0x28] sm:$0xff] %v460
      %469 = vst [vmem:[%s325 + $0x30] sm:$0xff] %v461
      %470 = vst [vmem:[%s325 + $0x38] sm:$0xff] %v462
      %p471 = scmp.lt.s32.totalorder %s19, 1
      %s472 = scalar_select %p471, %s19, 1
      %s473 = smul.addr %s472, 8
      %s474 = smul.addr %s473, 8
      %s475 = scalar_lea.vmem %s8, %s474
      // Predicated region
      $region53: #{residual_forward.5} parent=51 // pred_check
        %p476 = pneg %p215
      $region54: #{residual_forward.5} parent=51 // pred_check_branch
        %478 = sbr.rel (%p476) target = $region56
      $region55: #{residual_forward.5} parent=51 // pred_region
        _
      $region56: #{residual_forward.5} parent=51 // pred_fallthru
        _
    $region52: #{residual_forward.5} parent=5 // pred_fallthru
      _
    %p479 = scmp.le.s32.totalorder 2, %s14
    // Predicated region
    $region57: #{residual_forward.5} parent=5 // pred_check
      %p480 = pneg %p479
    $region58: #{residual_forward.5} parent=5 // pred_check_branch
      %482 = sbr.rel (%p480) target = $region60
    $region59: #{residual_forward.5} parent=5 // pred_region
      %s483 = ssub.s32 %s14, 2
      // Predicated region
      $region61: #{residual_forward.5} parent=59 // pred_check
        %p484 = pneg %p221
      $region62: #{residual_forward.5} parent=59 // pred_check_branch
        %486 = sbr.rel (%p484) target = $region64
      $region63: #{residual_forward.5} parent=59 // pred_region
        %p487 = scmp.lt.s32.totalorder %s20, 1
        %s488 = scalar_select %p487, %s20, 1
        %s489 = smul.addr %s488, 8
        %s490 = smul.addr %s489, 8
        %s491 = scalar_lea.vmem %s8, %s490
      $region64: #{residual_forward.5} parent=59 // pred_fallthru
        _
    $region60: #{residual_forward.5} parent=5 // pred_fallthru
      _
  $region6: #{residual_forward.5} parent=0 // loop_footer
    %s18 = sadd.s32 1, %s14
  $region7: #{residual_forward.5} parent=0 // loop_footer_branch
    %13 = sbr.rel target = $region3
  $region8: #{residual_forward.5} parent=0 // loop_exit
    _

// kernel: residual_forward.3
$region0: #{residual_forward.3}
  #allocation0 [shape = 'u32[]', space=smem, size = 0x4, offset = 0x4, fixed_abs, tag = 'smem constant byte address 0x4 - core index']
  #allocation1 [shape = 'u32[72,128]{1,0:T(1,128)}', space=vmem, size = 0x9000, scoped, tag = 'internal scratch']
  #allocation2 [shape = 'f32[64,128]{1,0:T(8,128)}', space=vmem, size = 0x8000, scoped, tag = 'scratch operand']
  %s0 = inlined_call_operand.vmem [shape: f32[8,9,9,128], index: 0, kind: input, shape index: {}]
  %s1 = inlined_call_operand.vmem [shape: f32[9,128,128], index: 1, kind: input, shape index: {}]
  %s2 = inlined_call_operand.vmem [shape: f32[2,64,128], index: 2, kind: output, shape index: {0}]
  %s3 = inlined_call_operand.vmem [shape: f32[1,128], index: 3, kind: output, shape index: {1}]
  %s4 = inlined_call_operand.vmem [shape: f32[1,128], index: 4, kind: output, shape index: {2}]
  %5 = xla_tuple %s2, %s3, %s4
  %s6 = sld [smem:[#allocation0]]
  $region61: #{residual_forward.3} parent=0
    _
  %s8 = ssub.s32 1, %s6
  %s9 = scalar_select 0, %s8, %s6
  loop: start=0, step=1, limit=4
  $region2: #{residual_forward.3} parent=0 // loop_pre_header
    _
  $region3: #{residual_forward.3} parent=0 // loop_header
    %s11 = sphi 0, %s15
    %p12 = scmp.ge.s32.totalorder %s11, 4
    %s21 = sphi 0, %s23
    %s24 = sphi 0, %s21
    %s25 = sphi 0, %s24
    %s41 = sphi 0, %s25
    %s45 = sphi 0, %s45
    %s47 = sphi 0, %s45
    %s48 = sphi 0, %s47
    %s62 = sphi 0, %s48
    %s68 = sphi 0, %s70
    %s71 = sphi 0, %s68
    %s72 = sphi 0, %s71
    %s88 = sphi 0, %s72
    %s92 = sphi 0, %s92
    %s94 = sphi 0, %s92
    %s95 = sphi 0, %s94
    %s109 = sphi 0, %s95
    %s113 = sphi 0, %s113
    %s115 = sphi 0, %s113
    %s116 = sphi 0, %s115
    %s130 = sphi 0, %s116
  $region4: #{residual_forward.3} parent=0 // loop_header_branch
    %14 = sbr.rel (%p12) target = $region8
  $region5: #{residual_forward.3} parent=0 // loop_body
    %s16 = ssub.s32 %s11, 1
    %s17 = ssub.s32 %s11, 2
    %s18 = sadd.s32 %s11, 1
    %s19 = ssub.s32 %s11, %s18
    %p20 = scmp.eq.s32.totalorder %s19, 0
    %s22 = sadd.s32 %s21, 1
    %s23 = scalar_select %p20, %s21, %s22
    %p26 = pneg %p20
    %p27 = scmp.eq.s32.totalorder %s11, 1
    %p28 = por %p26, %p27
    %p29 = scmp.ne.s32.totalorder %s21, %s24
    %p30 = scmp.eq.s32.totalorder %s11, 0
    %p31 = por %p29, %p30
    %p32 = scmp.ne.s32.totalorder %s21, %s24
    %p33 = scmp.eq.s32.totalorder %s16, 1
    %p34 = por %p32, %p33
    %p35 = scmp.ne.s32.totalorder %s24, %s25
    %p36 = scmp.eq.s32.totalorder %s16, 0
    %p37 = por %p35, %p36
    %p38 = scmp.ne.s32.totalorder %s24, %s25
    %p39 = scmp.eq.s32.totalorder %s17, 1
    %p40 = por %p38, %p39
    %p42 = scmp.ne.s32.totalorder %s25, %s41
    %p43 = scmp.eq.s32.totalorder %s17, 0
    %p44 = por %p42, %p43
    %s46 = sadd.s32 %s45, 1
    %p49 = scmp.eq.s32.totalorder %s11, 1
    %p50 = scmp.ne.s32.totalorder %s45, %s47
    %p51 = scmp.eq.s32.totalorder %s11, 0
    %p52 = por %p50, %p51
    %p53 = scmp.ne.s32.totalorder %s45, %s47
    %p54 = scmp.eq.s32.totalorder %s16, 1
    %p55 = por %p53, %p54
    %p56 = scmp.ne.s32.totalorder %s47, %s48
    %p57 = scmp.eq.s32.totalorder %s16, 0
    %p58 = por %p56, %p57
    %p59 = scmp.ne.s32.totalorder %s47, %s48
    %p60 = scmp.eq.s32.totalorder %s17, 1
    %p61 = por %p59, %p60
    %p63 = scmp.ne.s32.totalorder %s48, %s62
    %p64 = scmp.eq.s32.totalorder %s17, 0
    %p65 = por %p63, %p64
    %s66 = ssub.s32 %s11, %s18
    %p67 = scmp.eq.s32.totalorder %s66, 0
    %s69 = sadd.s32 %s68, 1
    %s70 = scalar_select %p67, %s68, %s69
    %p73 = pneg %p67
    %p74 = scmp.eq.s32.totalorder %s11, 1
    %p75 = por %p73, %p74
    %p76 = scmp.ne.s32.totalorder %s68, %s71
    %p77 = scmp.eq.s32.totalorder %s11, 0
    %p78 = por %p76, %p77
    %p79 = scmp.ne.s32.totalorder %s68, %s71
    %p80 = scmp.eq.s32.totalorder %s16, 1
    %p81 = por %p79, %p80
    %p82 = scmp.ne.s32.totalorder %s71, %s72
    %p83 = scmp.eq.s32.totalorder %s16, 0
    %p84 = por %p82, %p83
    %p85 = scmp.ne.s32.totalorder %s71, %s72
    %p86 = scmp.eq.s32.totalorder %s17, 1
    %p87 = por %p85, %p86
    %p89 = scmp.ne.s32.totalorder %s72, %s88
    %p90 = scmp.eq.s32.totalorder %s17, 0
    %p91 = por %p89, %p90
    %s93 = sadd.s32 %s92, 1
    %p96 = scmp.eq.s32.totalorder %s11, 1
    %p97 = scmp.ne.s32.totalorder %s92, %s94
    %p98 = scmp.eq.s32.totalorder %s11, 0
    %p99 = por %p97, %p98
    %p100 = scmp.ne.s32.totalorder %s92, %s94
    %p101 = scmp.eq.s32.totalorder %s16, 1
    %p102 = por %p100, %p101
    %p103 = scmp.ne.s32.totalorder %s94, %s95
    %p104 = scmp.eq.s32.totalorder %s16, 0
    %p105 = por %p103, %p104
    %p106 = scmp.ne.s32.totalorder %s94, %s95
    %p107 = scmp.eq.s32.totalorder %s17, 1
    %p108 = por %p106, %p107
    %p110 = scmp.ne.s32.totalorder %s95, %s109
    %p111 = scmp.eq.s32.totalorder %s17, 0
    %p112 = por %p110, %p111
    %s114 = sadd.s32 %s113, 1
    %p117 = scmp.eq.s32.totalorder %s11, 1
    %p118 = scmp.ne.s32.totalorder %s113, %s115
    %p119 = scmp.eq.s32.totalorder %s11, 0
    %p120 = por %p118, %p119
    %p121 = scmp.ne.s32.totalorder %s113, %s115
    %p122 = scmp.eq.s32.totalorder %s16, 1
    %p123 = por %p121, %p122
    %p124 = scmp.ne.s32.totalorder %s115, %s116
    %p125 = scmp.eq.s32.totalorder %s16, 0
    %p126 = por %p124, %p125
    %p127 = scmp.ne.s32.totalorder %s115, %s116
    %p128 = scmp.eq.s32.totalorder %s17, 1
    %p129 = por %p127, %p128
    %p131 = scmp.ne.s32.totalorder %s116, %s130
    %p132 = scmp.eq.s32.totalorder %s17, 0
    %p133 = por %p131, %p132
    %p134 = scmp.le.s32.totalorder 1, %s11
    %p135 = scmp.lt.s32.totalorder %s11, 3
    %p136 = pnand %p134, %p135
    %p137 = pneg %p136
    // Predicated region
    $region9: #{residual_forward.3} parent=5 // pred_check
      _
    $region10: #{residual_forward.3} parent=5 // pred_check_branch
      %139 = sbr.rel (%p136) target = $region12
    $region11: #{residual_forward.3} parent=5 // pred_region
      %s140 = ssub.s32 %s11, 1
      // Predicated region
      $region13: #{residual_forward.3} parent=11 // pred_check
        %p141 = pneg %p58
      $region14: #{residual_forward.3} parent=11 // pred_check_branch
        %143 = sbr.rel (%p141) target = $region16
      $region15: #{residual_forward.3} parent=11 // pred_region
        _
      $region16: #{residual_forward.3} parent=11 // pred_fallthru
        _
    $region12: #{residual_forward.3} parent=5 // pred_fallthru
      _
    %p144 = scmp.lt.s32.totalorder %s11, 2
    // Predicated region
    $region17: #{residual_forward.3} parent=5 // pred_check
      %p145 = pneg %p144
    $region18: #{residual_forward.3} parent=5 // pred_check_branch
      %147 = sbr.rel (%p145) target = $region20
    $region19: #{residual_forward.3} parent=5 // pred_region
      // Predicated region
      $region21: #{residual_forward.3} parent=19 // pred_check
        %p148 = pneg %p31
      $region22: #{residual_forward.3} parent=19 // pred_check_branch
        %150 = sbr.rel (%p148) target = $region24
      $region23: #{residual_forward.3} parent=19 // pred_region
        %s151 = smul.u32 4, %s11
        %p152 = scmp.lt.s32.totalorder %s151, 7
        %s153 = scalar_select %p152, %s151, 7
        %s154 = smul.addr %s153, 18
        %s155 = smul.addr %s154, 8
        %s156 = scalar_lea.vmem %s0, %s155
        %s157 = smul.u32 4, %s11
      $region24: #{residual_forward.3} parent=19 // pred_fallthru
        _
    $region20: #{residual_forward.3} parent=5 // pred_fallthru
      _
    %p158 = scmp.le.s32.totalorder 1, %s11
    %p159 = scmp.lt.s32.totalorder %s11, 3
    %p160 = pnand %p158, %p159
    %p161 = pneg %p160
    // Predicated region
    $region25: #{residual_forward.3} parent=5 // pred_check
      _
    $region26: #{residual_forward.3} parent=5 // pred_check_branch
      %163 = sbr.rel (%p160) target = $region28
    $region27: #{residual_forward.3} parent=5 // pred_region
      %s164 = ssub.s32 %s11, 1
      %s165 = smul.u32 4, %s16
      %p166 = scmp.lt.s32.totalorder %s165, 7
      %s167 = scalar_select %p166, %s165, 7
      %s168 = smul.addr %s167, 18
      %s169 = smul.addr %s168, 8
      %s170 = scalar_lea.vmem %s0, %s169
      %p171 = pneg %p37
      %p172 = pneg %p34
      %p173 = pneg %p58
      %p174 = pneg %p55
      %p175 = pneg %p84
      %p176 = pneg %p81
      %p177 = scmp.lt.s32.totalorder %s16, 1
      %s178 = scalar_select %p177, %s16, 1
      %s179 = smul.addr %s178, 8
      %s180 = smul.addr %s179, 8
      %s181 = scalar_lea.vmem %s2, %s180
      %p182 = pneg %p105
      %p183 = pneg %p102
      %p184 = pneg %p126
      %p185 = pneg %p123
      %s186 = smul.u32 4, %s16
      %p187 = scmp.lt.s32.totalorder %s186, 7
      %s188 = scalar_select %p187, %s186, 7
      %s189 = smul.addr %s188, 18
      %s190 = smul.addr %s189, 8
      %s191 = scalar_lea.vmem %s0, %s190
      %s192 = smul.u32 4, %s16
      %p193 = scmp.lt.s32.totalorder %s16, 1
      %s194 = scalar_select %p193, %s16, 1
      %s195 = smul.addr %s194, 8
      %s196 = smul.addr %s195, 8
      %s197 = scalar_lea.vmem %s2, %s196
      %p198 = scmp.eq.s32.totalorder %s16, 0
      // Predicated region
      $region29: #{residual_forward.3} parent=27 // pred_check
        %p199 = pneg %p198
      $region30: #{residual_forward.3} parent=27 // pred_check_branch
        %201 = sbr.rel (%p199) target = $region32
      $region31: #{residual_forward.3} parent=27 // pred_region
        %202 = vst [vmem:[%s3] sm:$0x1] 0.0
        %203 = vst [vmem:[%s4] sm:$0x1] 0.0
      $region32: #{residual_forward.3} parent=27 // pred_fallthru
        _
      %204 = vst [vmem:[#allocation2] sm:$0xff] 0.0
      %205 = vst [vmem:[#allocation2 + $0x8] sm:$0xff] 0.0
      %206 = vst [vmem:[#allocation2 + $0x10] sm:$0xff] 0.0
      %207 = vst [vmem:[#allocation2 + $0x18] sm:$0xff] 0.0
      %208 = vst [vmem:[#allocation2 + $0x20] sm:$0xff] 0.0
      %209 = vst [vmem:[#allocation2 + $0x28] sm:$0xff] 0.0
      %210 = vst [vmem:[#allocation2 + $0x30] sm:$0xff] 0.0
      %211 = vst [vmem:[#allocation2 + $0x38] sm:$0xff] 0.0
      %v212 = vld [vmem:[%s191] sm:$0xff]
      %v213 = vld [vmem:[%s191 + $0x10] sm:$0xff]
      %v214 = vld [vmem:[%s191 + $0x20] sm:$0xff]
      %v215 = vld [vmem:[%s191 + $0x30] sm:$0xff]
      %v216 = vld [vmem:[%s191 + $0x40] sm:$0xff]
      %v217 = vld [vmem:[%s191 + $0x50] sm:$0xff]
      %v218 = vld [vmem:[%s191 + $0x60] sm:$0xff]
      %v219 = vld [vmem:[%s191 + $0x70] sm:$0xff]
      %v220 = vld [vmem:[#allocation2] sm:$0xff]
      %v221 = vld [vmem:[#allocation2 + $0x8] sm:$0xff]
      %v222 = vld [vmem:[#allocation2 + $0x10] sm:$0xff]
      %v223 = vld [vmem:[#allocation2 + $0x18] sm:$0xff]
      %v224 = vld [vmem:[#allocation2 + $0x20] sm:$0xff]
      %v225 = vld [vmem:[#allocation2 + $0x28] sm:$0xff]
      %v226 = vld [vmem:[#allocation2 + $0x30] sm:$0xff]
      %v227 = vld [vmem:[#allocation2 + $0x38] sm:$0xff]
      %v228 = vld [vmem:[%s1] sm:$0xff]
      %v229 = vld [vmem:[%s1 + $0x8] sm:$0xff]
      %v230 = vld [vmem:[%s1 + $0x10] sm:$0xff]
      %v231 = vld [vmem:[%s1 + $0x18] sm:$0xff]
      %v232 = vld [vmem:[%s1 + $0x20] sm:$0xff]
      %v233 = vld [vmem:[%s1 + $0x28] sm:$0xff]
      %v234 = vld [vmem:[%s1 + $0x30] sm:$0xff]
      %v235 = vld [vmem:[%s1 + $0x38] sm:$0xff]
      %v236 = vld [vmem:[%s1 + $0x40] sm:$0xff]
      %v237 = vld [vmem:[%s1 + $0x48] sm:$0xff]
      %v238 = vld [vmem:[%s1 + $0x50] sm:$0xff]
      %v239 = vld [vmem:[%s1 + $0x58] sm:$0xff]
      %v240 = vld [vmem:[%s1 + $0x60] sm:$0xff]
      %v241 = vld [vmem:[%s1 + $0x68] sm:$0xff]
      %v242 = vld [vmem:[%s1 + $0x70] sm:$0xff]
      %v243 = vld [vmem:[%s1 + $0x78] sm:$0xff]
      %244 = vmatpush.msra.mxu0 %v243
      %245 = vmatpush.msra.mxu0 %v242
      %246 = vmatpush.msra.mxu0 %v241
      %247 = vmatpush.msra.mxu0 %v240
      %248 = vmatpush.msra.mxu0 %v239
      %249 = vmatpush.msra.mxu0 %v238
      %250 = vmatpush.msra.mxu0 %v237
      %251 = vmatpush.msra.mxu0 %v236
      %252 = vmatpush.msra.mxu0 %v235
      %253 = vmatpush.msra.mxu0 %v234
      %254 = vmatpush.msra.mxu0 %v233
      %255 = vmatpush.msra.mxu0 %v232
      %256 = vmatpush.msra.mxu0 %v231
      %257 = vmatpush.msra.mxu0 %v230
      %258 = vmatpush.msra.mxu0 %v229
      %259 = vmatpush.msra.mxu0 %v228
      %260 = vmatmul.f32.gmra.mxu0 %v212
      %v261 = vpop.f32.mrf.mxu0
      %v262 = vadd.f32 0.0, %v261
      %263 = vmatmul.f32.gmra.mxu0 %v213
      %v264 = vpop.f32.mrf.mxu0
      %v265 = vadd.f32 0.0, %v264
      %266 = vmatmul.f32.gmra.mxu0 %v214
      %v267 = vpop.f32.mrf.mxu0
      %v268 = vadd.f32 0.0, %v267
      %269 = vmatmul.f32.gmra.mxu0 %v215
      %v270 = vpop.f32.mrf.mxu0
      %v271 = vadd.f32 0.0, %v270
      %272 = vmatmul.f32.gmra.mxu0 %v216
      %v273 = vpop.f32.mrf.mxu0
      %v274 = vadd.f32 0.0, %v273
      %275 = vmatmul.f32.gmra.mxu0 %v217
      %v276 = vpop.f32.mrf.mxu0
      %v277 = vadd.f32 0.0, %v276
      %278 = vmatmul.f32.gmra.mxu0 %v218
      %v279 = vpop.f32.mrf.mxu0
      %v280 = vadd.f32 0.0, %v279
      %281 = vmatmul.f32.gmra.mxu0 %v219
      %v282 = vpop.f32.mrf.mxu0
      %v283 = vadd.f32 0.0, %v282
      %284 = vdwg.mxu0
      %v285 = vadd.f32 %v220, %v262
      %v286 = vadd.f32 %v221, %v265
      %v287 = vadd.f32 %v222, %v268
      %v288 = vadd.f32 %v223, %v271
      %v289 = vadd.f32 %v224, %v274
      %v290 = vadd.f32 %v225, %v277
      %v291 = vadd.f32 %v226, %v280
      %v292 = vadd.f32 %v227, %v283
      %293 = vst [vmem:[#allocation2] sm:$0xff] %v285
      %294 = vst [vmem:[#allocation2 + $0x8] sm:$0xff] %v286
      %295 = vst [vmem:[#allocation2 + $0x10] sm:$0xff] %v287
      %296 = vst [vmem:[#allocation2 + $0x18] sm:$0xff] %v288
      %297 = vst [vmem:[#allocation2 + $0x20] sm:$0xff] %v289
      %298 = vst [vmem:[#allocation2 + $0x28] sm:$0xff] %v290
      %299 = vst [vmem:[#allocation2 + $0x30] sm:$0xff] %v291
      %300 = vst [vmem:[#allocation2 + $0x38] sm:$0xff] %v292
      %s301 = scalar_lea.vmem %s191, 144
      %v302 = vld [vmem:[%s301] sm:$0xff]
      %v303 = vld [vmem:[%s301 + $0x10] sm:$0xff]
      %v304 = vld [vmem:[%s301 + $0x20] sm:$0xff]
      %v305 = vld [vmem:[%s301 + $0x30] sm:$0xff]
      %v306 = vld [vmem:[%s301 + $0x40] sm:$0xff]
      %v307 = vld [vmem:[%s301 + $0x50] sm:$0xff]
      %v308 = vld [vmem:[%s301 + $0x60] sm:$0xff]
      %v309 = vld [vmem:[%s301 + $0x70] sm:$0xff]
      %v310 = vld [vmem:[#allocation2] sm:$0xff]
      %v311 = vld [vmem:[#allocation2 + $0x8] sm:$0xff]
      %v312 = vld [vmem:[#allocation2 + $0x10] sm:$0xff]
      %v313 = vld [vmem:[#allocation2 + $0x18] sm:$0xff]
      %v314 = vld [vmem:[#allocation2 + $0x20] sm:$0xff]
      %v315 = vld [vmem:[#allocation2 + $0x28] sm:$0xff]
      %v316 = vld [vmem:[#allocation2 + $0x30] sm:$0xff]
      %v317 = vld [vmem:[#allocation2 + $0x38] sm:$0xff]
      %s318 = scalar_lea.vmem %s1, 128
      %v319 = vld [vmem:[%s318] sm:$0xff]
      %v320 = vld [vmem:[%s318 + $0x8] sm:$0xff]
      %v321 = vld [vmem:[%s318 + $0x10] sm:$0xff]
      %v322 = vld [vmem:[%s318 + $0x18] sm:$0xff]
      %v323 = vld [vmem:[%s318 + $0x20] sm:$0xff]
      %v324 = vld [vmem:[%s318 + $0x28] sm:$0xff]
      %v325 = vld [vmem:[%s318 + $0x30] sm:$0xff]
      %v326 = vld [vmem:[%s318 + $0x38] sm:$0xff]
      %v327 = vld [vmem:[%s318 + $0x40] sm:$0xff]
      %v328 = vld [vmem:[%s318 + $0x48] sm:$0xff]
      %v329 = vld [vmem:[%s318 + $0x50] sm:$0xff]
      %v330 = vld [vmem:[%s318 + $0x58] sm:$0xff]
      %v331 = vld [vmem:[%s318 + $0x60] sm:$0xff]
      %v332 = vld [vmem:[%s318 + $0x68] sm:$0xff]
      %v333 = vld [vmem:[%s318 + $0x70] sm:$0xff]
      %v334 = vld [vmem:[%s318 + $0x78] sm:$0xff]
      %335 = vmatpush.msra.mxu0 %v334
      %336 = vmatpush.msra.mxu0 %v333
      %337 = vmatpush.msra.mxu0 %v332
      %338 = vmatpush.msra.mxu0 %v331
      %339 = vmatpush.msra.mxu0 %v330
      %340 = vmatpush.msra.mxu0 %v329
      %341 = vmatpush.msra.mxu0 %v328
      %342 = vmatpush.msra.mxu0 %v327
      %343 = vmatpush.msra.mxu0 %v326
      %344 = vmatpush.msra.mxu0 %v325
      %345 = vmatpush.msra.mxu0 %v324
      %346 = vmatpush.msra.mxu0 %v323
      %347 = vmatpush.msra.mxu0 %v322
      %348 = vmatpush.msra.mxu0 %v321
      %349 = vmatpush.msra.mxu0 %v320
      %350 = vmatpush.msra.mxu0 %v319
      %351 = vmatmul.f32.gmra.mxu0 %v302
      %v352 = vpop.f32.mrf.mxu0
      %v353 = vadd.f32 0.0, %v352
      %354 = vmatmul.f32.gmra.mxu0 %v303
      %v355 = vpop.f32.mrf.mxu0
      %v356 = vadd.f32 0.0, %v355
      %357 = vmatmul.f32.gmra.mxu0 %v304
      %v358 = vpop.f32.mrf.mxu0
      %v359 = vadd.f32 0.0, %v358
      %360 = vmatmul.f32.gmra.mxu0 %v305
      %v361 = vpop.f32.mrf.mxu0
      %v362 = vadd.f32 0.0, %v361
      %363 = vmatmul.f32.gmra.mxu0 %v306
      %v364 = vpop.f32.mrf.mxu0
      %v365 = vadd.f32 0.0, %v364
      %366 = vmatmul.f32.gmra.mxu0 %v307
      %v367 = vpop.f32.mrf.mxu0
      %v368 = vadd.f32 0.0, %v367
      %369 = vmatmul.f32.gmra.mxu0 %v308
      %v370 = vpop.f32.mrf.mxu0
      %v371 = vadd.f32 0.0, %v370
      %372 = vmatmul.f32.gmra.mxu0 %v309
      %v373 = vpop.f32.mrf.mxu0
      %v374 = vadd.f32 0.0, %v373
      %375 = vdwg.mxu0
      %v376 = vadd.f32 %v310, %v353
      %v377 = vadd.f32 %v311, %v356
      %v378 = vadd.f32 %v312, %v359
      %v379 = vadd.f32 %v313, %v362
      %v380 = vadd.f32 %v314, %v365
      %v381 = vadd.f32 %v315, %v368
      %v382 = vadd.f32 %v316, %v371
      %v383 = vadd.f32 %v317, %v374
      %384 = vst [vmem:[#allocation2] sm:$0xff] %v376
      %385 = vst [vmem:[#allocation2 + $0x8] sm:$0xff] %v377
      %386 = vst [vmem:[#allocation2 + $0x10] sm:$0xff] %v378
      %387 = vst [vmem:[#allocation2 + $0x18] sm:$0xff] %v379
      %388 = vst [vmem:[#allocation2 + $0x20] sm:$0xff] %v380
      %389 = vst [vmem:[#allocation2 + $0x28] sm:$0xff] %v381
      %390 = vst [vmem:[#allocation2 + $0x30] sm:$0xff] %v382
      %391 = vst [vmem:[#allocation2 + $0x38] sm:$0xff] %v383
      %v392 = vld [vmem:[%s191 + $0x1] sm:$0xff]
      %v393 = vld [vmem:[%s191 + $0x11] sm:$0xff]
      %v394 = vld [vmem:[%s191 + $0x21] sm:$0xff]
      %v395 = vld [vmem:[%s191 + $0x31] sm:$0xff]
      %v396 = vld [vmem:[%s191 + $0x41] sm:$0xff]
      %v397 = vld [vmem:[%s191 + $0x51] sm:$0xff]
      %v398 = vld [vmem:[%s191 + $0x61] sm:$0xff]
      %v399 = vld [vmem:[%s191 + $0x71] sm:$0xff]
      %v400 = vld [vmem:[#allocation2] sm:$0xff]
      %v401 = vld [vmem:[#allocation2 + $0x8] sm:$0xff]
      %v402 = vld [vmem:[#allocation2 + $0x10] sm:$0xff]
      %v403 = vld [vmem:[#allocation2 + $0x18] sm:$0xff]
      %v404 = vld [vmem:[#allocation2 + $0x20] sm:$0xff]
      %v405 = vld [vmem:[#allocation2 + $0x28] sm:$0xff]
      %v406 = vld [vmem:[#allocation2 + $0x30] sm:$0xff]
      %v407 = vld [vmem:[#allocation2 + $0x38] sm:$0xff]
      %s408 = scalar_lea.vmem %s1, 256
      %v409 = vld [vmem:[%s408] sm:$0xff]
      %v410 = vld [vmem:[%s408 + $0x8] sm:$0xff]
      %v411 = vld [vmem:[%s408 + $0x10] sm:$0xff]
      %v412 = vld [vmem:[%s408 + $0x18] sm:$0xff]
      %v413 = vld [vmem:[%s408 + $0x20] sm:$0xff]
      %v414 = vld [vmem:[%s408 + $0x28] sm:$0xff]
      %v415 = vld [vmem:[%s408 + $0x30] sm:$0xff]
      %v416 = vld [vmem:[%s408 + $0x38] sm:$0xff]
      %v417 = vld [vmem:[%s408 + $0x40] sm:$0xff]
      %v418 = vld [vmem:[%s408 + $0x48] sm:$0xff]
      %v419 = vld [vmem:[%s408 + $0x50] sm:$0xff]
      %v420 = vld [vmem:[%s408 + $0x58] sm:$0xff]
      %v421 = vld [vmem:[%s408 + $0x60] sm:$0xff]
      %v422 = vld [vmem:[%s408 + $0x68] sm:$0xff]
      %v423 = vld [vmem:[%s408 + $0x70] sm:$0xff]
      %v424 = vld [vmem:[%s408 + $0x78] sm:$0xff]
      %425 = vmatpush.msra.mxu0 %v424
      %426 = vmatpush.msra.mxu0 %v423
      %427 = vmatpush.msra.mxu0 %v422
      %428 = vmatpush.msra.mxu0 %v421
      %429 = vmatpush.msra.mxu0 %v420
      %430 = vmatpush.msra.mxu0 %v419
      %431 = vmatpush.msra.mxu0 %v418
      %432 = vmatpush.msra.mxu0 %v417
      %433 = vmatpush.msra.mxu0 %v416
      %434 = vmatpush.msra.mxu0 %v415
      %435 = vmatpush.msra.mxu0 %v414
      %436 = vmatpush.msra.mxu0 %v413
      %437 = vmatpush.msra.mxu0 %v412
      %438 = vmatpush.msra.mxu0 %v411
      %439 = vmatpush.msra.mxu0 %v410
      %440 = vmatpush.msra.mxu0 %v409
      %441 = vmatmul.f32.gmra.mxu0 %v392
      %v442 = vpop.f32.mrf.mxu0
      %v443 = vadd.f32 0.0, %v442
      %444 = vmatmul.f32.gmra.mxu0 %v393
      %v445 = vpop.f32.mrf.mxu0
      %v446 = vadd.f32 0.0, %v445
      %447 = vmatmul.f32.gmra.mxu0 %v394
      %v448 = vpop.f32.mrf.mxu0
      %v449 = vadd.f32 0.0, %v448
      %450 = vmatmul.f32.gmra.mxu0 %v395
      %v451 = vpop.f32.mrf.mxu0
      %v452 = vadd.f32 0.0, %v451
      %453 = vmatmul.f32.gmra.mxu0 %v396
      %v454 = vpop.f32.mrf.mxu0
      %v455 = vadd.f32 0.0, %v454
      %456 = vmatmul.f32.gmra.mxu0 %v397
      %v457 = vpop.f32.mrf.mxu0
      %v458 = vadd.f32 0.0, %v457
      %459 = vmatmul.f32.gmra.mxu0 %v398
      %v460 = vpop.f32.mrf.mxu0
      %v461 = vadd.f32 0.0, %v460
      %462 = vmatmul.f32.gmra.mxu0 %v399
      %v463 = vpop.f32.mrf.mxu0
      %v464 = vadd.f32 0.0, %v463
      %465 = vdwg.mxu0
      %v466 = vadd.f32 %v400, %v443
      %v467 = vadd.f32 %v401, %v446
      %v468 = vadd.f32 %v402, %v449
      %v469 = vadd.f32 %v403, %v452
      %v470 = vadd.f32 %v404, %v455
      %v471 = vadd.f32 %v405, %v458
      %v472 = vadd.f32 %v406, %v461
      %v473 = vadd.f32 %v407, %v464
      %474 = vst [vmem:[#allocation2] sm:$0xff] %v466
      %475 = vst [vmem:[#allocation2 + $0x8] sm:$0xff] %v467
      %476 = vst [vmem:[#allocation2 + $0x10] sm:$0xff] %v468
      %477 = vst [vmem:[#allocation2 + $0x18] sm:$0xff] %v469
      %478 = vst [vmem:[#allocation2 + $0x20] sm:$0xff] %v470
      %479 = vst [vmem:[#allocation2 + $0x28] sm:$0xff] %v471
      %480 = vst [vmem:[#allocation2 + $0x30] sm:$0xff] %v472
      %481 = vst [vmem:[#allocation2 + $0x38] sm:$0xff] %v473
      %s482 = scalar_lea.vmem %s191, 288
      %v483 = vld [vmem:[%s482] sm:$0xff]
      %v484 = vld [vmem:[%s482 + $0x10] sm:$0xff]
      %v485 = vld [vmem:[%s482 + $0x20] sm:$0xff]
      %v486 = vld [vmem:[%s482 + $0x30] sm:$0xff]
      %v487 = vld [vmem:[%s482 + $0x40] sm:$0xff]
      %v488 = vld [vmem:[%s482 + $0x50] sm:$0xff]
      %v489 = vld [vmem:[%s482 + $0x60] sm:$0xff]
      %v490 = vld [vmem:[%s482 + $0x70] sm:$0xff]
      %v491 = vld [vmem:[#allocation2] sm:$0xff]
      %v492 = vld [vmem:[#allocation2 + $0x8] sm:$0xff]
      %v493 = vld [vmem:[#allocation2 + $0x10] sm:$0xff]
      %v494 = vld [vmem:[#allocation2 + $0x18] sm:$0xff]
      %v495 = vld [vmem:[#allocation2 + $0x20] sm:$0xff]
      %v496 = vld [vmem:[#allocation2 + $0x28] sm:$0xff]
      %v497 = vld [vmem:[#allocation2 + $0x30] sm:$0xff]
      %v498 = vld [vmem:[#allocation2 + $0x38] sm:$0xff]
      %s499 = scalar_lea.vmem %s1, 384
      %v500 = vld [vmem:[%s499] sm:$0xff]
      %v501 = vld [vmem:[%s499 + $0x8] sm:$0xff]
      %v502 = vld [vmem:[%s499 + $0x10] sm:$0xff]
      %v503 = vld [vmem:[%s499 + $0x18] sm:$0xff]
      %v504 = vld [vmem:[%s499 + $0x20] sm:$0xff]
      %v505 = vld [vmem:[%s499 + $0x28] sm:$0xff]
      %v506 = vld [vmem:[%s499 + $0x30] sm:$0xff]
      %v507 = vld [vmem:[%s499 + $0x38] sm:$0xff]
      %v508 = vld [vmem:[%s499 + $0x40] sm:$0xff]
      %v509 = vld [vmem:[%s499 + $0x48] sm:$0xff]
      %v510 = vld [vmem:[%s499 + $0x50] sm:$0xff]
      %v511 = vld [vmem:[%s499 + $0x58] sm:$0xff]
      %v512 = vld [vmem:[%s499 + $0x60] sm:$0xff]
      %v513 = vld [vmem:[%s499 + $0x68] sm:$0xff]
      %v514 = vld [vmem:[%s499 + $0x70] sm:$0xff]
      %v515 = vld [vmem:[%s499 + $0x78] sm:$0xff]
      %516 = vmatpush.msra.mxu0 %v515
      %517 = vmatpush.msra.mxu0 %v514
      %518 = vmatpush.msra.mxu0 %v513
      %519 = vmatpush.msra.mxu0 %v512
      %520 = vmatpush.msra.mxu0 %v511
      %521 = vmatpush.msra.mxu0 %v510
      %522 = vmatpush.msra.mxu0 %v509
      %523 = vmatpush.msra.mxu0 %v508
      %524 = vmatpush.msra.mxu0 %v507
      %525 = vmatpush.msra.mxu0 %v506
      %526 = vmatpush.msra.mxu0 %v505
      %527 = vmatpush.msra.mxu0 %v504
      %528 = vmatpush.msra.mxu0 %v503
      %529 = vmatpush.msra.mxu0 %v502
      %530 = vmatpush.msra.mxu0 %v501
      %531 = vmatpush.msra.mxu0 %v500
      %532 = vmatmul.f32.gmra.mxu0 %v483
      %v533 = vpop.f32.mrf.mxu0
      %v534 = vadd.f32 0.0, %v533
      %535 = vmatmul.f32.gmra.mxu0 %v484
      %v536 = vpop.f32.mrf.mxu0
      %v537 = vadd.f32 0.0, %v536
      %538 = vmatmul.f32.gmra.mxu0 %v485
      %v539 = vpop.f32.mrf.mxu0
      %v540 = vadd.f32 0.0, %v539
      %541 = vmatmul.f32.gmra.mxu0 %v486
      %v542 = vpop.f32.mrf.mxu0
      %v543 = vadd.f32 0.0, %v542
      %544 = vmatmul.f32.gmra.mxu0 %v487
      %v545 = vpop.f32.mrf.mxu0
      %v546 = vadd.f32 0.0, %v545
      %547 = vmatmul.f32.gmra.mxu0 %v488
      %v548 = vpop.f32.mrf.mxu0
      %v549 = vadd.f32 0.0, %v548
      %550 = vmatmul.f32.gmra.mxu0 %v489
      %v551 = vpop.f32.mrf.mxu0
      %v552 = vadd.f32 0.0, %v551
      %553 = vmatmul.f32.gmra.mxu0 %v490
      %v554 = vpop.f32.mrf.mxu0
      %v555 = vadd.f32 0.0, %v554
      %556 = vdwg.mxu0
      %v557 = vadd.f32 %v491, %v534
      %v558 = vadd.f32 %v492, %v537
      %v559 = vadd.f32 %v493, %v540
      %v560 = vadd.f32 %v494, %v543
      %v561 = vadd.f32 %v495, %v546
      %v562 = vadd.f32 %v496, %v549
      %v563 = vadd.f32 %v497, %v552
      %v564 = vadd.f32 %v498, %v555
      %565 = vst [vmem:[#allocation2] sm:$0xff] %v557
      %566 = vst [vmem:[#allocation2 + $0x8] sm:$0xff] %v558
      %567 = vst [vmem:[#allocation2 + $0x10] sm:$0xff] %v559
      %568 = vst [vmem:[#allocation2 + $0x18] sm:$0xff] %v560
      %569 = vst [vmem:[#allocation2 + $0x20] sm:$0xff] %v561
      %570 = vst [vmem:[#allocation2 + $0x28] sm:$0xff] %v562
      %571 = vst [vmem:[#allocation2 + $0x30] sm:$0xff] %v563
      %572 = vst [vmem:[#allocation2 + $0x38] sm:$0xff] %v564
      %s573 = scalar_lea.vmem %s191, 432
      %v574 = vld [vmem:[%s573] sm:$0xff]
      %v575 = vld [vmem:[%s573 + $0x10] sm:$0xff]
      %v576 = vld [vmem:[%s573 + $0x20] sm:$0xff]
      %v577 = vld [vmem:[%s573 + $0x30] sm:$0xff]
      %v578 = vld [vmem:[%s573 + $0x40] sm:$0xff]
      %v579 = vld [vmem:[%s573 + $0x50] sm:$0xff]
      %v580 = vld [vmem:[%s573 + $0x60] sm:$0xff]
      %v581 = vld [vmem:[%s573 + $0x70] sm:$0xff]
      %v582 = vld [vmem:[#allocation2] sm:$0xff]
      %v583 = vld [vmem:[#allocation2 + $0x8] sm:$0xff]
      %v584 = vld [vmem:[#allocation2 + $0x10] sm:$0xff]
      %v585 = vld [vmem:[#allocation2 + $0x18] sm:$0xff]
      %v586 = vld [vmem:[#allocation2 + $0x20] sm:$0xff]
      %v587 = vld [vmem:[#allocation2 + $0x28] sm:$0xff]
      %v588 = vld [vmem:[#allocation2 + $0x30] sm:$0xff]
      %v589 = vld [vmem:[#allocation2 + $0x38] sm:$0xff]
      %s590 = scalar_lea.vmem %s1, 512
      %v591 = vld [vmem:[%s590] sm:$0xff]
      %v592 = vld [vmem:[%s590 + $0x8] sm:$0xff]
      %v593 = vld [vmem:[%s590 + $0x10] sm:$0xff]
      %v594 = vld [vmem:[%s590 + $0x18] sm:$0xff]
      %v595 = vld [vmem:[%s590 + $0x20] sm:$0xff]
      %v596 = vld [vmem:[%s590 + $0x28] sm:$0xff]
      %v597 = vld [vmem:[%s590 + $0x30] sm:$0xff]
      %v598 = vld [vmem:[%s590 + $0x38] sm:$0xff]
      %v599 = vld [vmem:[%s590 + $0x40] sm:$0xff]
      %v600 = vld [vmem:[%s590 + $0x48] sm:$0xff]
      %v601 = vld [vmem:[%s590 + $0x50] sm:$0xff]
      %v602 = vld [vmem:[%s590 + $0x58] sm:$0xff]
      %v603 = vld [vmem:[%s590 + $0x60] sm:$0xff]
      %v604 = vld [vmem:[%s590 + $0x68] sm:$0xff]
      %v605 = vld [vmem:[%s590 + $0x70] sm:$0xff]
      %v606 = vld [vmem:[%s590 + $0x78] sm:$0xff]
      %607 = vmatpush.msra.mxu0 %v606
      %608 = vmatpush.msra.mxu0 %v605
      %609 = vmatpush.msra.mxu0 %v604
      %610 = vmatpush.msra.mxu0 %v603
      %611 = vmatpush.msra.mxu0 %v602
      %612 = vmatpush.msra.mxu0 %v601
      %613 = vmatpush.msra.mxu0 %v600
      %614 = vmatpush.msra.mxu0 %v599
      %615 = vmatpush.msra.mxu0 %v598
      %616 = vmatpush.msra.mxu0 %v597
      %617 = vmatpush.msra.mxu0 %v596
      %618 = vmatpush.msra.mxu0 %v595
      %619 = vmatpush.msra.mxu0 %v594
      %620 = vmatpush.msra.mxu0 %v593
      %621 = vmatpush.msra.mxu0 %v592
      %622 = vmatpush.msra.mxu0 %v591
      %623 = vmatmul.f32.gmra.mxu0 %v574
      %v624 = vpop.f32.mrf.mxu0
      %v625 = vadd.f32 0.0, %v624
      %626 = vmatmul.f32.gmra.mxu0 %v575
      %v627 = vpop.f32.mrf.mxu0
      %v628 = vadd.f32 0.0, %v627
      %629 = vmatmul.f32.gmra.mxu0 %v576
      %v630 = vpop.f32.mrf.mxu0
      %v631 = vadd.f32 0.0, %v630
      %632 = vmatmul.f32.gmra.mxu0 %v577
      %v633 = vpop.f32.mrf.mxu0
      %v634 = vadd.f32 0.0, %v633
      %635 = vmatmul.f32.gmra.mxu0 %v578
      %v636 = vpop.f32.mrf.mxu0
      %v637 = vadd.f32 0.0, %v636
      %638 = vmatmul.f32.gmra.mxu0 %v579
      %v639 = vpop.f32.mrf.mxu0
      %v640 = vadd.f32 0.0, %v639
      %641 = vmatmul.f32.gmra.mxu0 %v580
      %v642 = vpop.f32.mrf.mxu0
      %v643 = vadd.f32 0.0, %v642
      %644 = vmatmul.f32.gmra.mxu0 %v581
      %v645 = vpop.f32.mrf.mxu0
      %v646 = vadd.f32 0.0, %v645
      %647 = vdwg.mxu0
      %v648 = vadd.f32 %v582, %v625
      %v649 = vadd.f32 %v583, %v628
      %v650 = vadd.f32 %v584, %v631
      %v651 = vadd.f32 %v585, %v634
      %v652 = vadd.f32 %v586, %v637
      %v653 = vadd.f32 %v587, %v640
      %v654 = vadd.f32 %v588, %v643
      %v655 = vadd.f32 %v589, %v646
      %656 = vst [vmem:[#allocation2] sm:$0xff] %v648
      %657 = vst [vmem:[#allocation2 + $0x8] sm:$0xff] %v649
      %658 = vst [vmem:[#allocation2 + $0x10] sm:$0xff] %v650
      %659 = vst [vmem:[#allocation2 + $0x18] sm:$0xff] %v651
      %660 = vst [vmem:[#allocation2 + $0x20] sm:$0xff] %v652
      %661 = vst [vmem:[#allocation2 + $0x28] sm:$0xff] %v653
      %662 = vst [vmem:[#allocation2 + $0x30] sm:$0xff] %v654
      %663 = vst [vmem:[#allocation2 + $0x38] sm:$0xff] %v655
      %v664 = vld [vmem:[%s482 + $0x1] sm:$0xff]
      %v665 = vld [vmem:[%s482 + $0x11] sm:$0xff]
      %v666 = vld [vmem:[%s482 + $0x21] sm:$0xff]
      %v667 = vld [vmem:[%s482 + $0x31] sm:$0xff]
      %v668 = vld [vmem:[%s482 + $0x41] sm:$0xff]
      %v669 = vld [vmem:[%s482 + $0x51] sm:$0xff]
      %v670 = vld [vmem:[%s482 + $0x61] sm:$0xff]
      %v671 = vld [vmem:[%s482 + $0x71] sm:$0xff]
      %v672 = vld [vmem:[#allocation2] sm:$0xff]
      %v673 = vld [vmem:[#allocation2 + $0x8] sm:$0xff]
      %v674 = vld [vmem:[#allocation2 + $0x10] sm:$0xff]
      %v675 = vld [vmem:[#allocation2 + $0x18] sm:$0xff]
      %v676 = vld [vmem:[#allocation2 + $0x20] sm:$0xff]
      %v677 = vld [vmem:[#allocation2 + $0x28] sm:$0xff]
      %v678 = vld [vmem:[#allocation2 + $0x30] sm:$0xff]
      %v679 = vld [vmem:[#allocation2 + $0x38] sm:$0xff]
      %s680 = scalar_lea.vmem %s1, 640
      %v681 = vld [vmem:[%s680] sm:$0xff]
      %v682 = vld [vmem:[%s680 + $0x8] sm:$0xff]
      %v683 = vld [vmem:[%s680 + $0x10] sm:$0xff]
      %v684 = vld [vmem:[%s680 + $0x18] sm:$0xff]
      %v685 = vld [vmem:[%s680 + $0x20] sm:$0xff]
      %v686 = vld [vmem:[%s680 + $0x28] sm:$0xff]
      %v687 = vld [vmem:[%s680 + $0x30] sm:$0xff]
      %v688 = vld [vmem:[%s680 + $0x38] sm:$0xff]
      %v689 = vld [vmem:[%s680 + $0x40] sm:$0xff]
      %v690 = vld [vmem:[%s680 + $0x48] sm:$0xff]
      %v691 = vld [vmem:[%s680 + $0x50] sm:$0xff]
      %v692 = vld [vmem:[%s680 + $0x58] sm:$0xff]
      %v693 = vld [vmem:[%s680 + $0x60] sm:$0xff]
      %v694 = vld [vmem:[%s680 + $0x68] sm:$0xff]
      %v695 = vld [vmem:[%s680 + $0x70] sm:$0xff]
      %v696 = vld [vmem:[%s680 + $0x78] sm:$0xff]
      %697 = vmatpush.msra.mxu0 %v696
      %698 = vmatpush.msra.mxu0 %v695
      %699 = vmatpush.msra.mxu0 %v694
      %700 = vmatpush.msra.mxu0 %v693
      %701 = vmatpush.msra.mxu0 %v692
      %702 = vmatpush.msra.mxu0 %v691
      %703 = vmatpush.msra.mxu0 %v690
      %704 = vmatpush.msra.mxu0 %v689
      %705 = vmatpush.msra.mxu0 %v688
      %706 = vmatpush.msra.mxu0 %v687
      %707 = vmatpush.msra.mxu0 %v686
      %708 = vmatpush.msra.mxu0 %v685
      %709 = vmatpush.msra.mxu0 %v684
      %710 = vmatpush.msra.mxu0 %v683
      %711 = vmatpush.msra.mxu0 %v682
      %712 = vmatpush.msra.mxu0 %v681
      %713 = vmatmul.f32.gmra.mxu0 %v664
      %v714 = vpop.f32.mrf.mxu0
      %v715 = vadd.f32 0.0, %v714
      %716 = vmatmul.f32.gmra.mxu0 %v665
      %v717 = vpop.f32.mrf.mxu0
      %v718 = vadd.f32 0.0, %v717
      %719 = vmatmul.f32.gmra.mxu0 %v666
      %v720 = vpop.f32.mrf.mxu0
      %v721 = vadd.f32 0.0, %v720
      %722 = vmatmul.f32.gmra.mxu0 %v667
      %v723 = vpop.f32.mrf.mxu0
      %v724 = vadd.f32 0.0, %v723
      %725 = vmatmul.f32.gmra.mxu0 %v668
      %v726 = vpop.f32.mrf.mxu0
      %v727 = vadd.f32 0.0, %v726
      %728 = vmatmul.f32.gmra.mxu0 %v669
      %v729 = vpop.f32.mrf.mxu0
      %v730 = vadd.f32 0.0, %v729
      %731 = vmatmul.f32.gmra.mxu0 %v670
      %v732 = vpop.f32.mrf.mxu0
      %v733 = vadd.f32 0.0, %v732
      %734 = vmatmul.f32.gmra.mxu0 %v671
      %v735 = vpop.f32.mrf.mxu0
      %v736 = vadd.f32 0.0, %v735
      %737 = vdwg.mxu0
      %v738 = vadd.f32 %v672, %v715
      %v739 = vadd.f32 %v673, %v718
      %v740 = vadd.f32 %v674, %v721
      %v741 = vadd.f32 %v675, %v724
      %v742 = vadd.f32 %v676, %v727
      %v743 = vadd.f32 %v677, %v730
      %v744 = vadd.f32 %v678, %v733
      %v745 = vadd.f32 %v679, %v736
      %746 = vst [vmem:[#allocation2] sm:$0xff] %v738
      %747 = vst [vmem:[#allocation2 + $0x8] sm:$0xff] %v739
      %748 = vst [vmem:[#allocation2 + $0x10] sm:$0xff] %v740
      %749 = vst [vmem:[#allocation2 + $0x18] sm:$0xff] %v741
      %750 = vst [vmem:[#allocation2 + $0x20] sm:$0xff] %v742
      %751 = vst [vmem:[#allocation2 + $0x28] sm:$0xff] %v743
      %752 = vst [vmem:[#allocation2 + $0x30] sm:$0xff] %v744
      %753 = vst [vmem:[#allocation2 + $0x38] sm:$0xff] %v745
      %s754 = scalar_lea.vmem %s191, 16
      %v755 = vld [vmem:[%s754] sm:$0xff]
      %v756 = vld [vmem:[%s754 + $0x10] sm:$0xff]
      %v757 = vld [vmem:[%s754 + $0x20] sm:$0xff]
      %v758 = vld [vmem:[%s754 + $0x30] sm:$0xff]
      %v759 = vld [vmem:[%s754 + $0x40] sm:$0xff]
      %v760 = vld [vmem:[%s754 + $0x50] sm:$0xff]
      %v761 = vld [vmem:[%s754 + $0x60] sm:$0xff]
      %v762 = vld [vmem:[%s754 + $0x70] sm:$0xff]
      %v763 = vld [vmem:[#allocation2] sm:$0xff]
      %v764 = vld [vmem:[#allocation2 + $0x8] sm:$0xff]
      %v765 = vld [vmem:[#allocation2 + $0x10] sm:$0xff]
      %v766 = vld [vmem:[#allocation2 + $0x18] sm:$0xff]
      %v767 = vld [vmem:[#allocation2 + $0x20] sm:$0xff]
      %v768 = vld [vmem:[#allocation2 + $0x28] sm:$0xff]
      %v769 = vld [vmem:[#allocation2 + $0x30] sm:$0xff]
      %v770 = vld [vmem:[#allocation2 + $0x38] sm:$0xff]
      %s771 = scalar_lea.vmem %s1, 768
      %v772 = vld [vmem:[%s771] sm:$0xff]
      %v773 = vld [vmem:[%s771 + $0x8] sm:$0xff]
      %v774 = vld [vmem:[%s771 + $0x10] sm:$0xff]
      %v775 = vld [vmem:[%s771 + $0x18] sm:$0xff]
      %v776 = vld [vmem:[%s771 + $0x20] sm:$0xff]
      %v777 = vld [vmem:[%s771 + $0x28] sm:$0xff]
      %v778 = vld [vmem:[%s771 + $0x30] sm:$0xff]
      %v779 = vld [vmem:[%s771 + $0x38] sm:$0xff]
      %v780 = vld [vmem:[%s771 + $0x40] sm:$0xff]
      %v781 = vld [vmem:[%s771 + $0x48] sm:$0xff]
      %v782 = vld [vmem:[%s771 + $0x50] sm:$0xff]
      %v783 = vld [vmem:[%s771 + $0x58] sm:$0xff]
      %v784 = vld [vmem:[%s771 + $0x60] sm:$0xff]
      %v785 = vld [vmem:[%s771 + $0x68] sm:$0xff]
      %v786 = vld [vmem:[%s771 + $0x70] sm:$0xff]
      %v787 = vld [vmem:[%s771 + $0x78] sm:$0xff]
      %788 = vmatpush.msra.mxu0 %v787
      %789 = vmatpush.msra.mxu0 %v786
      %790 = vmatpush.msra.mxu0 %v785
      %791 = vmatpush.msra.mxu0 %v784
      %792 = vmatpush.msra.mxu0 %v783
      %793 = vmatpush.msra.mxu0 %v782
      %794 = vmatpush.msra.mxu0 %v781
      %795 = vmatpush.msra.mxu0 %v780
      %796 = vmatpush.msra.mxu0 %v779
      %797 = vmatpush.msra.mxu0 %v778
      %798 = vmatpush.msra.mxu0 %v777
      %799 = vmatpush.msra.mxu0 %v776
      %800 = vmatpush.msra.mxu0 %v775
      %801 = vmatpush.msra.mxu0 %v774
      %802 = vmatpush.msra.mxu0 %v773
      %803 = vmatpush.msra.mxu0 %v772
      %804 = vmatmul.f32.gmra.mxu0 %v755
      %v805 = vpop.f32.mrf.mxu0
      %v806 = vadd.f32 0.0, %v805
      %807 = vmatmul.f32.gmra.mxu0 %v756
      %v808 = vpop.f32.mrf.mxu0
      %v809 = vadd.f32 0.0, %v808
      %810 = vmatmul.f32.gmra.mxu0 %v757
      %v811 = vpop.f32.mrf.mxu0
      %v812 = vadd.f32 0.0, %v811
      %813 = vmatmul.f32.gmra.mxu0 %v758
      %v814 = vpop.f32.mrf.mxu0
      %v815 = vadd.f32 0.0, %v814
      %816 = vmatmul.f32.gmra.mxu0 %v759
      %v817 = vpop.f32.mrf.mxu0
      %v818 = vadd.f32 0.0, %v817
      %819 = vmatmul.f32.gmra.mxu0 %v760
      %v820 = vpop.f32.mrf.mxu0
      %v821 = vadd.f32 0.0, %v820
      %822 = vmatmul.f32.gmra.mxu0 %v761
      %v823 = vpop.f32.mrf.mxu0
      %v824 = vadd.f32 0.0, %v823
      %825 = vmatmul.f32.gmra.mxu0 %v762
      %v826 = vpop.f32.mrf.mxu0
      %v827 = vadd.f32 0.0, %v826
      %828 = vdwg.mxu0
      %v829 = vadd.f32 %v763, %v806
      %v830 = vadd.f32 %v764, %v809
      %v831 = vadd.f32 %v765, %v812
      %v832 = vadd.f32 %v766, %v815
      %v833 = vadd.f32 %v767, %v818
      %v834 = vadd.f32 %v768, %v821
      %v835 = vadd.f32 %v769, %v824
      %v836 = vadd.f32 %v770, %v827
      %837 = vst [vmem:[#allocation2] sm:$0xff] %v829
      %838 = vst [vmem:[#allocation2 + $0x8] sm:$0xff] %v830
      %839 = vst [vmem:[#allocation2 + $0x10] sm:$0xff] %v831
      %840 = vst [vmem:[#allocation2 + $0x18] sm:$0xff] %v832
      %841 = vst [vmem:[#allocation2 + $0x20] sm:$0xff] %v833
      %842 = vst [vmem:[#allocation2 + $0x28] sm:$0xff] %v834
      %843 = vst [vmem:[#allocation2 + $0x30] sm:$0xff] %v835
      %844 = vst [vmem:[#allocation2 + $0x38] sm:$0xff] %v836
      %s845 = scalar_lea.vmem %s191, 160
      %v846 = vld [vmem:[%s845] sm:$0xff]
      %v847 = vld [vmem:[%s845 + $0x10] sm:$0xff]
      %v848 = vld [vmem:[%s845 + $0x20] sm:$0xff]
      %v849 = vld [vmem:[%s845 + $0x30] sm:$0xff]
      %v850 = vld [vmem:[%s845 + $0x40] sm:$0xff]
      %v851 = vld [vmem:[%s845 + $0x50] sm:$0xff]
      %v852 = vld [vmem:[%s845 + $0x60] sm:$0xff]
      %v853 = vld [vmem:[%s845 + $0x70] sm:$0xff]
      %v854 = vld [vmem:[#allocation2] sm:$0xff]
      %v855 = vld [vmem:[#allocation2 + $0x8] sm:$0xff]
      %v856 = vld [vmem:[#allocation2 + $0x10] sm:$0xff]
      %v857 = vld [vmem:[#allocation2 + $0x18] sm:$0xff]
      %v858 = vld [vmem:[#allocation2 + $0x20] sm:$0xff]
      %v859 = vld [vmem:[#allocation2 + $0x28] sm:$0xff]
      %v860 = vld [vmem:[#allocation2 + $0x30] sm:$0xff]
      %v861 = vld [vmem:[#allocation2 + $0x38] sm:$0xff]
      %s862 = scalar_lea.vmem %s1, 896
      %v863 = vld [vmem:[%s862] sm:$0xff]
      %v864 = vld [vmem:[%s862 + $0x8] sm:$0xff]
      %v865 = vld [vmem:[%s862 + $0x10] sm:$0xff]
      %v866 = vld [vmem:[%s862 + $0x18] sm:$0xff]
      %v867 = vld [vmem:[%s862 + $0x20] sm:$0xff]
      %v868 = vld [vmem:[%s862 + $0x28] sm:$0xff]
      %v869 = vld [vmem:[%s862 + $0x30] sm:$0xff]
      %v870 = vld [vmem:[%s862 + $0x38] sm:$0xff]
      %v871 = vld [vmem:[%s862 + $0x40] sm:$0xff]
      %v872 = vld [vmem:[%s862 + $0x48] sm:$0xff]
      %v873 = vld [vmem:[%s862 + $0x50] sm:$0xff]
      %v874 = vld [vmem:[%s862 + $0x58] sm:$0xff]
      %v875 = vld [vmem:[%s862 + $0x60] sm:$0xff]
      %v876 = vld [vmem:[%s862 + $0x68] sm:$0xff]
      %v877 = vld [vmem:[%s862 + $0x70] sm:$0xff]
      %v878 = vld [vmem:[%s862 + $0x78] sm:$0xff]
      %879 = vmatpush.msra.mxu0 %v878
      %880 = vmatpush.msra.mxu0 %v877
      %881 = vmatpush.msra.mxu0 %v876
      %882 = vmatpush.msra.mxu0 %v875
      %883 = vmatpush.msra.mxu0 %v874
      %884 = vmatpush.msra.mxu0 %v873
      %885 = vmatpush.msra.mxu0 %v872
      %886 = vmatpush.msra.mxu0 %v871
      %887 = vmatpush.msra.mxu0 %v870
      %888 = vmatpush.msra.mxu0 %v869
      %889 = vmatpush.msra.mxu0 %v868
      %890 = vmatpush.msra.mxu0 %v867
      %891 = vmatpush.msra.mxu0 %v866
      %892 = vmatpush.msra.mxu0 %v865
      %893 = vmatpush.msra.mxu0 %v864
      %894 = vmatpush.msra.mxu0 %v863
      %895 = vmatmul.f32.gmra.mxu0 %v846
      %v896 = vpop.f32.mrf.mxu0
      %v897 = vadd.f32 0.0, %v896
      %898 = vmatmul.f32.gmra.mxu0 %v847
      %v899 = vpop.f32.mrf.mxu0
      %v900 = vadd.f32 0.0, %v899
      %901 = vmatmul.f32.gmra.mxu0 %v848
      %v902 = vpop.f32.mrf.mxu0
      %v903 = vadd.f32 0.0, %v902
      %904 = vmatmul.f32.gmra.mxu0 %v849
      %v905 = vpop.f32.mrf.mxu0
      %v906 = vadd.f32 0.0, %v905
      %907 = vmatmul.f32.gmra.mxu0 %v850
      %v908 = vpop.f32.mrf.mxu0
      %v909 = vadd.f32 0.0, %v908
      %910 = vmatmul.f32.gmra.mxu0 %v851
      %v911 = vpop.f32.mrf.mxu0
      %v912 = vadd.f32 0.0, %v911
      %913 = vmatmul.f32.gmra.mxu0 %v852
      %v914 = vpop.f32.mrf.mxu0
      %v915 = vadd.f32 0.0, %v914
      %916 = vmatmul.f32.gmra.mxu0 %v853
      %v917 = vpop.f32.mrf.mxu0
      %v918 = vadd.f32 0.0, %v917
      %919 = vdwg.mxu0
      %v920 = vadd.f32 %v854, %v897
      %v921 = vadd.f32 %v855, %v900
      %v922 = vadd.f32 %v856, %v903
      %v923 = vadd.f32 %v857, %v906
      %v924 = vadd.f32 %v858, %v909
      %v925 = vadd.f32 %v859, %v912
      %v926 = vadd.f32 %v860, %v915
      %v927 = vadd.f32 %v861, %v918
      %928 = vst [vmem:[#allocation2] sm:$0xff] %v920
      %929 = vst [vmem:[#allocation2 + $0x8] sm:$0xff] %v921
      %930 = vst [vmem:[#allocation2 + $0x10] sm:$0xff] %v922
      %931 = vst [vmem:[#allocation2 + $0x18] sm:$0xff] %v923
      %932 = vst [vmem:[#allocation2 + $0x20] sm:$0xff] %v924
      %933 = vst [vmem:[#allocation2 + $0x28] sm:$0xff] %v925
      %934 = vst [vmem:[#allocation2 + $0x30] sm:$0xff] %v926
      %935 = vst [vmem:[#allocation2 + $0x38] sm:$0xff] %v927
      %v936 = vld [vmem:[%s754 + $0x1] sm:$0xff]
      %v937 = vld [vmem:[%s754 + $0x11] sm:$0xff]
      %v938 = vld [vmem:[%s754 + $0x21] sm:$0xff]
      %v939 = vld [vmem:[%s754 + $0x31] sm:$0xff]
      %v940 = vld [vmem:[%s754 + $0x41] sm:$0xff]
      %v941 = vld [vmem:[%s754 + $0x51] sm:$0xff]
      %v942 = vld [vmem:[%s754 + $0x61] sm:$0xff]
      %v943 = vld [vmem:[%s754 + $0x71] sm:$0xff]
      %v944 = vld [vmem:[#allocation2] sm:$0xff]
      %v945 = vld [vmem:[#allocation2 + $0x8] sm:$0xff]
      %v946 = vld [vmem:[#allocation2 + $0x10] sm:$0xff]
      %v947 = vld [vmem:[#allocation2 + $0x18] sm:$0xff]
      %v948 = vld [vmem:[#allocation2 + $0x20] sm:$0xff]
      %v949 = vld [vmem:[#allocation2 + $0x28] sm:$0xff]
      %v950 = vld [vmem:[#allocation2 + $0x30] sm:$0xff]
      %v951 = vld [vmem:[#allocation2 + $0x38] sm:$0xff]
      %s952 = scalar_lea.vmem %s1, 1024
      %v953 = vld [vmem:[%s952] sm:$0xff]
      %v954 = vld [vmem:[%s952 + $0x8] sm:$0xff]
      %v955 = vld [vmem:[%s952 + $0x10] sm:$0xff]
      %v956 = vld [vmem:[%s952 + $0x18] sm:$0xff]
      %v957 = vld [vmem:[%s952 + $0x20] sm:$0xff]
      %v958 = vld [vmem:[%s952 + $0x28] sm:$0xff]
      %v959 = vld [vmem:[%s952 + $0x30] sm:$0xff]
      %v960 = vld [vmem:[%s952 + $0x38] sm:$0xff]
      %v961 = vld [vmem:[%s952 + $0x40] sm:$0xff]
      %v962 = vld [vmem:[%s952 + $0x48] sm:$0xff]
      %v963 = vld [vmem:[%s952 + $0x50] sm:$0xff]
      %v964 = vld [vmem:[%s952 + $0x58] sm:$0xff]
      %v965 = vld [vmem:[%s952 + $0x60] sm:$0xff]
      %v966 = vld [vmem:[%s952 + $0x68] sm:$0xff]
      %v967 = vld [vmem:[%s952 + $0x70] sm:$0xff]
      %v968 = vld [vmem:[%s952 + $0x78] sm:$0xff]
      %969 = vmatpush.msra.mxu0 %v968
      %970 = vmatpush.msra.mxu0 %v967
      %971 = vmatpush.msra.mxu0 %v966
      %972 = vmatpush.msra.mxu0 %v965
      %973 = vmatpush.msra.mxu0 %v964
      %974 = vmatpush.msra.mxu0 %v963
      %975 = vmatpush.msra.mxu0 %v962
      %976 = vmatpush.msra.mxu0 %v961
      %977 = vmatpush.msra.mxu0 %v960
      %978 = vmatpush.msra.mxu0 %v959
      %979 = vmatpush.msra.mxu0 %v958
      %980 = vmatpush.msra.mxu0 %v957
      %981 = vmatpush.msra.mxu0 %v956
      %982 = vmatpush.msra.mxu0 %v955
      %983 = vmatpush.msra.mxu0 %v954
      %984 = vmatpush.msra.mxu0 %v953
      %985 = vmatmul.f32.gmra.mxu0 %v936
      %v986 = vpop.f32.mrf.mxu0
      %v987 = vadd.f32 0.0, %v986
      %988 = vmatmul.f32.gmra.mxu0 %v937
      %v989 = vpop.f32.mrf.mxu0
      %v990 = vadd.f32 0.0, %v989
      %991 = vmatmul.f32.gmra.mxu0 %v938
      %v992 = vpop.f32.mrf.mxu0
      %v993 = vadd.f32 0.0, %v992
      %994 = vmatmul.f32.gmra.mxu0 %v939
      %v995 = vpop.f32.mrf.mxu0
      %v996 = vadd.f32 0.0, %v995
      %997 = vmatmul.f32.gmra.mxu0 %v940
      %v998 = vpop.f32.mrf.mxu0
      %v999 = vadd.f32 0.0, %v998
      %1000 = vmatmul.f32.gmra.mxu0 %v941
      %v1001 = vpop.f32.mrf.mxu0
      %v1002 = vadd.f32 0.0, %v1001
      %1003 = vmatmul.f32.gmra.mxu0 %v942
      %v1004 = vpop.f32.mrf.mxu0
      %v1005 = vadd.f32 0.0, %v1004
      %1006 = vmatmul.f32.gmra.mxu0 %v943
      %v1007 = vpop.f32.mrf.mxu0
      %v1008 = vadd.f32 0.0, %v1007
      %1009 = vdwg.mxu0
      %v1010 = vadd.f32 %v944, %v987
      %v1011 = vadd.f32 %v945, %v990
      %v1012 = vadd.f32 %v946, %v993
      %v1013 = vadd.f32 %v947, %v996
      %v1014 = vadd.f32 %v948, %v999
      %v1015 = vadd.f32 %v949, %v1002
      %v1016 = vadd.f32 %v950, %v1005
      %v1017 = vadd.f32 %v951, %v1008
      %1018 = vst [vmem:[#allocation2] sm:$0xff] %v1010
      %1019 = vst [vmem:[#allocation2 + $0x8] sm:$0xff] %v1011
      %1020 = vst [vmem:[#allocation2 + $0x10] sm:$0xff] %v1012
      %1021 = vst [vmem:[#allocation2 + $0x18] sm:$0xff] %v1013
      %1022 = vst [vmem:[#allocation2 + $0x20] sm:$0xff] %v1014
      %1023 = vst [vmem:[#allocation2 + $0x28] sm:$0xff] %v1015
      %1024 = vst [vmem:[#allocation2 + $0x30] sm:$0xff] %v1016
      %1025 = vst [vmem:[#allocation2 + $0x38] sm:$0xff] %v1017
      %v1026 = vld [vmem:[#allocation2] sm:$0xff]
      %v1027 = vld [vmem:[#allocation2 + $0x8] sm:$0xff]
      %v1028 = vld [vmem:[#allocation2 + $0x10] sm:$0xff]
      %v1029 = vld [vmem:[#allocation2 + $0x18] sm:$0xff]
      %v1030 = vld [vmem:[#allocation2 + $0x20] sm:$0xff]
      %v1031 = vld [vmem:[#allocation2 + $0x28] sm:$0xff]
      %v1032 = vld [vmem:[#allocation2 + $0x30] sm:$0xff]
      %v1033 = vld [vmem:[#allocation2 + $0x38] sm:$0xff]
      %1034 = vst [vmem:[%s197] sm:$0xff] %v1026
      %1035 = vst [vmem:[%s197 + $0x8] sm:$0xff] %v1027
      %1036 = vst [vmem:[%s197 + $0x10] sm:$0xff] %v1028
      %1037 = vst [vmem:[%s197 + $0x18] sm:$0xff] %v1029
      %1038 = vst [vmem:[%s197 + $0x20] sm:$0xff] %v1030
      %1039 = vst [vmem:[%s197 + $0x28] sm:$0xff] %v1031
      %1040 = vst [vmem:[%s197 + $0x30] sm:$0xff] %v1032
      %1041 = vst [vmem:[%s197 + $0x38] sm:$0xff] %v1033
      %v1042 = vld [vmem:[%s3] sm:$0x1]
      %v1043 = vadd.f32 %v1026, %v1027
      %v1044 = vadd.f32 %v1043, %v1028
      %v1045 = vadd.f32 %v1044, %v1029
      %v1046 = vadd.f32 %v1045, %v1030
      %v1047 = vadd.f32 %v1046, %v1031
      %v1048 = vadd.f32 %v1047, %v1032
      %v1049 = vadd.f32 %v1048, %v1033
      %v1050 = vrot.slane %v1049, 4
      %v1051 = vadd.f32 %v1049, %v1050
      %v1052 = vrot.slane %v1051, 2
      %v1053 = vadd.f32 %v1051, %v1052
      %v1054 = vrot.slane %v1053, 1
      %v1055 = vadd.f32 %v1053, %v1054
      %v1056 = vadd.f32 %v1042, %v1055
      %1057 = vst [vmem:[%s3] sm:$0x1] %v1056
      %v1058 = vld [vmem:[%s4] sm:$0x1]
      %v1059 = vmul.f32 %v1026, %v1026
      %v1060 = vmul.f32 %v1027, %v1027
      %v1061 = vmul.f32 %v1028, %v1028
      %v1062 = vmul.f32 %v1029, %v1029
      %v1063 = vmul.f32 %v1030, %v1030
      %v1064 = vmul.f32 %v1031, %v1031
      %v1065 = vmul.f32 %v1032, %v1032
      %v1066 = vmul.f32 %v1033, %v1033
      %v1067 = vadd.f32 %v1059, %v1060
      %v1068 = vadd.f32 %v1067, %v1061
      %v1069 = vadd.f32 %v1068, %v1062
      %v1070 = vadd.f32 %v1069, %v1063
      %v1071 = vadd.f32 %v1070, %v1064
      %v1072 = vadd.f32 %v1071, %v1065
      %v1073 = vadd.f32 %v1072, %v1066
      %v1074 = vrot.slane %v1073, 4
      %v1075 = vadd.f32 %v1073, %v1074
      %v1076 = vrot.slane %v1075, 2
      %v1077 = vadd.f32 %v1075, %v1076
      %v1078 = vrot.slane %v1077, 1
      %v1079 = vadd.f32 %v1077, %v1078
      %v1080 = vadd.f32 %v1058, %v1079
      %1081 = vst [vmem:[%s4] sm:$0x1] %v1080
      %p1082 = scmp.lt.s32.totalorder %s16, 1
      %s1083 = scalar_select %p1082, %s16, 1
      %s1084 = smul.addr %s1083, 8
      %s1085 = smul.addr %s1084, 8
      %s1086 = scalar_lea.vmem %s2, %s1085
      // Predicated region
      $region33: #{residual_forward.3} parent=27 // pred_check
        %p1087 = pneg %p81
      $region34: #{residual_forward.3} parent=27 // pred_check_branch
        %1089 = sbr.rel (%p1087) target = $region36
      $region35: #{residual_forward.3} parent=27 // pred_region
        _
      $region36: #{residual_forward.3} parent=27 // pred_fallthru
        _
      // Predicated region
      $region37: #{residual_forward.3} parent=27 // pred_check
        %p1090 = pneg %p102
      $region38: #{residual_forward.3} parent=27 // pred_check_branch
        %1092 = sbr.rel (%p1090) target = $region40
      $region39: #{residual_forward.3} parent=27 // pred_region
        _
      $region40: #{residual_forward.3} parent=27 // pred_fallthru
        _
      // Predicated region
      $region41: #{residual_forward.3} parent=27 // pred_check
        %p1093 = pneg %p123
      $region42: #{residual_forward.3} parent=27 // pred_check_branch
        %1095 = sbr.rel (%p1093) target = $region44
      $region43: #{residual_forward.3} parent=27 // pred_region
        _
      $region44: #{residual_forward.3} parent=27 // pred_fallthru
        _
      // Predicated region
      $region45: #{residual_forward.3} parent=27 // pred_check
        %p1096 = pneg %p102
      $region46: #{residual_forward.3} parent=27 // pred_check_branch
        %1098 = sbr.rel (%p1096) target = $region48
      $region47: #{residual_forward.3} parent=27 // pred_region
        _
      $region48: #{residual_forward.3} parent=27 // pred_fallthru
        _
      // Predicated region
      $region49: #{residual_forward.3} parent=27 // pred_check
        %p1099 = pneg %p123
      $region50: #{residual_forward.3} parent=27 // pred_check_branch
        %1101 = sbr.rel (%p1099) target = $region52
      $region51: #{residual_forward.3} parent=27 // pred_region
        _
      $region52: #{residual_forward.3} parent=27 // pred_fallthru
        _
    $region28: #{residual_forward.3} parent=5 // pred_fallthru
      _
    %p1102 = scmp.le.s32.totalorder 2, %s11
    // Predicated region
    $region53: #{residual_forward.3} parent=5 // pred_check
      %p1103 = pneg %p1102
    $region54: #{residual_forward.3} parent=5 // pred_check_branch
      %1105 = sbr.rel (%p1103) target = $region56
    $region55: #{residual_forward.3} parent=5 // pred_region
      %s1106 = ssub.s32 %s11, 2
      // Predicated region
      $region57: #{residual_forward.3} parent=55 // pred_check
        %p1107 = pneg %p87
      $region58: #{residual_forward.3} parent=55 // pred_check_branch
        %1109 = sbr.rel (%p1107) target = $region60
      $region59: #{residual_forward.3} parent=55 // pred_region
        %p1110 = scmp.lt.s32.totalorder %s17, 1
        %s1111 = scalar_select %p1110, %s17, 1
        %s1112 = smul.addr %s1111, 8
        %s1113 = smul.addr %s1112, 8
        %s1114 = scalar_lea.vmem %s2, %s1113
      $region60: #{residual_forward.3} parent=55 // pred_fallthru
        _
    $region56: #{residual_forward.3} parent=5 // pred_fallthru
      _
  $region6: #{residual_forward.3} parent=0 // loop_footer
    %s15 = sadd.s32 1, %s11
  $region7: #{residual_forward.3} parent=0 // loop_footer_branch
    %10 = sbr.rel target = $region3
  $region8: #{residual_forward.3} parent=0 // loop_exit
    _

// kernel: residual_forward.4
$region0: #{residual_forward.4}
  #allocation0 [shape = 'u32[]', space=smem, size = 0x4, offset = 0x4, fixed_abs, tag = 'smem constant byte address 0x4 - core index']
  #allocation1 [shape = 'u32[72,128]{1,0:T(1,128)}', space=vmem, size = 0x9000, scoped, tag = 'internal scratch']
  #allocation2 [shape = 'f32[64,128]{1,0:T(8,128)}', space=vmem, size = 0x8000, scoped, tag = 'scratch operand']
  #allocation3 [shape = 'f32[10,10,128]{2,1,0:T(8,128)}', space=vmem, size = 0x14000, scoped, tag = 'scratch operand']
  %s0 = inlined_call_operand.vmem [shape: f32[2,64,128], index: 0, kind: input, shape index: {}]
  %s1 = inlined_call_operand.vmem [shape: f32[1,128], index: 1, kind: input, shape index: {}]
  %s2 = inlined_call_operand.vmem [shape: f32[1,128], index: 2, kind: input, shape index: {}]
  %s3 = inlined_call_operand.vmem [shape: f32[1,128], index: 3, kind: input, shape index: {}]
  %s4 = inlined_call_operand.vmem [shape: f32[1,128], index: 4, kind: input, shape index: {}]
  %s5 = inlined_call_operand.vmem [shape: f32[9,128,128], index: 5, kind: input, shape index: {}]
  %s6 = inlined_call_operand.vmem [shape: f32[2,64,128], index: 6, kind: output, shape index: {0}]
  %s7 = inlined_call_operand.vmem [shape: f32[1,128], index: 7, kind: output, shape index: {1}]
  %s8 = inlined_call_operand.vmem [shape: f32[1,128], index: 8, kind: output, shape index: {2}]
  %9 = xla_tuple %s6, %s7, %s8
  %s10 = sld [smem:[#allocation0]]
  $region77: #{residual_forward.4} parent=0
    _
  %s12 = ssub.s32 1, %s10
  %s13 = scalar_select 0, %s12, %s10
  loop: start=0, step=1, limit=4
  $region2: #{residual_forward.4} parent=0 // loop_pre_header
    _
  $region3: #{residual_forward.4} parent=0 // loop_header
    %s15 = sphi 0, %s19
    %p16 = scmp.ge.s32.totalorder %s15, 4
    %s25 = sphi 0, %s27
    %s28 = sphi 0, %s25
    %s29 = sphi 0, %s28
    %s45 = sphi 0, %s29
    %s49 = sphi 0, %s49
    %s51 = sphi 0, %s49
    %s52 = sphi 0, %s51
    %s66 = sphi 0, %s52
    %s70 = sphi 0, %s70
    %s72 = sphi 0, %s70
    %s73 = sphi 0, %s72
    %s87 = sphi 0, %s73
    %s91 = sphi 0, %s91
    %s93 = sphi 0, %s91
    %s94 = sphi 0, %s93
    %s108 = sphi 0, %s94
    %s112 = sphi 0, %s112
    %s114 = sphi 0, %s112
    %s115 = sphi 0, %s114
    %s129 = sphi 0, %s115
    %s133 = sphi 0, %s133
    %s135 = sphi 0, %s133
    %s136 = sphi 0, %s135
    %s150 = sphi 0, %s136
    %s156 = sphi 0, %s158
    %s159 = sphi 0, %s156
    %s160 = sphi 0, %s159
    %s176 = sphi 0, %s160
    %s180 = sphi 0, %s180
    %s182 = sphi 0, %s180
    %s183 = sphi 0, %s182
    %s197 = sphi 0, %s183
    %s201 = sphi 0, %s201
    %s203 = sphi 0, %s201
    %s204 = sphi 0, %s203
    %s218 = sphi 0, %s204
  $region4: #{residual_forward.4} parent=0 // loop_header_branch
    %18 = sbr.rel (%p16) target = $region8
  $region5: #{residual_forward.4} parent=0 // loop_body
    %s20 = ssub.s32 %s15, 1
    %s21 = ssub.s32 %s15, 2
    %s22 = sadd.s32 %s15, 1
    %s23 = ssub.s32 %s15, %s22
    %p24 = scmp.eq.s32.totalorder %s23, 0
    %s26 = sadd.s32 %s25, 1
    %s27 = scalar_select %p24, %s25, %s26
    %p30 = pneg %p24
    %p31 = scmp.eq.s32.totalorder %s15, 1
    %p32 = por %p30, %p31
    %p33 = scmp.ne.s32.totalorder %s25, %s28
    %p34 = scmp.eq.s32.totalorder %s15, 0
    %p35 = por %p33, %p34
    %p36 = scmp.ne.s32.totalorder %s25, %s28
    %p37 = scmp.eq.s32.totalorder %s20, 1
    %p38 = por %p36, %p37
    %p39 = scmp.ne.s32.totalorder %s28, %s29
    %p40 = scmp.eq.s32.totalorder %s20, 0
    %p41 = por %p39, %p40
    %p42 = scmp.ne.s32.totalorder %s28, %s29
    %p43 = scmp.eq.s32.totalorder %s21, 1
    %p44 = por %p42, %p43
    %p46 = scmp.ne.s32.totalorder %s29, %s45
    %p47 = scmp.eq.s32.totalorder %s21, 0
    %p48 = por %p46, %p47
    %s50 = sadd.s32 %s49, 1
    %p53 = scmp.eq.s32.totalorder %s15, 1
    %p54 = scmp.ne.s32.totalorder %s49, %s51
    %p55 = scmp.eq.s32.totalorder %s15, 0
    %p56 = por %p54, %p55
    %p57 = scmp.ne.s32.totalorder %s49, %s51
    %p58 = scmp.eq.s32.totalorder %s20, 1
    %p59 = por %p57, %p58
    %p60 = scmp.ne.s32.totalorder %s51, %s52
    %p61 = scmp.eq.s32.totalorder %s20, 0
    %p62 = por %p60, %p61
    %p63 = scmp.ne.s32.totalorder %s51, %s52
    %p64 = scmp.eq.s32.totalorder %s21, 1
    %p65 = por %p63, %p64
    %p67 = scmp.ne.s32.totalorder %s52, %s66
    %p68 = scmp.eq.s32.totalorder %s21, 0
    %p69 = por %p67, %p68
    %s71 = sadd.s32 %s70, 1
    %p74 = scmp.eq.s32.totalorder %s15, 1
    %p75 = scmp.ne.s32.totalorder %s70, %s72
    %p76 = scmp.eq.s32.totalorder %s15, 0
    %p77 = por %p75, %p76
    %p78 = scmp.ne.s32.totalorder %s70, %s72
    %p79 = scmp.eq.s32.totalorder %s20, 1
    %p80 = por %p78, %p79
    %p81 = scmp.ne.s32.totalorder %s72, %s73
    %p82 = scmp.eq.s32.totalorder %s20, 0
    %p83 = por %p81, %p82
    %p84 = scmp.ne.s32.totalorder %s72, %s73
    %p85 = scmp.eq.s32.totalorder %s21, 1
    %p86 = por %p84, %p85
    %p88 = scmp.ne.s32.totalorder %s73, %s87
    %p89 = scmp.eq.s32.totalorder %s21, 0
    %p90 = por %p88, %p89
    %s92 = sadd.s32 %s91, 1
    %p95 = scmp.eq.s32.totalorder %s15, 1
    %p96 = scmp.ne.s32.totalorder %s91, %s93
    %p97 = scmp.eq.s32.totalorder %s15, 0
    %p98 = por %p96, %p97
    %p99 = scmp.ne.s32.totalorder %s91, %s93
    %p100 = scmp.eq.s32.totalorder %s20, 1
    %p101 = por %p99, %p100
    %p102 = scmp.ne.s32.totalorder %s93, %s94
    %p103 = scmp.eq.s32.totalorder %s20, 0
    %p104 = por %p102, %p103
    %p105 = scmp.ne.s32.totalorder %s93, %s94
    %p106 = scmp.eq.s32.totalorder %s21, 1
    %p107 = por %p105, %p106
    %p109 = scmp.ne.s32.totalorder %s94, %s108
    %p110 = scmp.eq.s32.totalorder %s21, 0
    %p111 = por %p109, %p110
    %s113 = sadd.s32 %s112, 1
    %p116 = scmp.eq.s32.totalorder %s15, 1
    %p117 = scmp.ne.s32.totalorder %s112, %s114
    %p118 = scmp.eq.s32.totalorder %s15, 0
    %p119 = por %p117, %p118
    %p120 = scmp.ne.s32.totalorder %s112, %s114
    %p121 = scmp.eq.s32.totalorder %s20, 1
    %p122 = por %p120, %p121
    %p123 = scmp.ne.s32.totalorder %s114, %s115
    %p124 = scmp.eq.s32.totalorder %s20, 0
    %p125 = por %p123, %p124
    %p126 = scmp.ne.s32.totalorder %s114, %s115
    %p127 = scmp.eq.s32.totalorder %s21, 1
    %p128 = por %p126, %p127
    %p130 = scmp.ne.s32.totalorder %s115, %s129
    %p131 = scmp.eq.s32.totalorder %s21, 0
    %p132 = por %p130, %p131
    %s134 = sadd.s32 %s133, 1
    %p137 = scmp.eq.s32.totalorder %s15, 1
    %p138 = scmp.ne.s32.totalorder %s133, %s135
    %p139 = scmp.eq.s32.totalorder %s15, 0
    %p140 = por %p138, %p139
    %p141 = scmp.ne.s32.totalorder %s133, %s135
    %p142 = scmp.eq.s32.totalorder %s20, 1
    %p143 = por %p141, %p142
    %p144 = scmp.ne.s32.totalorder %s135, %s136
    %p145 = scmp.eq.s32.totalorder %s20, 0
    %p146 = por %p144, %p145
    %p147 = scmp.ne.s32.totalorder %s135, %s136
    %p148 = scmp.eq.s32.totalorder %s21, 1
    %p149 = por %p147, %p148
    %p151 = scmp.ne.s32.totalorder %s136, %s150
    %p152 = scmp.eq.s32.totalorder %s21, 0
    %p153 = por %p151, %p152
    %s154 = ssub.s32 %s15, %s22
    %p155 = scmp.eq.s32.totalorder %s154, 0
    %s157 = sadd.s32 %s156, 1
    %s158 = scalar_select %p155, %s156, %s157
    %p161 = pneg %p155
    %p162 = scmp.eq.s32.totalorder %s15, 1
    %p163 = por %p161, %p162
    %p164 = scmp.ne.s32.totalorder %s156, %s159
    %p165 = scmp.eq.s32.totalorder %s15, 0
    %p166 = por %p164, %p165
    %p167 = scmp.ne.s32.totalorder %s156, %s159
    %p168 = scmp.eq.s32.totalorder %s20, 1
    %p169 = por %p167, %p168
    %p170 = scmp.ne.s32.totalorder %s159, %s160
    %p171 = scmp.eq.s32.totalorder %s20, 0
    %p172 = por %p170, %p171
    %p173 = scmp.ne.s32.totalorder %s159, %s160
    %p174 = scmp.eq.s32.totalorder %s21, 1
    %p175 = por %p173, %p174
    %p177 = scmp.ne.s32.totalorder %s160, %s176
    %p178 = scmp.eq.s32.totalorder %s21, 0
    %p179 = por %p177, %p178
    %s181 = sadd.s32 %s180, 1
    %p184 = scmp.eq.s32.totalorder %s15, 1
    %p185 = scmp.ne.s32.totalorder %s180, %s182
    %p186 = scmp.eq.s32.totalorder %s15, 0
    %p187 = por %p185, %p186
    %p188 = scmp.ne.s32.totalorder %s180, %s182
    %p189 = scmp.eq.s32.totalorder %s20, 1
    %p190 = por %p188, %p189
    %p191 = scmp.ne.s32.totalorder %s182, %s183
    %p192 = scmp.eq.s32.totalorder %s20, 0
    %p193 = por %p191, %p192
    %p194 = scmp.ne.s32.totalorder %s182, %s183
    %p195 = scmp.eq.s32.totalorder %s21, 1
    %p196 = por %p194, %p195
    %p198 = scmp.ne.s32.totalorder %s183, %s197
    %p199 = scmp.eq.s32.totalorder %s21, 0
    %p200 = por %p198, %p199
    %s202 = sadd.s32 %s201, 1
    %p205 = scmp.eq.s32.totalorder %s15, 1
    %p206 = scmp.ne.s32.totalorder %s201, %s203
    %p207 = scmp.eq.s32.totalorder %s15, 0
    %p208 = por %p206, %p207
    %p209 = scmp.ne.s32.totalorder %s201, %s203
    %p210 = scmp.eq.s32.totalorder %s20, 1
    %p211 = por %p209, %p210
    %p212 = scmp.ne.s32.totalorder %s203, %s204
    %p213 = scmp.eq.s32.totalorder %s20, 0
    %p214 = por %p212, %p213
    %p215 = scmp.ne.s32.totalorder %s203, %s204
    %p216 = scmp.eq.s32.totalorder %s21, 1
    %p217 = por %p215, %p216
    %p219 = scmp.ne.s32.totalorder %s204, %s218
    %p220 = scmp.eq.s32.totalorder %s21, 0
    %p221 = por %p219, %p220
    %p222 = scmp.le.s32.totalorder 1, %s15
    %p223 = scmp.lt.s32.totalorder %s15, 3
    %p224 = pnand %p222, %p223
    %p225 = pneg %p224
    // Predicated region
    $region9: #{residual_forward.4} parent=5 // pred_check
      _
    $region10: #{residual_forward.4} parent=5 // pred_check_branch
      %227 = sbr.rel (%p224) target = $region12
    $region11: #{residual_forward.4} parent=5 // pred_region
      %s228 = ssub.s32 %s15, 1
      // Predicated region
      $region13: #{residual_forward.4} parent=11 // pred_check
        %p229 = pneg %p62
      $region14: #{residual_forward.4} parent=11 // pred_check_branch
        %231 = sbr.rel (%p229) target = $region16
      $region15: #{residual_forward.4} parent=11 // pred_region
        _
      $region16: #{residual_forward.4} parent=11 // pred_fallthru
        _
      // Predicated region
      $region17: #{residual_forward.4} parent=11 // pred_check
        %p232 = pneg %p83
      $region18: #{residual_forward.4} parent=11 // pred_check_branch
        %234 = sbr.rel (%p232) target = $region20
      $region19: #{residual_forward.4} parent=11 // pred_region
        _
      $region20: #{residual_forward.4} parent=11 // pred_fallthru
        _
      // Predicated region
      $region21: #{residual_forward.4} parent=11 // pred_check
        %p235 = pneg %p104
      $region22: #{residual_forward.4} parent=11 // pred_check_branch
        %237 = sbr.rel (%p235) target = $region24
      $region23: #{residual_forward.4} parent=11 // pred_region
        _
      $region24: #{residual_forward.4} parent=11 // pred_fallthru
        _
      // Predicated region
      $region25: #{residual_forward.4} parent=11 // pred_check
        %p238 = pneg %p125
      $region26: #{residual_forward.4} parent=11 // pred_check_branch
        %240 = sbr.rel (%p238) target = $region28
      $region27: #{residual_forward.4} parent=11 // pred_region
        _
      $region28: #{residual_forward.4} parent=11 // pred_fallthru
        _
      // Predicated region
      $region29: #{residual_forward.4} parent=11 // pred_check
        %p241 = pneg %p146
      $region30: #{residual_forward.4} parent=11 // pred_check_branch
        %243 = sbr.rel (%p241) target = $region32
      $region31: #{residual_forward.4} parent=11 // pred_region
        _
      $region32: #{residual_forward.4} parent=11 // pred_fallthru
        _
    $region12: #{residual_forward.4} parent=5 // pred_fallthru
      _
    %p244 = scmp.lt.s32.totalorder %s15, 2
    // Predicated region
    $region33: #{residual_forward.4} parent=5 // pred_check
      %p245 = pneg %p244
    $region34: #{residual_forward.4} parent=5 // pred_check_branch
      %247 = sbr.rel (%p245) target = $region36
    $region35: #{residual_forward.4} parent=5 // pred_region
      // Predicated region
      $region37: #{residual_forward.4} parent=35 // pred_check
        %p248 = pneg %p35
      $region38: #{residual_forward.4} parent=35 // pred_check_branch
        %250 = sbr.rel (%p248) target = $region40
      $region39: #{residual_forward.4} parent=35 // pred_region
        %p251 = scmp.lt.s32.totalorder %s15, 1
        %s252 = scalar_select %p251, %s15, 1
        %s253 = smul.addr %s252, 8
        %s254 = smul.addr %s253, 8
        %s255 = scalar_lea.vmem %s0, %s254
      $region40: #{residual_forward.4} parent=35 // pred_fallthru
        _
    $region36: #{residual_forward.4} parent=5 // pred_fallthru
      _
    %p256 = scmp.le.s32.totalorder 1, %s15
    %p257 = scmp.lt.s32.totalorder %s15, 3
    %p258 = pnand %p256, %p257
    %p259 = pneg %p258
    // Predicated region
    $region41: #{residual_forward.4} parent=5 // pred_check
      _
    $region42: #{residual_forward.4} parent=5 // pred_check_branch
      %261 = sbr.rel (%p258) target = $region44
    $region43: #{residual_forward.4} parent=5 // pred_region
      %s262 = ssub.s32 %s15, 1
      %p263 = scmp.lt.s32.totalorder %s20, 1
      %s264 = scalar_select %p263, %s20, 1
      %s265 = smul.addr %s264, 8
      %s266 = smul.addr %s265, 8
      %s267 = scalar_lea.vmem %s0, %s266
      %p268 = pneg %p41
      %p269 = pneg %p38
      %p270 = pneg %p62
      %p271 = pneg %p59
      %p272 = pneg %p83
      %p273 = pneg %p80
      %p274 = pneg %p104
      %p275 = pneg %p101
      %p276 = pneg %p125
      %p277 = pneg %p122
      %p278 = pneg %p146
      %p279 = pneg %p143
      %p280 = pneg %p172
      %p281 = pneg %p169
      %p282 = scmp.lt.s32.totalorder %s20, 1
      %s283 = scalar_select %p282, %s20, 1
      %s284 = smul.addr %s283, 8
      %s285 = smul.addr %s284, 8
      %s286 = scalar_lea.vmem %s6, %s285
      %p287 = pneg %p193
      %p288 = pneg %p190
      %p289 = pneg %p214
      %p290 = pneg %p211
      %p291 = scmp.lt.s32.totalorder %s20, 1
      %s292 = scalar_select %p291, %s20, 1
      %s293 = smul.addr %s292, 8
      %s294 = smul.addr %s293, 8
      %s295 = scalar_lea.vmem %s0, %s294
      %p296 = scmp.lt.s32.totalorder %s20, 1
      %s297 = scalar_select %p296, %s20, 1
      %s298 = smul.addr %s297, 8
      %s299 = smul.addr %s298, 8
      %s300 = scalar_lea.vmem %s6, %s299
      %p301 = scmp.eq.s32.totalorder %s20, 0
      // Predicated region
      $region45: #{residual_forward.4} parent=43 // pred_check
        %p302 = pneg %p301
      $region46: #{residual_forward.4} parent=43 // pred_check_branch
        %304 = sbr.rel (%p302) target = $region48
      $region47: #{residual_forward.4} parent=43 // pred_region
        %305 = vst [vmem:[%s7] sm:$0x1] 0.0
        %306 = vst [vmem:[%s8] sm:$0x1] 0.0
        %307 = vst [vmem:[#allocation3] sm:$0xff] 0.0
        %308 = vst [vmem:[#allocation3 + $0x8] sm:$0x3] 0.0
        %309 = vst [vmem:[#allocation3 + $0x10] sm:$0xff] 0.0
        %310 = vst [vmem:[#allocation3 + $0x18] sm:$0x3] 0.0
        %311 = vst [vmem:[#allocation3 + $0x20] sm:$0xff] 0.0
        %312 = vst [vmem:[#allocation3 + $0x28] sm:$0x3] 0.0
        %313 = vst [vmem:[#allocation3 + $0x30] sm:$0xff] 0.0
        %314 = vst [vmem:[#allocation3 + $0x38] sm:$0x3] 0.0
        %315 = vst [vmem:[#allocation3 + $0x40] sm:$0xff] 0.0
        %316 = vst [vmem:[#allocation3 + $0x48] sm:$0x3] 0.0
        %317 = vst [vmem:[#allocation3 + $0x50] sm:$0xff] 0.0
        %318 = vst [vmem:[#allocation3 + $0x58] sm:$0x3] 0.0
        %319 = vst [vmem:[#allocation3 + $0x60] sm:$0xff] 0.0
        %320 = vst [vmem:[#allocation3 + $0x68] sm:$0x3] 0.0
        %321 = vst [vmem:[#allocation3 + $0x70] sm:$0xff] 0.0
        %322 = vst [vmem:[#allocation3 + $0x78] sm:$0x3] 0.0
        %323 = vst [vmem:[#allocation3 + $0x80] sm:$0xff] 0.0
        %324 = vst [vmem:[#allocation3 + $0x88] sm:$0x3] 0.0
        %325 = vst [vmem:[#allocation3 + $0x90] sm:$0xff] 0.0
        %326 = vst [vmem:[#allocation3 + $0x98] sm:$0x3] 0.0
      $region48: #{residual_forward.4} parent=43 // pred_fallthru
        _
      %v327 = vld [vmem:[%s1] sm:$0x1]
      %v328 = vmul.f32 %v327, 0.0078125
      %v329 = vld [vmem:[%s2] sm:$0x1]
      %v330 = vmul.f32 %v329, 0.0078125
      %v331 = vmul.f32 %v328, %v328
      %v332 = vsub.f32 %v330, %v331
      %v333 = vld [vmem:[%s3] sm:$0x1]
      %v334 = vadd.f32 %v332, 1e-05
      %v335 = vrsqrt.pop %v334
      %v336 = vmul.f32 %v335, %v334
      %v337 = vmul.f32 %v336, %v335
      %v338 = vmul.f32 0.5, %v337
      %v339 = vsub.f32 1.5, %v338
      %v340 = vmul.f32 %v335, %v339
      %vm341 = vweird.f32 %v334
      %vm342 = vweird.f32 %v335
      %vm343 = vmor %vm341, %vm342
      %v344 = vsel %vm343, %v335, %v340
      %v345 = vmul.f32 %v333, %v344
      %v346 = vld [vmem:[%s4] sm:$0x1]
      %v347 = vmul.f32 %v328, %v345
      %v348 = vsub.f32 %v346, %v347
      %v349 = vld [vmem:[%s295] sm:$0xff]
      %v350 = vld [vmem:[%s295 + $0x8] sm:$0xff]
      %v351 = vld [vmem:[%s295 + $0x10] sm:$0xff]
      %v352 = vld [vmem:[%s295 + $0x18] sm:$0xff]
      %v353 = vld [vmem:[%s295 + $0x20] sm:$0xff]
      %v354 = vld [vmem:[%s295 + $0x28] sm:$0xff]
      %v355 = vld [vmem:[%s295 + $0x30] sm:$0xff]
      %v356 = vld [vmem:[%s295 + $0x38] sm:$0xff]
      %v358 = vperm.slane %v345, 0
      %v360 = vmul.f32 %v349, %v358
      %v361 = vmul.f32 %v350, %v358
      %v362 = vmul.f32 %v351, %v358
      %v363 = vmul.f32 %v352, %v358
      %v364 = vmul.f32 %v353, %v358
      %v365 = vmul.f32 %v354, %v358
      %v366 = vmul.f32 %v355, %v358
      %v367 = vmul.f32 %v356, %v358
      %v369 = vperm.slane %v348, 0
      %v371 = vadd.f32 %v360, %v369
      %v372 = vadd.f32 %v361, %v369
      %v373 = vadd.f32 %v362, %v369
      %v374 = vadd.f32 %v363, %v369
      %v375 = vadd.f32 %v364, %v369
      %v376 = vadd.f32 %v365, %v369
      %v377 = vadd.f32 %v366, %v369
      %v378 = vadd.f32 %v367, %v369
      %v379 = vmax.f32 %v371, 0.0
      %v380 = vmax.f32 %v372, 0.0
      %v381 = vmax.f32 %v373, 0.0
      %v382 = vmax.f32 %v374, 0.0
      %v383 = vmax.f32 %v375, 0.0
      %v384 = vmax.f32 %v376, 0.0
      %v385 = vmax.f32 %v377, 0.0
      %v386 = vmax.f32 %v378, 0.0
      %s387 = scalar_lea.vmem [#allocation3], 16
      %388 = vst [vmem:[%s387 + $0x1] sm:$0xff] %v379
      %389 = vst [vmem:[%s387 + $0x11] sm:$0xff] %v380
      %390 = vst [vmem:[%s387 + $0x21] sm:$0xff] %v381
      %391 = vst [vmem:[%s387 + $0x31] sm:$0xff] %v382
      %392 = vst [vmem:[%s387 + $0x41] sm:$0xff] %v383
      %393 = vst [vmem:[%s387 + $0x51] sm:$0xff] %v384
      %394 = vst [vmem:[%s387 + $0x61] sm:$0xff] %v385
      %395 = vst [vmem:[%s387 + $0x71] sm:$0xff] %v386
      %396 = vst [vmem:[#allocation2] sm:$0xff] 0.0
      %397 = vst [vmem:[#allocation2 + $0x8] sm:$0xff] 0.0
      %398 = vst [vmem:[#allocation2 + $0x10] sm:$0xff] 0.0
      %399 = vst [vmem:[#allocation2 + $0x18] sm:$0xff] 0.0
      %400 = vst [vmem:[#allocation2 + $0x20] sm:$0xff] 0.0
      %401 = vst [vmem:[#allocation2 + $0x28] sm:$0xff] 0.0
      %402 = vst [vmem:[#allocation2 + $0x30] sm:$0xff] 0.0
      %403 = vst [vmem:[#allocation2 + $0x38] sm:$0xff] 0.0
      %v404 = vld [vmem:[#allocation3] sm:$0xff]
      %v405 = vld [vmem:[#allocation3 + $0x10] sm:$0xff]
      %v406 = vld [vmem:[#allocation3 + $0x20] sm:$0xff]
      %v407 = vld [vmem:[#allocation3 + $0x30] sm:$0xff]
      %v408 = vld [vmem:[#allocation3 + $0x40] sm:$0xff]
      %v409 = vld [vmem:[#allocation3 + $0x50] sm:$0xff]
      %v410 = vld [vmem:[#allocation3 + $0x60] sm:$0xff]
      %v411 = vld [vmem:[#allocation3 + $0x70] sm:$0xff]
      %v412 = vld [vmem:[#allocation2] sm:$0xff]
      %v413 = vld [vmem:[#allocation2 + $0x8] sm:$0xff]
      %v414 = vld [vmem:[#allocation2 + $0x10] sm:$0xff]
      %v415 = vld [vmem:[#allocation2 + $0x18] sm:$0xff]
      %v416 = vld [vmem:[#allocation2 + $0x20] sm:$0xff]
      %v417 = vld [vmem:[#allocation2 + $0x28] sm:$0xff]
      %v418 = vld [vmem:[#allocation2 + $0x30] sm:$0xff]
      %v419 = vld [vmem:[#allocation2 + $0x38] sm:$0xff]
      %v420 = vld [vmem:[%s5] sm:$0xff]
      %v421 = vld [vmem:[%s5 + $0x8] sm:$0xff]
      %v422 = vld [vmem:[%s5 + $0x10] sm:$0xff]
      %v423 = vld [vmem:[%s5 + $0x18] sm:$0xff]
      %v424 = vld [vmem:[%s5 + $0x20] sm:$0xff]
      %v425 = vld [vmem:[%s5 + $0x28] sm:$0xff]
      %v426 = vld [vmem:[%s5 + $0x30] sm:$0xff]
      %v427 = vld [vmem:[%s5 + $0x38] sm:$0xff]
      %v428 = vld [vmem:[%s5 + $0x40] sm:$0xff]
      %v429 = vld [vmem:[%s5 + $0x48] sm:$0xff]
      %v430 = vld [vmem:[%s5 + $0x50] sm:$0xff]
      %v431 = vld [vmem:[%s5 + $0x58] sm:$0xff]
      %v432 = vld [vmem:[%s5 + $0x60] sm:$0xff]
      %v433 = vld [vmem:[%s5 + $0x68] sm:$0xff]
      %v434 = vld [vmem:[%s5 + $0x70] sm:$0xff]
      %v435 = vld [vmem:[%s5 + $0x78] sm:$0xff]
      %436 = vmatpush.msra.mxu0 %v435
      %437 = vmatpush.msra.mxu0 %v434
      %438 = vmatpush.msra.mxu0 %v433
      %439 = vmatpush.msra.mxu0 %v432
      %440 = vmatpush.msra.mxu0 %v431
      %441 = vmatpush.msra.mxu0 %v430
      %442 = vmatpush.msra.mxu0 %v429
      %443 = vmatpush.msra.mxu0 %v428
      %444 = vmatpush.msra.mxu0 %v427
      %445 = vmatpush.msra.mxu0 %v426
      %446 = vmatpush.msra.mxu0 %v425
      %447 = vmatpush.msra.mxu0 %v424
      %448 = vmatpush.msra.mxu0 %v423
      %449 = vmatpush.msra.mxu0 %v422
      %450 = vmatpush.msra.mxu0 %v421
      %451 = vmatpush.msra.mxu0 %v420
      %452 = vmatmul.f32.gmra.mxu0 %v404
      %v453 = vpop.f32.mrf.mxu0
      %v454 = vadd.f32 0.0, %v453
      %455 = vmatmul.f32.gmra.mxu0 %v405
      %v456 = vpop.f32.mrf.mxu0
      %v457 = vadd.f32 0.0, %v456
      %458 = vmatmul.f32.gmra.mxu0 %v406
      %v459 = vpop.f32.mrf.mxu0
      %v460 = vadd.f32 0.0, %v459
      %461 = vmatmul.f32.gmra.mxu0 %v407
      %v462 = vpop.f32.mrf.mxu0
      %v463 = vadd.f32 0.0, %v462
      %464 = vmatmul.f32.gmra.mxu0 %v408
      %v465 = vpop.f32.mrf.mxu0
      %v466 = vadd.f32 0.0, %v465
      %467 = vmatmul.f32.gmra.mxu0 %v409
      %v468 = vpop.f32.mrf.mxu0
      %v469 = vadd.f32 0.0, %v468
      %470 = vmatmul.f32.gmra.mxu0 %v410
      %v471 = vpop.f32.mrf.mxu0
      %v472 = vadd.f32 0.0, %v471
      %473 = vmatmul.f32.gmra.mxu0 %v411
      %v474 = vpop.f32.mrf.mxu0
      %v475 = vadd.f32 0.0, %v474
      %476 = vdwg.mxu0
      %v477 = vadd.f32 %v412, %v454
      %v478 = vadd.f32 %v413, %v457
      %v479 = vadd.f32 %v414, %v460
      %v480 = vadd.f32 %v415, %v463
      %v481 = vadd.f32 %v416, %v466
      %v482 = vadd.f32 %v417, %v469
      %v483 = vadd.f32 %v418, %v472
      %v484 = vadd.f32 %v419, %v475
      %485 = vst [vmem:[#allocation2] sm:$0xff] %v477
      %486 = vst [vmem:[#allocation2 + $0x8] sm:$0xff] %v478
      %487 = vst [vmem:[#allocation2 + $0x10] sm:$0xff] %v479
      %488 = vst [vmem:[#allocation2 + $0x18] sm:$0xff] %v480
      %489 = vst [vmem:[#allocation2 + $0x20] sm:$0xff] %v481
      %490 = vst [vmem:[#allocation2 + $0x28] sm:$0xff] %v482
      %491 = vst [vmem:[#allocation2 + $0x30] sm:$0xff] %v483
      %492 = vst [vmem:[#allocation2 + $0x38] sm:$0xff] %v484
      %v493 = vld [vmem:[#allocation3 + $0x1] sm:$0xff]
      %v494 = vld [vmem:[#allocation3 + $0x11] sm:$0xff]
      %v495 = vld [vmem:[#allocation3 + $0x21] sm:$0xff]
      %v496 = vld [vmem:[#allocation3 + $0x31] sm:$0xff]
      %v497 = vld [vmem:[#allocation3 + $0x41] sm:$0xff]
      %v498 = vld [vmem:[#allocation3 + $0x51] sm:$0xff]
      %v499 = vld [vmem:[#allocation3 + $0x61] sm:$0xff]
      %v500 = vld [vmem:[#allocation3 + $0x71] sm:$0xff]
      %v501 = vld [vmem:[#allocation2] sm:$0xff]
      %v502 = vld [vmem:[#allocation2 + $0x8] sm:$0xff]
      %v503 = vld [vmem:[#allocation2 + $0x10] sm:$0xff]
      %v504 = vld [vmem:[#allocation2 + $0x18] sm:$0xff]
      %v505 = vld [vmem:[#allocation2 + $0x20] sm:$0xff]
      %v506 = vld [vmem:[#allocation2 + $0x28] sm:$0xff]
      %v507 = vld [vmem:[#allocation2 + $0x30] sm:$0xff]
      %v508 = vld [vmem:[#allocation2 + $0x38] sm:$0xff]
      %s509 = scalar_lea.vmem %s5, 128
      %v510 = vld [vmem:[%s509] sm:$0xff]
      %v511 = vld [vmem:[%s509 + $0x8] sm:$0xff]
      %v512 = vld [vmem:[%s509 + $0x10] sm:$0xff]
      %v513 = vld [vmem:[%s509 + $0x18] sm:$0xff]
      %v514 = vld [vmem:[%s509 + $0x20] sm:$0xff]
      %v515 = vld [vmem:[%s509 + $0x28] sm:$0xff]
      %v516 = vld [vmem:[%s509 + $0x30] sm:$0xff]
      %v517 = vld [vmem:[%s509 + $0x38] sm:$0xff]
      %v518 = vld [vmem:[%s509 + $0x40] sm:$0xff]
      %v519 = vld [vmem:[%s509 + $0x48] sm:$0xff]
      %v520 = vld [vmem:[%s509 + $0x50] sm:$0xff]
      %v521 = vld [vmem:[%s509 + $0x58] sm:$0xff]
      %v522 = vld [vmem:[%s509 + $0x60] sm:$0xff]
      %v523 = vld [vmem:[%s509 + $0x68] sm:$0xff]
      %v524 = vld [vmem:[%s509 + $0x70] sm:$0xff]
      %v525 = vld [vmem:[%s509 + $0x78] sm:$0xff]
      %526 = vmatpush.msra.mxu0 %v525
      %527 = vmatpush.msra.mxu0 %v524
      %528 = vmatpush.msra.mxu0 %v523
      %529 = vmatpush.msra.mxu0 %v522
      %530 = vmatpush.msra.mxu0 %v521
      %531 = vmatpush.msra.mxu0 %v520
      %532 = vmatpush.msra.mxu0 %v519
      %533 = vmatpush.msra.mxu0 %v518
      %534 = vmatpush.msra.mxu0 %v517
      %535 = vmatpush.msra.mxu0 %v516
      %536 = vmatpush.msra.mxu0 %v515
      %537 = vmatpush.msra.mxu0 %v514
      %538 = vmatpush.msra.mxu0 %v513
      %539 = vmatpush.msra.mxu0 %v512
      %540 = vmatpush.msra.mxu0 %v511
      %541 = vmatpush.msra.mxu0 %v510
      %542 = vmatmul.f32.gmra.mxu0 %v493
      %v543 = vpop.f32.mrf.mxu0
      %v544 = vadd.f32 0.0, %v543
      %545 = vmatmul.f32.gmra.mxu0 %v494
      %v546 = vpop.f32.mrf.mxu0
      %v547 = vadd.f32 0.0, %v546
      %548 = vmatmul.f32.gmra.mxu0 %v495
      %v549 = vpop.f32.mrf.mxu0
      %v550 = vadd.f32 0.0, %v549
      %551 = vmatmul.f32.gmra.mxu0 %v496
      %v552 = vpop.f32.mrf.mxu0
      %v553 = vadd.f32 0.0, %v552
      %554 = vmatmul.f32.gmra.mxu0 %v497
      %v555 = vpop.f32.mrf.mxu0
      %v556 = vadd.f32 0.0, %v555
      %557 = vmatmul.f32.gmra.mxu0 %v498
      %v558 = vpop.f32.mrf.mxu0
      %v559 = vadd.f32 0.0, %v558
      %560 = vmatmul.f32.gmra.mxu0 %v499
      %v561 = vpop.f32.mrf.mxu0
      %v562 = vadd.f32 0.0, %v561
      %563 = vmatmul.f32.gmra.mxu0 %v500
      %v564 = vpop.f32.mrf.mxu0
      %v565 = vadd.f32 0.0, %v564
      %566 = vdwg.mxu0
      %v567 = vadd.f32 %v501, %v544
      %v568 = vadd.f32 %v502, %v547
      %v569 = vadd.f32 %v503, %v550
      %v570 = vadd.f32 %v504, %v553
      %v571 = vadd.f32 %v505, %v556
      %v572 = vadd.f32 %v506, %v559
      %v573 = vadd.f32 %v507, %v562
      %v574 = vadd.f32 %v508, %v565
      %575 = vst [vmem:[#allocation2] sm:$0xff] %v567
      %576 = vst [vmem:[#allocation2 + $0x8] sm:$0xff] %v568
      %577 = vst [vmem:[#allocation2 + $0x10] sm:$0xff] %v569
      %578 = vst [vmem:[#allocation2 + $0x18] sm:$0xff] %v570
      %579 = vst [vmem:[#allocation2 + $0x20] sm:$0xff] %v571
      %580 = vst [vmem:[#allocation2 + $0x28] sm:$0xff] %v572
      %581 = vst [vmem:[#allocation2 + $0x30] sm:$0xff] %v573
      %582 = vst [vmem:[#allocation2 + $0x38] sm:$0xff] %v574
      %v583 = vld [vmem:[#allocation3 + $0x2] sm:$0xff]
      %v584 = vld [vmem:[#allocation3 + $0x12] sm:$0xff]
      %v585 = vld [vmem:[#allocation3 + $0x22] sm:$0xff]
      %v586 = vld [vmem:[#allocation3 + $0x32] sm:$0xff]
      %v587 = vld [vmem:[#allocation3 + $0x42] sm:$0xff]
      %v588 = vld [vmem:[#allocation3 + $0x52] sm:$0xff]
      %v589 = vld [vmem:[#allocation3 + $0x62] sm:$0xff]
      %v590 = vld [vmem:[#allocation3 + $0x72] sm:$0xff]
      %v591 = vld [vmem:[#allocation2] sm:$0xff]
      %v592 = vld [vmem:[#allocation2 + $0x8] sm:$0xff]
      %v593 = vld [vmem:[#allocation2 + $0x10] sm:$0xff]
      %v594 = vld [vmem:[#allocation2 + $0x18] sm:$0xff]
      %v595 = vld [vmem:[#allocation2 + $0x20] sm:$0xff]
      %v596 = vld [vmem:[#allocation2 + $0x28] sm:$0xff]
      %v597 = vld [vmem:[#allocation2 + $0x30] sm:$0xff]
      %v598 = vld [vmem:[#allocation2 + $0x38] sm:$0xff]
      %s599 = scalar_lea.vmem %s5, 256
      %v600 = vld [vmem:[%s599] sm:$0xff]
      %v601 = vld [vmem:[%s599 + $0x8] sm:$0xff]
      %v602 = vld [vmem:[%s599 + $0x10] sm:$0xff]
      %v603 = vld [vmem:[%s599 + $0x18] sm:$0xff]
      %v604 = vld [vmem:[%s599 + $0x20] sm:$0xff]
      %v605 = vld [vmem:[%s599 + $0x28] sm:$0xff]
      %v606 = vld [vmem:[%s599 + $0x30] sm:$0xff]
      %v607 = vld [vmem:[%s599 + $0x38] sm:$0xff]
      %v608 = vld [vmem:[%s599 + $0x40] sm:$0xff]
      %v609 = vld [vmem:[%s599 + $0x48] sm:$0xff]
      %v610 = vld [vmem:[%s599 + $0x50] sm:$0xff]
      %v611 = vld [vmem:[%s599 + $0x58] sm:$0xff]
      %v612 = vld [vmem:[%s599 + $0x60] sm:$0xff]
      %v613 = vld [vmem:[%s599 + $0x68] sm:$0xff]
      %v614 = vld [vmem:[%s599 + $0x70] sm:$0xff]
      %v615 = vld [vmem:[%s599 + $0x78] sm:$0xff]
      %616 = vmatpush.msra.mxu0 %v615
      %617 = vmatpush.msra.mxu0 %v614
      %618 = vmatpush.msra.mxu0 %v613
      %619 = vmatpush.msra.mxu0 %v612
      %620 = vmatpush.msra.mxu0 %v611
      %621 = vmatpush.msra.mxu0 %v610
      %622 = vmatpush.msra.mxu0 %v609
      %623 = vmatpush.msra.mxu0 %v608
      %624 = vmatpush.msra.mxu0 %v607
      %625 = vmatpush.msra.mxu0 %v606
      %626 = vmatpush.msra.mxu0 %v605
      %627 = vmatpush.msra.mxu0 %v604
      %628 = vmatpush.msra.mxu0 %v603
      %629 = vmatpush.msra.mxu0 %v602
      %630 = vmatpush.msra.mxu0 %v601
      %631 = vmatpush.msra.mxu0 %v600
      %632 = vmatmul.f32.gmra.mxu0 %v583
      %v633 = vpop.f32.mrf.mxu0
      %v634 = vadd.f32 0.0, %v633
      %635 = vmatmul.f32.gmra.mxu0 %v584
      %v636 = vpop.f32.mrf.mxu0
      %v637 = vadd.f32 0.0, %v636
      %638 = vmatmul.f32.gmra.mxu0 %v585
      %v639 = vpop.f32.mrf.mxu0
      %v640 = vadd.f32 0.0, %v639
      %641 = vmatmul.f32.gmra.mxu0 %v586
      %v642 = vpop.f32.mrf.mxu0
      %v643 = vadd.f32 0.0, %v642
      %644 = vmatmul.f32.gmra.mxu0 %v587
      %v645 = vpop.f32.mrf.mxu0
      %v646 = vadd.f32 0.0, %v645
      %647 = vmatmul.f32.gmra.mxu0 %v588
      %v648 = vpop.f32.mrf.mxu0
      %v649 = vadd.f32 0.0, %v648
      %650 = vmatmul.f32.gmra.mxu0 %v589
      %v651 = vpop.f32.mrf.mxu0
      %v652 = vadd.f32 0.0, %v651
      %653 = vmatmul.f32.gmra.mxu0 %v590
      %v654 = vpop.f32.mrf.mxu0
      %v655 = vadd.f32 0.0, %v654
      %656 = vdwg.mxu0
      %v657 = vadd.f32 %v591, %v634
      %v658 = vadd.f32 %v592, %v637
      %v659 = vadd.f32 %v593, %v640
      %v660 = vadd.f32 %v594, %v643
      %v661 = vadd.f32 %v595, %v646
      %v662 = vadd.f32 %v596, %v649
      %v663 = vadd.f32 %v597, %v652
      %v664 = vadd.f32 %v598, %v655
      %665 = vst [vmem:[#allocation2] sm:$0xff] %v657
      %666 = vst [vmem:[#allocation2 + $0x8] sm:$0xff] %v658
      %667 = vst [vmem:[#allocation2 + $0x10] sm:$0xff] %v659
      %668 = vst [vmem:[#allocation2 + $0x18] sm:$0xff] %v660
      %669 = vst [vmem:[#allocation2 + $0x20] sm:$0xff] %v661
      %670 = vst [vmem:[#allocation2 + $0x28] sm:$0xff] %v662
      %671 = vst [vmem:[#allocation2 + $0x30] sm:$0xff] %v663
      %672 = vst [vmem:[#allocation2 + $0x38] sm:$0xff] %v664
      %v673 = vld [vmem:[%s387] sm:$0xff]
      %v674 = vld [vmem:[%s387 + $0x10] sm:$0xff]
      %v675 = vld [vmem:[%s387 + $0x20] sm:$0xff]
      %v676 = vld [vmem:[%s387 + $0x30] sm:$0xff]
      %v677 = vld [vmem:[%s387 + $0x40] sm:$0xff]
      %v678 = vld [vmem:[%s387 + $0x50] sm:$0xff]
      %v679 = vld [vmem:[%s387 + $0x60] sm:$0xff]
      %v680 = vld [vmem:[%s387 + $0x70] sm:$0xff]
      %v681 = vld [vmem:[#allocation2] sm:$0xff]
      %v682 = vld [vmem:[#allocation2 + $0x8] sm:$0xff]
      %v683 = vld [vmem:[#allocation2 + $0x10] sm:$0xff]
      %v684 = vld [vmem:[#allocation2 + $0x18] sm:$0xff]
      %v685 = vld [vmem:[#allocation2 + $0x20] sm:$0xff]
      %v686 = vld [vmem:[#allocation2 + $0x28] sm:$0xff]
      %v687 = vld [vmem:[#allocation2 + $0x30] sm:$0xff]
      %v688 = vld [vmem:[#allocation2 + $0x38] sm:$0xff]
      %s689 = scalar_lea.vmem %s5, 384
      %v690 = vld [vmem:[%s689] sm:$0xff]
      %v691 = vld [vmem:[%s689 + $0x8] sm:$0xff]
      %v692 = vld [vmem:[%s689 + $0x10] sm:$0xff]
      %v693 = vld [vmem:[%s689 + $0x18] sm:$0xff]
      %v694 = vld [vmem:[%s689 + $0x20] sm:$0xff]
      %v695 = vld [vmem:[%s689 + $0x28] sm:$0xff]
      %v696 = vld [vmem:[%s689 + $0x30] sm:$0xff]
      %v697 = vld [vmem:[%s689 + $0x38] sm:$0xff]
      %v698 = vld [vmem:[%s689 + $0x40] sm:$0xff]
      %v699 = vld [vmem:[%s689 + $0x48] sm:$0xff]
      %v700 = vld [vmem:[%s689 + $0x50] sm:$0xff]
      %v701 = vld [vmem:[%s689 + $0x58] sm:$0xff]
      %v702 = vld [vmem:[%s689 + $0x60] sm:$0xff]
      %v703 = vld [vmem:[%s689 + $0x68] sm:$0xff]
      %v704 = vld [vmem:[%s689 + $0x70] sm:$0xff]
      %v705 = vld [vmem:[%s689 + $0x78] sm:$0xff]
      %706 = vmatpush.msra.mxu0 %v705
      %707 = vmatpush.msra.mxu0 %v704
      %708 = vmatpush.msra.mxu0 %v703
      %709 = vmatpush.msra.mxu0 %v702
      %710 = vmatpush.msra.mxu0 %v701
      %711 = vmatpush.msra.mxu0 %v700
      %712 = vmatpush.msra.mxu0 %v699
      %713 = vmatpush.msra.mxu0 %v698
      %714 = vmatpush.msra.mxu0 %v697
      %715 = vmatpush.msra.mxu0 %v696
      %716 = vmatpush.msra.mxu0 %v695
      %717 = vmatpush.msra.mxu0 %v694
      %718 = vmatpush.msra.mxu0 %v693
      %719 = vmatpush.msra.mxu0 %v692
      %720 = vmatpush.msra.mxu0 %v691
      %721 = vmatpush.msra.mxu0 %v690
      %722 = vmatmul.f32.gmra.mxu0 %v673
      %v723 = vpop.f32.mrf.mxu0
      %v724 = vadd.f32 0.0, %v723
      %725 = vmatmul.f32.gmra.mxu0 %v674
      %v726 = vpop.f32.mrf.mxu0
      %v727 = vadd.f32 0.0, %v726
      %728 = vmatmul.f32.gmra.mxu0 %v675
      %v729 = vpop.f32.mrf.mxu0
      %v730 = vadd.f32 0.0, %v729
      %731 = vmatmul.f32.gmra.mxu0 %v676
      %v732 = vpop.f32.mrf.mxu0
      %v733 = vadd.f32 0.0, %v732
      %734 = vmatmul.f32.gmra.mxu0 %v677
      %v735 = vpop.f32.mrf.mxu0
      %v736 = vadd.f32 0.0, %v735
      %737 = vmatmul.f32.gmra.mxu0 %v678
      %v738 = vpop.f32.mrf.mxu0
      %v739 = vadd.f32 0.0, %v738
      %740 = vmatmul.f32.gmra.mxu0 %v679
      %v741 = vpop.f32.mrf.mxu0
      %v742 = vadd.f32 0.0, %v741
      %743 = vmatmul.f32.gmra.mxu0 %v680
      %v744 = vpop.f32.mrf.mxu0
      %v745 = vadd.f32 0.0, %v744
      %746 = vdwg.mxu0
      %v747 = vadd.f32 %v681, %v724
      %v748 = vadd.f32 %v682, %v727
      %v749 = vadd.f32 %v683, %v730
      %v750 = vadd.f32 %v684, %v733
      %v751 = vadd.f32 %v685, %v736
      %v752 = vadd.f32 %v686, %v739
      %v753 = vadd.f32 %v687, %v742
      %v754 = vadd.f32 %v688, %v745
      %755 = vst [vmem:[#allocation2] sm:$0xff] %v747
      %756 = vst [vmem:[#allocation2 + $0x8] sm:$0xff] %v748
      %757 = vst [vmem:[#allocation2 + $0x10] sm:$0xff] %v749
      %758 = vst [vmem:[#allocation2 + $0x18] sm:$0xff] %v750
      %759 = vst [vmem:[#allocation2 + $0x20] sm:$0xff] %v751
      %760 = vst [vmem:[#allocation2 + $0x28] sm:$0xff] %v752
      %761 = vst [vmem:[#allocation2 + $0x30] sm:$0xff] %v753
      %762 = vst [vmem:[#allocation2 + $0x38] sm:$0xff] %v754
      %v763 = vld [vmem:[%s387 + $0x1] sm:$0xff]
      %v764 = vld [vmem:[%s387 + $0x11] sm:$0xff]
      %v765 = vld [vmem:[%s387 + $0x21] sm:$0xff]
      %v766 = vld [vmem:[%s387 + $0x31] sm:$0xff]
      %v767 = vld [vmem:[%s387 + $0x41] sm:$0xff]
      %v768 = vld [vmem:[%s387 + $0x51] sm:$0xff]
      %v769 = vld [vmem:[%s387 + $0x61] sm:$0xff]
      %v770 = vld [vmem:[%s387 + $0x71] sm:$0xff]
      %v771 = vld [vmem:[#allocation2] sm:$0xff]
      %v772 = vld [vmem:[#allocation2 + $0x8] sm:$0xff]
      %v773 = vld [vmem:[#allocation2 + $0x10] sm:$0xff]
      %v774 = vld [vmem:[#allocation2 + $0x18] sm:$0xff]
      %v775 = vld [vmem:[#allocation2 + $0x20] sm:$0xff]
      %v776 = vld [vmem:[#allocation2 + $0x28] sm:$0xff]
      %v777 = vld [vmem:[#allocation2 + $0x30] sm:$0xff]
      %v778 = vld [vmem:[#allocation2 + $0x38] sm:$0xff]
      %s779 = scalar_lea.vmem %s5, 512
      %v780 = vld [vmem:[%s779] sm:$0xff]
      %v781 = vld [vmem:[%s779 + $0x8] sm:$0xff]
      %v782 = vld [vmem:[%s779 + $0x10] sm:$0xff]
      %v783 = vld [vmem:[%s779 + $0x18] sm:$0xff]
      %v784 = vld [vmem:[%s779 + $0x20] sm:$0xff]
      %v785 = vld [vmem:[%s779 + $0x28] sm:$0xff]
      %v786 = vld [vmem:[%s779 + $0x30] sm:$0xff]
      %v787 = vld [vmem:[%s779 + $0x38] sm:$0xff]
      %v788 = vld [vmem:[%s779 + $0x40] sm:$0xff]
      %v789 = vld [vmem:[%s779 + $0x48] sm:$0xff]
      %v790 = vld [vmem:[%s779 + $0x50] sm:$0xff]
      %v791 = vld [vmem:[%s779 + $0x58] sm:$0xff]
      %v792 = vld [vmem:[%s779 + $0x60] sm:$0xff]
      %v793 = vld [vmem:[%s779 + $0x68] sm:$0xff]
      %v794 = vld [vmem:[%s779 + $0x70] sm:$0xff]
      %v795 = vld [vmem:[%s779 + $0x78] sm:$0xff]
      %796 = vmatpush.msra.mxu0 %v795
      %797 = vmatpush.msra.mxu0 %v794
      %798 = vmatpush.msra.mxu0 %v793
      %799 = vmatpush.msra.mxu0 %v792
      %800 = vmatpush.msra.mxu0 %v791
      %801 = vmatpush.msra.mxu0 %v790
      %802 = vmatpush.msra.mxu0 %v789
      %803 = vmatpush.msra.mxu0 %v788
      %804 = vmatpush.msra.mxu0 %v787
      %805 = vmatpush.msra.mxu0 %v786
      %806 = vmatpush.msra.mxu0 %v785
      %807 = vmatpush.msra.mxu0 %v784
      %808 = vmatpush.msra.mxu0 %v783
      %809 = vmatpush.msra.mxu0 %v782
      %810 = vmatpush.msra.mxu0 %v781
      %811 = vmatpush.msra.mxu0 %v780
      %812 = vmatmul.f32.gmra.mxu0 %v763
      %v813 = vpop.f32.mrf.mxu0
      %v814 = vadd.f32 0.0, %v813
      %815 = vmatmul.f32.gmra.mxu0 %v764
      %v816 = vpop.f32.mrf.mxu0
      %v817 = vadd.f32 0.0, %v816
      %818 = vmatmul.f32.gmra.mxu0 %v765
      %v819 = vpop.f32.mrf.mxu0
      %v820 = vadd.f32 0.0, %v819
      %821 = vmatmul.f32.gmra.mxu0 %v766
      %v822 = vpop.f32.mrf.mxu0
      %v823 = vadd.f32 0.0, %v822
      %824 = vmatmul.f32.gmra.mxu0 %v767
      %v825 = vpop.f32.mrf.mxu0
      %v826 = vadd.f32 0.0, %v825
      %827 = vmatmul.f32.gmra.mxu0 %v768
      %v828 = vpop.f32.mrf.mxu0
      %v829 = vadd.f32 0.0, %v828
      %830 = vmatmul.f32.gmra.mxu0 %v769
      %v831 = vpop.f32.mrf.mxu0
      %v832 = vadd.f32 0.0, %v831
      %833 = vmatmul.f32.gmra.mxu0 %v770
      %v834 = vpop.f32.mrf.mxu0
      %v835 = vadd.f32 0.0, %v834
      %836 = vdwg.mxu0
      %v837 = vadd.f32 %v771, %v814
      %v838 = vadd.f32 %v772, %v817
      %v839 = vadd.f32 %v773, %v820
      %v840 = vadd.f32 %v774, %v823
      %v841 = vadd.f32 %v775, %v826
      %v842 = vadd.f32 %v776, %v829
      %v843 = vadd.f32 %v777, %v832
      %v844 = vadd.f32 %v778, %v835
      %845 = vst [vmem:[#allocation2] sm:$0xff] %v837
      %846 = vst [vmem:[#allocation2 + $0x8] sm:$0xff] %v838
      %847 = vst [vmem:[#allocation2 + $0x10] sm:$0xff] %v839
      %848 = vst [vmem:[#allocation2 + $0x18] sm:$0xff] %v840
      %849 = vst [vmem:[#allocation2 + $0x20] sm:$0xff] %v841
      %850 = vst [vmem:[#allocation2 + $0x28] sm:$0xff] %v842
      %851 = vst [vmem:[#allocation2 + $0x30] sm:$0xff] %v843
      %852 = vst [vmem:[#allocation2 + $0x38] sm:$0xff] %v844
      %v853 = vld [vmem:[%s387 + $0x2] sm:$0xff]
      %v854 = vld [vmem:[%s387 + $0x12] sm:$0xff]
      %v855 = vld [vmem:[%s387 + $0x22] sm:$0xff]
      %v856 = vld [vmem:[%s387 + $0x32] sm:$0xff]
      %v857 = vld [vmem:[%s387 + $0x42] sm:$0xff]
      %v858 = vld [vmem:[%s387 + $0x52] sm:$0xff]
      %v859 = vld [vmem:[%s387 + $0x62] sm:$0xff]
      %v860 = vld [vmem:[%s387 + $0x72] sm:$0xff]
      %v861 = vld [vmem:[#allocation2] sm:$0xff]
      %v862 = vld [vmem:[#allocation2 + $0x8] sm:$0xff]
      %v863 = vld [vmem:[#allocation2 + $0x10] sm:$0xff]
      %v864 = vld [vmem:[#allocation2 + $0x18] sm:$0xff]
      %v865 = vld [vmem:[#allocation2 + $0x20] sm:$0xff]
      %v866 = vld [vmem:[#allocation2 + $0x28] sm:$0xff]
      %v867 = vld [vmem:[#allocation2 + $0x30] sm:$0xff]
      %v868 = vld [vmem:[#allocation2 + $0x38] sm:$0xff]
      %s869 = scalar_lea.vmem %s5, 640
      %v870 = vld [vmem:[%s869] sm:$0xff]
      %v871 = vld [vmem:[%s869 + $0x8] sm:$0xff]
      %v872 = vld [vmem:[%s869 + $0x10] sm:$0xff]
      %v873 = vld [vmem:[%s869 + $0x18] sm:$0xff]
      %v874 = vld [vmem:[%s869 + $0x20] sm:$0xff]
      %v875 = vld [vmem:[%s869 + $0x28] sm:$0xff]
      %v876 = vld [vmem:[%s869 + $0x30] sm:$0xff]
      %v877 = vld [vmem:[%s869 + $0x38] sm:$0xff]
      %v878 = vld [vmem:[%s869 + $0x40] sm:$0xff]
      %v879 = vld [vmem:[%s869 + $0x48] sm:$0xff]
      %v880 = vld [vmem:[%s869 + $0x50] sm:$0xff]
      %v881 = vld [vmem:[%s869 + $0x58] sm:$0xff]
      %v882 = vld [vmem:[%s869 + $0x60] sm:$0xff]
      %v883 = vld [vmem:[%s869 + $0x68] sm:$0xff]
      %v884 = vld [vmem:[%s869 + $0x70] sm:$0xff]
      %v885 = vld [vmem:[%s869 + $0x78] sm:$0xff]
      %886 = vmatpush.msra.mxu0 %v885
      %887 = vmatpush.msra.mxu0 %v884
      %888 = vmatpush.msra.mxu0 %v883
      %889 = vmatpush.msra.mxu0 %v882
      %890 = vmatpush.msra.mxu0 %v881
      %891 = vmatpush.msra.mxu0 %v880
      %892 = vmatpush.msra.mxu0 %v879
      %893 = vmatpush.msra.mxu0 %v878
      %894 = vmatpush.msra.mxu0 %v877
      %895 = vmatpush.msra.mxu0 %v876
      %896 = vmatpush.msra.mxu0 %v875
      %897 = vmatpush.msra.mxu0 %v874
      %898 = vmatpush.msra.mxu0 %v873
      %899 = vmatpush.msra.mxu0 %v872
      %900 = vmatpush.msra.mxu0 %v871
      %901 = vmatpush.msra.mxu0 %v870
      %902 = vmatmul.f32.gmra.mxu0 %v853
      %v903 = vpop.f32.mrf.mxu0
      %v904 = vadd.f32 0.0, %v903
      %905 = vmatmul.f32.gmra.mxu0 %v854
      %v906 = vpop.f32.mrf.mxu0
      %v907 = vadd.f32 0.0, %v906
      %908 = vmatmul.f32.gmra.mxu0 %v855
      %v909 = vpop.f32.mrf.mxu0
      %v910 = vadd.f32 0.0, %v909
      %911 = vmatmul.f32.gmra.mxu0 %v856
      %v912 = vpop.f32.mrf.mxu0
      %v913 = vadd.f32 0.0, %v912
      %914 = vmatmul.f32.gmra.mxu0 %v857
      %v915 = vpop.f32.mrf.mxu0
      %v916 = vadd.f32 0.0, %v915
      %917 = vmatmul.f32.gmra.mxu0 %v858
      %v918 = vpop.f32.mrf.mxu0
      %v919 = vadd.f32 0.0, %v918
      %920 = vmatmul.f32.gmra.mxu0 %v859
      %v921 = vpop.f32.mrf.mxu0
      %v922 = vadd.f32 0.0, %v921
      %923 = vmatmul.f32.gmra.mxu0 %v860
      %v924 = vpop.f32.mrf.mxu0
      %v925 = vadd.f32 0.0, %v924
      %926 = vdwg.mxu0
      %v927 = vadd.f32 %v861, %v904
      %v928 = vadd.f32 %v862, %v907
      %v929 = vadd.f32 %v863, %v910
      %v930 = vadd.f32 %v864, %v913
      %v931 = vadd.f32 %v865, %v916
      %v932 = vadd.f32 %v866, %v919
      %v933 = vadd.f32 %v867, %v922
      %v934 = vadd.f32 %v868, %v925
      %935 = vst [vmem:[#allocation2] sm:$0xff] %v927
      %936 = vst [vmem:[#allocation2 + $0x8] sm:$0xff] %v928
      %937 = vst [vmem:[#allocation2 + $0x10] sm:$0xff] %v929
      %938 = vst [vmem:[#allocation2 + $0x18] sm:$0xff] %v930
      %939 = vst [vmem:[#allocation2 + $0x20] sm:$0xff] %v931
      %940 = vst [vmem:[#allocation2 + $0x28] sm:$0xff] %v932
      %941 = vst [vmem:[#allocation2 + $0x30] sm:$0xff] %v933
      %942 = vst [vmem:[#allocation2 + $0x38] sm:$0xff] %v934
      %s943 = scalar_lea.vmem [#allocation3], 32
      %v944 = vld [vmem:[%s943] sm:$0xff]
      %v945 = vld [vmem:[%s943 + $0x10] sm:$0xff]
      %v946 = vld [vmem:[%s943 + $0x20] sm:$0xff]
      %v947 = vld [vmem:[%s943 + $0x30] sm:$0xff]
      %v948 = vld [vmem:[%s943 + $0x40] sm:$0xff]
      %v949 = vld [vmem:[%s943 + $0x50] sm:$0xff]
      %v950 = vld [vmem:[%s943 + $0x60] sm:$0xff]
      %v951 = vld [vmem:[%s943 + $0x70] sm:$0xff]
      %v952 = vld [vmem:[#allocation2] sm:$0xff]
      %v953 = vld [vmem:[#allocation2 + $0x8] sm:$0xff]
      %v954 = vld [vmem:[#allocation2 + $0x10] sm:$0xff]
      %v955 = vld [vmem:[#allocation2 + $0x18] sm:$0xff]
      %v956 = vld [vmem:[#allocation2 + $0x20] sm:$0xff]
      %v957 = vld [vmem:[#allocation2 + $0x28] sm:$0xff]
      %v958 = vld [vmem:[#allocation2 + $0x30] sm:$0xff]
      %v959 = vld [vmem:[#allocation2 + $0x38] sm:$0xff]
      %s960 = scalar_lea.vmem %s5, 768
      %v961 = vld [vmem:[%s960] sm:$0xff]
      %v962 = vld [vmem:[%s960 + $0x8] sm:$0xff]
      %v963 = vld [vmem:[%s960 + $0x10] sm:$0xff]
      %v964 = vld [vmem:[%s960 + $0x18] sm:$0xff]
      %v965 = vld [vmem:[%s960 + $0x20] sm:$0xff]
      %v966 = vld [vmem:[%s960 + $0x28] sm:$0xff]
      %v967 = vld [vmem:[%s960 + $0x30] sm:$0xff]
      %v968 = vld [vmem:[%s960 + $0x38] sm:$0xff]
      %v969 = vld [vmem:[%s960 + $0x40] sm:$0xff]
      %v970 = vld [vmem:[%s960 + $0x48] sm:$0xff]
      %v971 = vld [vmem:[%s960 + $0x50] sm:$0xff]
      %v972 = vld [vmem:[%s960 + $0x58] sm:$0xff]
      %v973 = vld [vmem:[%s960 + $0x60] sm:$0xff]
      %v974 = vld [vmem:[%s960 + $0x68] sm:$0xff]
      %v975 = vld [vmem:[%s960 + $0x70] sm:$0xff]
      %v976 = vld [vmem:[%s960 + $0x78] sm:$0xff]
      %977 = vmatpush.msra.mxu0 %v976
      %978 = vmatpush.msra.mxu0 %v975
      %979 = vmatpush.msra.mxu0 %v974
      %980 = vmatpush.msra.mxu0 %v973
      %981 = vmatpush.msra.mxu0 %v972
      %982 = vmatpush.msra.mxu0 %v971
      %983 = vmatpush.msra.mxu0 %v970
      %984 = vmatpush.msra.mxu0 %v969
      %985 = vmatpush.msra.mxu0 %v968
      %986 = vmatpush.msra.mxu0 %v967
      %987 = vmatpush.msra.mxu0 %v966
      %988 = vmatpush.msra.mxu0 %v965
      %989 = vmatpush.msra.mxu0 %v964
      %990 = vmatpush.msra.mxu0 %v963
      %991 = vmatpush.msra.mxu0 %v962
      %992 = vmatpush.msra.mxu0 %v961
      %993 = vmatmul.f32.gmra.mxu0 %v944
      %v994 = vpop.f32.mrf.mxu0
      %v995 = vadd.f32 0.0, %v994
      %996 = vmatmul.f32.gmra.mxu0 %v945
      %v997 = vpop.f32.mrf.mxu0
      %v998 = vadd.f32 0.0, %v997
      %999 = vmatmul.f32.gmra.mxu0 %v946
      %v1000 = vpop.f32.mrf.mxu0
      %v1001 = vadd.f32 0.0, %v1000
      %1002 = vmatmul.f32.gmra.mxu0 %v947
      %v1003 = vpop.f32.mrf.mxu0
      %v1004 = vadd.f32 0.0, %v1003
      %1005 = vmatmul.f32.gmra.mxu0 %v948
      %v1006 = vpop.f32.mrf.mxu0
      %v1007 = vadd.f32 0.0, %v1006
      %1008 = vmatmul.f32.gmra.mxu0 %v949
      %v1009 = vpop.f32.mrf.mxu0
      %v1010 = vadd.f32 0.0, %v1009
      %1011 = vmatmul.f32.gmra.mxu0 %v950
      %v1012 = vpop.f32.mrf.mxu0
      %v1013 = vadd.f32 0.0, %v1012
      %1014 = vmatmul.f32.gmra.mxu0 %v951
      %v1015 = vpop.f32.mrf.mxu0
      %v1016 = vadd.f32 0.0, %v1015
      %1017 = vdwg.mxu0
      %v1018 = vadd.f32 %v952, %v995
      %v1019 = vadd.f32 %v953, %v998
      %v1020 = vadd.f32 %v954, %v1001
      %v1021 = vadd.f32 %v955, %v1004
      %v1022 = vadd.f32 %v956, %v1007
      %v1023 = vadd.f32 %v957, %v1010
      %v1024 = vadd.f32 %v958, %v1013
      %v1025 = vadd.f32 %v959, %v1016
      %1026 = vst [vmem:[#allocation2] sm:$0xff] %v1018
      %1027 = vst [vmem:[#allocation2 + $0x8] sm:$0xff] %v1019
      %1028 = vst [vmem:[#allocation2 + $0x10] sm:$0xff] %v1020
      %1029 = vst [vmem:[#allocation2 + $0x18] sm:$0xff] %v1021
      %1030 = vst [vmem:[#allocation2 + $0x20] sm:$0xff] %v1022
      %1031 = vst [vmem:[#allocation2 + $0x28] sm:$0xff] %v1023
      %1032 = vst [vmem:[#allocation2 + $0x30] sm:$0xff] %v1024
      %1033 = vst [vmem:[#allocation2 + $0x38] sm:$0xff] %v1025
      %v1034 = vld [vmem:[%s943 + $0x1] sm:$0xff]
      %v1035 = vld [vmem:[%s943 + $0x11] sm:$0xff]
      %v1036 = vld [vmem:[%s943 + $0x21] sm:$0xff]
      %v1037 = vld [vmem:[%s943 + $0x31] sm:$0xff]
      %v1038 = vld [vmem:[%s943 + $0x41] sm:$0xff]
      %v1039 = vld [vmem:[%s943 + $0x51] sm:$0xff]
      %v1040 = vld [vmem:[%s943 + $0x61] sm:$0xff]
      %v1041 = vld [vmem:[%s943 + $0x71] sm:$0xff]
      %v1042 = vld [vmem:[#allocation2] sm:$0xff]
      %v1043 = vld [vmem:[#allocation2 + $0x8] sm:$0xff]
      %v1044 = vld [vmem:[#allocation2 + $0x10] sm:$0xff]
      %v1045 = vld [vmem:[#allocation2 + $0x18] sm:$0xff]
      %v1046 = vld [vmem:[#allocation2 + $0x20] sm:$0xff]
      %v1047 = vld [vmem:[#allocation2 + $0x28] sm:$0xff]
      %v1048 = vld [vmem:[#allocation2 + $0x30] sm:$0xff]
      %v1049 = vld [vmem:[#allocation2 + $0x38] sm:$0xff]
      %s1050 = scalar_lea.vmem %s5, 896
      %v1051 = vld [vmem:[%s1050] sm:$0xff]
      %v1052 = vld [vmem:[%s1050 + $0x8] sm:$0xff]
      %v1053 = vld [vmem:[%s1050 + $0x10] sm:$0xff]
      %v1054 = vld [vmem:[%s1050 + $0x18] sm:$0xff]
      %v1055 = vld [vmem:[%s1050 + $0x20] sm:$0xff]
      %v1056 = vld [vmem:[%s1050 + $0x28] sm:$0xff]
      %v1057 = vld [vmem:[%s1050 + $0x30] sm:$0xff]
      %v1058 = vld [vmem:[%s1050 + $0x38] sm:$0xff]
      %v1059 = vld [vmem:[%s1050 + $0x40] sm:$0xff]
      %v1060 = vld [vmem:[%s1050 + $0x48] sm:$0xff]
      %v1061 = vld [vmem:[%s1050 + $0x50] sm:$0xff]
      %v1062 = vld [vmem:[%s1050 + $0x58] sm:$0xff]
      %v1063 = vld [vmem:[%s1050 + $0x60] sm:$0xff]
      %v1064 = vld [vmem:[%s1050 + $0x68] sm:$0xff]
      %v1065 = vld [vmem:[%s1050 + $0x70] sm:$0xff]
      %v1066 = vld [vmem:[%s1050 + $0x78] sm:$0xff]
      %1067 = vmatpush.msra.mxu0 %v1066
      %1068 = vmatpush.msra.mxu0 %v1065
      %1069 = vmatpush.msra.mxu0 %v1064
      %1070 = vmatpush.msra.mxu0 %v1063
      %1071 = vmatpush.msra.mxu0 %v1062
      %1072 = vmatpush.msra.mxu0 %v1061
      %1073 = vmatpush.msra.mxu0 %v1060
      %1074 = vmatpush.msra.mxu0 %v1059
      %1075 = vmatpush.msra.mxu0 %v1058
      %1076 = vmatpush.msra.mxu0 %v1057
      %1077 = vmatpush.msra.mxu0 %v1056
      %1078 = vmatpush.msra.mxu0 %v1055
      %1079 = vmatpush.msra.mxu0 %v1054
      %1080 = vmatpush.msra.mxu0 %v1053
      %1081 = vmatpush.msra.mxu0 %v1052
      %1082 = vmatpush.msra.mxu0 %v1051
      %1083 = vmatmul.f32.gmra.mxu0 %v1034
      %v1084 = vpop.f32.mrf.mxu0
      %v1085 = vadd.f32 0.0, %v1084
      %1086 = vmatmul.f32.gmra.mxu0 %v1035
      %v1087 = vpop.f32.mrf.mxu0
      %v1088 = vadd.f32 0.0, %v1087
      %1089 = vmatmul.f32.gmra.mxu0 %v1036
      %v1090 = vpop.f32.mrf.mxu0
      %v1091 = vadd.f32 0.0, %v1090
      %1092 = vmatmul.f32.gmra.mxu0 %v1037
      %v1093 = vpop.f32.mrf.mxu0
      %v1094 = vadd.f32 0.0, %v1093
      %1095 = vmatmul.f32.gmra.mxu0 %v1038
      %v1096 = vpop.f32.mrf.mxu0
      %v1097 = vadd.f32 0.0, %v1096
      %1098 = vmatmul.f32.gmra.mxu0 %v1039
      %v1099 = vpop.f32.mrf.mxu0
      %v1100 = vadd.f32 0.0, %v1099
      %1101 = vmatmul.f32.gmra.mxu0 %v1040
      %v1102 = vpop.f32.mrf.mxu0
      %v1103 = vadd.f32 0.0, %v1102
      %1104 = vmatmul.f32.gmra.mxu0 %v1041
      %v1105 = vpop.f32.mrf.mxu0
      %v1106 = vadd.f32 0.0, %v1105
      %1107 = vdwg.mxu0
      %v1108 = vadd.f32 %v1042, %v1085
      %v1109 = vadd.f32 %v1043, %v1088
      %v1110 = vadd.f32 %v1044, %v1091
      %v1111 = vadd.f32 %v1045, %v1094
      %v1112 = vadd.f32 %v1046, %v1097
      %v1113 = vadd.f32 %v1047, %v1100
      %v1114 = vadd.f32 %v1048, %v1103
      %v1115 = vadd.f32 %v1049, %v1106
      %1116 = vst [vmem:[#allocation2] sm:$0xff] %v1108
      %1117 = vst [vmem:[#allocation2 + $0x8] sm:$0xff] %v1109
      %1118 = vst [vmem:[#allocation2 + $0x10] sm:$0xff] %v1110
      %1119 = vst [vmem:[#allocation2 + $0x18] sm:$0xff] %v1111
      %1120 = vst [vmem:[#allocation2 + $0x20] sm:$0xff] %v1112
      %1121 = vst [vmem:[#allocation2 + $0x28] sm:$0xff] %v1113
      %1122 = vst [vmem:[#allocation2 + $0x30] sm:$0xff] %v1114
      %1123 = vst [vmem:[#allocation2 + $0x38] sm:$0xff] %v1115
      %v1124 = vld [vmem:[%s943 + $0x2] sm:$0xff]
      %v1125 = vld [vmem:[%s943 + $0x12] sm:$0xff]
      %v1126 = vld [vmem:[%s943 + $0x22] sm:$0xff]
      %v1127 = vld [vmem:[%s943 + $0x32] sm:$0xff]
      %v1128 = vld [vmem:[%s943 + $0x42] sm:$0xff]
      %v1129 = vld [vmem:[%s943 + $0x52] sm:$0xff]
      %v1130 = vld [vmem:[%s943 + $0x62] sm:$0xff]
      %v1131 = vld [vmem:[%s943 + $0x72] sm:$0xff]
      %v1132 = vld [vmem:[#allocation2] sm:$0xff]
      %v1133 = vld [vmem:[#allocation2 + $0x8] sm:$0xff]
      %v1134 = vld [vmem:[#allocation2 + $0x10] sm:$0xff]
      %v1135 = vld [vmem:[#allocation2 + $0x18] sm:$0xff]
      %v1136 = vld [vmem:[#allocation2 + $0x20] sm:$0xff]
      %v1137 = vld [vmem:[#allocation2 + $0x28] sm:$0xff]
      %v1138 = vld [vmem:[#allocation2 + $0x30] sm:$0xff]
      %v1139 = vld [vmem:[#allocation2 + $0x38] sm:$0xff]
      %s1140 = scalar_lea.vmem %s5, 1024
      %v1141 = vld [vmem:[%s1140] sm:$0xff]
      %v1142 = vld [vmem:[%s1140 + $0x8] sm:$0xff]
      %v1143 = vld [vmem:[%s1140 + $0x10] sm:$0xff]
      %v1144 = vld [vmem:[%s1140 + $0x18] sm:$0xff]
      %v1145 = vld [vmem:[%s1140 + $0x20] sm:$0xff]
      %v1146 = vld [vmem:[%s1140 + $0x28] sm:$0xff]
      %v1147 = vld [vmem:[%s1140 + $0x30] sm:$0xff]
      %v1148 = vld [vmem:[%s1140 + $0x38] sm:$0xff]
      %v1149 = vld [vmem:[%s1140 + $0x40] sm:$0xff]
      %v1150 = vld [vmem:[%s1140 + $0x48] sm:$0xff]
      %v1151 = vld [vmem:[%s1140 + $0x50] sm:$0xff]
      %v1152 = vld [vmem:[%s1140 + $0x58] sm:$0xff]
      %v1153 = vld [vmem:[%s1140 + $0x60] sm:$0xff]
      %v1154 = vld [vmem:[%s1140 + $0x68] sm:$0xff]
      %v1155 = vld [vmem:[%s1140 + $0x70] sm:$0xff]
      %v1156 = vld [vmem:[%s1140 + $0x78] sm:$0xff]
      %1157 = vmatpush.msra.mxu0 %v1156
      %1158 = vmatpush.msra.mxu0 %v1155
      %1159 = vmatpush.msra.mxu0 %v1154
      %1160 = vmatpush.msra.mxu0 %v1153
      %1161 = vmatpush.msra.mxu0 %v1152
      %1162 = vmatpush.msra.mxu0 %v1151
      %1163 = vmatpush.msra.mxu0 %v1150
      %1164 = vmatpush.msra.mxu0 %v1149
      %1165 = vmatpush.msra.mxu0 %v1148
      %1166 = vmatpush.msra.mxu0 %v1147
      %1167 = vmatpush.msra.mxu0 %v1146
      %1168 = vmatpush.msra.mxu0 %v1145
      %1169 = vmatpush.msra.mxu0 %v1144
      %1170 = vmatpush.msra.mxu0 %v1143
      %1171 = vmatpush.msra.mxu0 %v1142
      %1172 = vmatpush.msra.mxu0 %v1141
      %1173 = vmatmul.f32.gmra.mxu0 %v1124
      %v1174 = vpop.f32.mrf.mxu0
      %v1175 = vadd.f32 0.0, %v1174
      %1176 = vmatmul.f32.gmra.mxu0 %v1125
      %v1177 = vpop.f32.mrf.mxu0
      %v1178 = vadd.f32 0.0, %v1177
      %1179 = vmatmul.f32.gmra.mxu0 %v1126
      %v1180 = vpop.f32.mrf.mxu0
      %v1181 = vadd.f32 0.0, %v1180
      %1182 = vmatmul.f32.gmra.mxu0 %v1127
      %v1183 = vpop.f32.mrf.mxu0
      %v1184 = vadd.f32 0.0, %v1183
      %1185 = vmatmul.f32.gmra.mxu0 %v1128
      %v1186 = vpop.f32.mrf.mxu0
      %v1187 = vadd.f32 0.0, %v1186
      %1188 = vmatmul.f32.gmra.mxu0 %v1129
      %v1189 = vpop.f32.mrf.mxu0
      %v1190 = vadd.f32 0.0, %v1189
      %1191 = vmatmul.f32.gmra.mxu0 %v1130
      %v1192 = vpop.f32.mrf.mxu0
      %v1193 = vadd.f32 0.0, %v1192
      %1194 = vmatmul.f32.gmra.mxu0 %v1131
      %v1195 = vpop.f32.mrf.mxu0
      %v1196 = vadd.f32 0.0, %v1195
      %1197 = vdwg.mxu0
      %v1198 = vadd.f32 %v1132, %v1175
      %v1199 = vadd.f32 %v1133, %v1178
      %v1200 = vadd.f32 %v1134, %v1181
      %v1201 = vadd.f32 %v1135, %v1184
      %v1202 = vadd.f32 %v1136, %v1187
      %v1203 = vadd.f32 %v1137, %v1190
      %v1204 = vadd.f32 %v1138, %v1193
      %v1205 = vadd.f32 %v1139, %v1196
      %1206 = vst [vmem:[#allocation2] sm:$0xff] %v1198
      %1207 = vst [vmem:[#allocation2 + $0x8] sm:$0xff] %v1199
      %1208 = vst [vmem:[#allocation2 + $0x10] sm:$0xff] %v1200
      %1209 = vst [vmem:[#allocation2 + $0x18] sm:$0xff] %v1201
      %1210 = vst [vmem:[#allocation2 + $0x20] sm:$0xff] %v1202
      %1211 = vst [vmem:[#allocation2 + $0x28] sm:$0xff] %v1203
      %1212 = vst [vmem:[#allocation2 + $0x30] sm:$0xff] %v1204
      %1213 = vst [vmem:[#allocation2 + $0x38] sm:$0xff] %v1205
      %v1214 = vld [vmem:[#allocation2] sm:$0xff]
      %v1215 = vld [vmem:[#allocation2 + $0x8] sm:$0xff]
      %v1216 = vld [vmem:[#allocation2 + $0x10] sm:$0xff]
      %v1217 = vld [vmem:[#allocation2 + $0x18] sm:$0xff]
      %v1218 = vld [vmem:[#allocation2 + $0x20] sm:$0xff]
      %v1219 = vld [vmem:[#allocation2 + $0x28] sm:$0xff]
      %v1220 = vld [vmem:[#allocation2 + $0x30] sm:$0xff]
      %v1221 = vld [vmem:[#allocation2 + $0x38] sm:$0xff]
      %1222 = vst [vmem:[%s300] sm:$0xff] %v1214
      %1223 = vst [vmem:[%s300 + $0x8] sm:$0xff] %v1215
      %1224 = vst [vmem:[%s300 + $0x10] sm:$0xff] %v1216
      %1225 = vst [vmem:[%s300 + $0x18] sm:$0xff] %v1217
      %1226 = vst [vmem:[%s300 + $0x20] sm:$0xff] %v1218
      %1227 = vst [vmem:[%s300 + $0x28] sm:$0xff] %v1219
      %1228 = vst [vmem:[%s300 + $0x30] sm:$0xff] %v1220
      %1229 = vst [vmem:[%s300 + $0x38] sm:$0xff] %v1221
      %v1230 = vld [vmem:[%s7] sm:$0x1]
      %v1231 = vadd.f32 %v1214, %v1215
      %v1232 = vadd.f32 %v1231, %v1216
      %v1233 = vadd.f32 %v1232, %v1217
      %v1234 = vadd.f32 %v1233, %v1218
      %v1235 = vadd.f32 %v1234, %v1219
      %v1236 = vadd.f32 %v1235, %v1220
      %v1237 = vadd.f32 %v1236, %v1221
      %v1238 = vrot.slane %v1237, 4
      %v1239 = vadd.f32 %v1237, %v1238
      %v1240 = vrot.slane %v1239, 2
      %v1241 = vadd.f32 %v1239, %v1240
      %v1242 = vrot.slane %v1241, 1
      %v1243 = vadd.f32 %v1241, %v1242
      %v1244 = vadd.f32 %v1230, %v1243
      %1245 = vst [vmem:[%s7] sm:$0x1] %v1244
      %v1246 = vld [vmem:[%s8] sm:$0x1]
      %v1247 = vmul.f32 %v1214, %v1214
      %v1248 = vmul.f32 %v1215, %v1215
      %v1249 = vmul.f32 %v1216, %v1216
      %v1250 = vmul.f32 %v1217, %v1217
      %v1251 = vmul.f32 %v1218, %v1218
      %v1252 = vmul.f32 %v1219, %v1219
      %v1253 = vmul.f32 %v1220, %v1220
      %v1254 = vmul.f32 %v1221, %v1221
      %v1255 = vadd.f32 %v1247, %v1248
      %v1256 = vadd.f32 %v1255, %v1249
      %v1257 = vadd.f32 %v1256, %v1250
      %v1258 = vadd.f32 %v1257, %v1251
      %v1259 = vadd.f32 %v1258, %v1252
      %v1260 = vadd.f32 %v1259, %v1253
      %v1261 = vadd.f32 %v1260, %v1254
      %v1262 = vrot.slane %v1261, 4
      %v1263 = vadd.f32 %v1261, %v1262
      %v1264 = vrot.slane %v1263, 2
      %v1265 = vadd.f32 %v1263, %v1264
      %v1266 = vrot.slane %v1265, 1
      %v1267 = vadd.f32 %v1265, %v1266
      %v1268 = vadd.f32 %v1246, %v1267
      %1269 = vst [vmem:[%s8] sm:$0x1] %v1268
      %p1270 = scmp.lt.s32.totalorder %s20, 1
      %s1271 = scalar_select %p1270, %s20, 1
      %s1272 = smul.addr %s1271, 8
      %s1273 = smul.addr %s1272, 8
      %s1274 = scalar_lea.vmem %s6, %s1273
      // Predicated region
      $region49: #{residual_forward.4} parent=43 // pred_check
        %p1275 = pneg %p169
      $region50: #{residual_forward.4} parent=43 // pred_check_branch
        %1277 = sbr.rel (%p1275) target = $region52
      $region51: #{residual_forward.4} parent=43 // pred_region
        _
      $region52: #{residual_forward.4} parent=43 // pred_fallthru
        _
      // Predicated region
      $region53: #{residual_forward.4} parent=43 // pred_check
        %p1278 = pneg %p190
      $region54: #{residual_forward.4} parent=43 // pred_check_branch
        %1280 = sbr.rel (%p1278) target = $region56
      $region55: #{residual_forward.4} parent=43 // pred_region
        _
      $region56: #{residual_forward.4} parent=43 // pred_fallthru
        _
      // Predicated region
      $region57: #{residual_forward.4} parent=43 // pred_check
        %p1281 = pneg %p211
      $region58: #{residual_forward.4} parent=43 // pred_check_branch
        %1283 = sbr.rel (%p1281) target = $region60
      $region59: #{residual_forward.4} parent=43 // pred_region
        _
      $region60: #{residual_forward.4} parent=43 // pred_fallthru
        _
      // Predicated region
      $region61: #{residual_forward.4} parent=43 // pred_check
        %p1284 = pneg %p190
      $region62: #{residual_forward.4} parent=43 // pred_check_branch
        %1286 = sbr.rel (%p1284) target = $region64
      $region63: #{residual_forward.4} parent=43 // pred_region
        _
      $region64: #{residual_forward.4} parent=43 // pred_fallthru
        _
      // Predicated region
      $region65: #{residual_forward.4} parent=43 // pred_check
        %p1287 = pneg %p211
      $region66: #{residual_forward.4} parent=43 // pred_check_branch
        %1289 = sbr.rel (%p1287) target = $region68
      $region67: #{residual_forward.4} parent=43 // pred_region
        _
      $region68: #{residual_forward.4} parent=43 // pred_fallthru
        _
    $region44: #{residual_forward.4} parent=5 // pred_fallthru
      _
    %p1290 = scmp.le.s32.totalorder 2, %s15
    // Predicated region
    $region69: #{residual_forward.4} parent=5 // pred_check
      %p1291 = pneg %p1290
    $region70: #{residual_forward.4} parent=5 // pred_check_branch
      %1293 = sbr.rel (%p1291) target = $region72
    $region71: #{residual_forward.4} parent=5 // pred_region
      %s1294 = ssub.s32 %s15, 2
      // Predicated region
      $region73: #{residual_forward.4} parent=71 // pred_check
        %p1295 = pneg %p175
      $region74: #{residual_forward.4} parent=71 // pred_check_branch
        %1297 = sbr.rel (%p1295) target = $region76
      $region75: #{residual_forward.4} parent=71 // pred_region
        %p1298 = scmp.lt.s32.totalorder %s21, 1
        %s1299 = scalar_select %p1298, %s21, 1
        %s1300 = smul.addr %s1299, 8
        %s1301 = smul.addr %s1300, 8
        %s1302 = scalar_lea.vmem %s6, %s1301
      $region76: #{residual_forward.4} parent=71 // pred_fallthru
        _
    $region72: #{residual_forward.4} parent=5 // pred_fallthru
      _
  $region6: #{residual_forward.4} parent=0 // loop_footer
    %s19 = sadd.s32 1, %s15
  $region7: #{residual_forward.4} parent=0 // loop_footer_branch
    %14 = sbr.rel target = $region3
  $region8: #{residual_forward.4} parent=0 // loop_exit
    _

</llo_original>
